<compile_context>
chip_gen: v7x
topology: tpu7x:2x2x1
jax: 0.10.0
libtpu: 0.0.40
codegen_flags: <defaults>
</compile_context>

<pallas_src>
import functools

import jax
import jax.numpy as jnp
from jax.experimental import pallas as pl
from jax.experimental.pallas import tpu as pltpu

EPS = 1e-5                 # PyTorch BatchNorm2d default
USE_BF16_MATMUL = False    # bf16 MXU operands (2-3x on v6e/v7x); breaks the 1e-4 check


def _vmem_limit(estimate_bytes):
    # Leave headroom for compiler scratch; never request a full v7x TC's 64 MiB.
    return int(min(max(2 * estimate_bytes, 32 << 20), 48 << 20))


def _conv_stats_kernel(*refs, H, W, Cin, Cout, apply_act, use_bf16):
    """(optional fused BN+ReLU of the incoming tile) -> 3x3 conv -> partial BN stats.

    Refs (apply_act=True):  scale, shift, x, w | y, stats | xpad
    Refs (apply_act=False): x, w               | y, stats | xpad
      x:     (1, H, W, Cin)   raw activation tile (UNPADDED; halo built on-chip)
      scale: (1, 1, Cin)      previous block's BN scale (only if apply_act)
      shift: (1, 1, Cin)      previous block's BN shift (only if apply_act)
      w:     (9, Cin, Cout)   folded conv weights, tap-major (grid-resident)
      y:     (1, H, W, Cout)  raw (pre-BN) conv output
      stats: (1, 2, Cout)     per-tile [sum, centered sum of squares]
      xpad:  (H+2, W+2, Cin)  zero-padded VMEM staging scratch
    """
    if apply_act:
        scale_ref, shift_ref, x_ref, w_ref, y_ref, stats_ref, xpad_ref = refs
    else:
        x_ref, w_ref, y_ref, stats_ref, xpad_ref = refs

    x = x_ref[0].astype(jnp.float32)                       # (H, W, Cin)
    if apply_act:
        # Previous block's BatchNorm + ReLU, fused into this conv's input load.
        x = jnp.maximum(x * scale_ref[...] + shift_ref[...], 0.0)

    # Build the zero halo on-chip (no jnp.pad pass over HBM). Re-zeroing every grid step
    # keeps it correct when the parallel axis is split across TensorCores.
    xpad_ref[...] = jnp.zeros_like(xpad_ref)
    xpad_ref[1:H + 1, 1:W + 1, :] = x

    # 3x3 conv as 9 accumulated K=Cin MXU dots (no 9x im2col slab / lane concatenate).
    acc = jnp.zeros((H * W, Cout), jnp.float32)
    k = 0
    for dy in range(3):
        for dx in range(3):
            tap = xpad_ref[dy:dy + H, dx:dx + W, :].reshape(H * W, Cin)
            wk = w_ref[k]
            if use_bf16:
                tap = tap.astype(jnp.bfloat16)
                wk = wk.astype(jnp.bfloat16)
            acc = acc + jnp.dot(tap, wk, preferred_element_type=jnp.float32)
            k += 1

    y_ref[0] = acc.reshape(H, W, Cout)

    # Per-tile centered statistics; combined exactly in the wrapper (avoids the
    # E[x^2] - mean^2 cancellation flagged in the review).
    s = jnp.sum(acc, axis=0, keepdims=True)                # (1, Cout)
    mu = s * (1.0 / (H * W))
    d = acc - mu
    css = jnp.sum(d * d, axis=0, keepdims=True)            # (1, Cout)
    stats_ref[0, 0:1, :] = s
    stats_ref[0, 1:2, :] = css


def _conv_pass(x_nhwc, w_folded, scale=None, shift=None, use_bf16=USE_BF16_MATMUL):
    """One 3x3 conv over the batch grid; optionally fuses the previous block's BN+ReLU."""
    N, H, W, Cin = x_nhwc.shape
    Cout = w_folded.shape[-1]
    apply_act = scale is not None

    kern = functools.partial(_conv_stats_kernel, H=H, W=W, Cin=Cin, Cout=Cout,
                             apply_act=apply_act, use_bf16=use_bf16)

    in_specs = [
        pl.BlockSpec((1, H, W, Cin), lambda n: (n, 0, 0, 0)),
        pl.BlockSpec((9, Cin, Cout), lambda n: (0, 0, 0)),      # weights stay resident
    ]
    args = [x_nhwc, w_folded]
    if apply_act:
        in_specs = [
            pl.BlockSpec((1, 1, Cin), lambda n: (0, 0, 0)),
            pl.BlockSpec((1, 1, Cin), lambda n: (0, 0, 0)),
        ] + in_specs
        args = [scale.reshape(1, 1, Cin), shift.reshape(1, 1, Cin)] + args

    flops = 2 * N * H * W * 9 * Cin * Cout
    bytes_acc = 4 * (x_nhwc.size + w_folded.size + N * H * W * Cout + N * 2 * Cout)
    tile_bytes = 4 * (H * W * Cin + (H + 2) * (W + 2) * Cin + H * W * Cout
                      + 9 * Cin * Cout + H * W * max(Cin, Cout))

    y_raw, pstats = pl.pallas_call(
        kern,
        grid=(N,),
        in_specs=in_specs,
        out_specs=(
            pl.BlockSpec((1, H, W, Cout), lambda n: (n, 0, 0, 0)),
            pl.BlockSpec((1, 2, Cout), lambda n: (n, 0, 0)),
        ),
        out_shape=(
            jax.ShapeDtypeStruct((N, H, W, Cout), jnp.float32),
            jax.ShapeDtypeStruct((N, 2, Cout), jnp.float32),
        ),
        scratch_shapes=[pltpu.VMEM((H + 2, W + 2, Cin), jnp.float32)],
        compiler_params=pltpu.CompilerParams(
            dimension_semantics=("parallel",),
            vmem_limit_bytes=_vmem_limit(4 * tile_bytes),
        ),
        cost_estimate=pl.CostEstimate(flops=flops, transcendentals=0,
                                      bytes_accessed=bytes_acc),
    )(*args)
    return y_raw, pstats


def _finalize_bn(pstats, gamma, beta, n_per_tile, total):
    """Combine per-tile (sum, centered-SS) into global scale/shift (exact combine)."""
    s = pstats[:, 0, :]                                    # (tiles, Cout)
    css = pstats[:, 1, :]                                  # (tiles, Cout)
    mean = jnp.sum(s, axis=0) / total
    mu_t = s / n_per_tile
    var = (jnp.sum(css, axis=0)
           + n_per_tile * jnp.sum((mu_t - mean) ** 2, axis=0)) / total
    var = jnp.maximum(var, 0.0)
    scale = gamma * jax.lax.rsqrt(var + EPS)
    shift = beta - mean * scale
    return scale, shift


def _bn_relu_kernel(y_ref, scale_ref, shift_ref, o_ref):
    """Lane-dense fused BN-apply + ReLU: o = max(y * scale + shift, 0)."""
    o_ref[...] = jnp.maximum(y_ref[...] * scale_ref[...] + shift_ref[...], 0.0)


def _bn_relu_apply(y_raw, scale, shift):
    """Final BN+ReLU (cannot be fused into the conv write: stats are global)."""
    N, H, W, Cout = y_raw.shape
    L = W * Cout
    R = N * H
    y2d = y_raw.reshape(R, L)                      # same row-major bytes, lane-dense
    scale_t = jnp.tile(scale, W).reshape(1, L)     # lane l -> channel l % Cout
    shift_t = jnp.tile(shift, W).reshape(1, L)

    # Row tile from a VMEM byte budget (~2 MiB per buffer), kept a multiple of 8 rows.
    budget = 2 << 20
    TR = max(8, min(R, (budget // (4 * L)) // 8 * 8))

    out2d = pl.pallas_call(
        _bn_relu_kernel,
        grid=(pl.cdiv(R, TR),),
        in_specs=[
            pl.BlockSpec((TR, L), lambda i: (i, 0)),
            pl.BlockSpec((1, L), lambda i: (0, 0)),
            pl.BlockSpec((1, L), lambda i: (0, 0)),
        ],
        out_specs=pl.BlockSpec((TR, L), lambda i: (i, 0)),
        out_shape=jax.ShapeDtypeStruct((R, L), jnp.float32),
        compiler_params=pltpu.CompilerParams(
            dimension_semantics=("parallel",),
            vmem_limit_bytes=_vmem_limit(4 * 4 * TR * L),
        ),
        cost_estimate=pl.CostEstimate(flops=2 * R * L, transcendentals=0,
                                      bytes_accessed=8 * R * L + 8 * L),
    )(y2d, scale_t, shift_t)
    return out2d.reshape(N, H, W, Cout)


def double_conv(x_nchw, params):
    """Matches DoubleConv.forward(x) with the module in training mode (batch stats)."""
    x = jnp.transpose(x_nchw, (0, 2, 3, 1))        # NCHW -> NHWC
    N, H, W, _ = x.shape
    total = N * H * W

    # Block 1: conv -> raw output + partial BN stats (no standalone BN-apply pass).
    y1, s1 = _conv_pass(x, params["w1_folded"])
    sc1, sh1 = _finalize_bn(s1, params["g1"], params["b1"], H * W, total)

    # Block 2: BN1 + ReLU fused into conv-2's input load; conv -> raw output + stats.
    y2, s2 = _conv_pass(y1, params["w2_folded"], scale=sc1, shift=sh1)
    sc2, sh2 = _finalize_bn(s2, params["g2"], params["b2"], H * W, total)

    # Final BN2 + ReLU (lane-dense elementwise pass).
    out = _bn_relu_apply(y2, sc2, sh2)
    return jnp.transpose(out, (0, 3, 1, 2))        # back to NCHW


def _reference(x_nchw, params):
    """Pure-JAX reference mirroring PyTorch semantics (NCHW / OIHW, training-mode BN)."""
    def block(x, w_oihw, g, b):
        y = jax.lax.conv_general_dilated(
            x, w_oihw, window_strides=(1, 1), padding="SAME",
            dimension_numbers=("NCHW", "OIHW", "NCHW"))
        mean = jnp.mean(y, axis=(0, 2, 3), keepdims=True)
        var = jnp.mean((y - mean) ** 2, axis=(0, 2, 3), keepdims=True)
        yn = (y - mean) * jax.lax.rsqrt(var + EPS)
        yn = yn * g.reshape(1, -1, 1, 1) + b.reshape(1, -1, 1, 1)
        return jnp.maximum(yn, 0.0)
    h = block(x_nchw, params["w1_oihw"], params["g1"], params["b1"])
    return block(h, params["w2_oihw"], params["g2"], params["b2"])


def _fold_weights(w_oihw):
    """(Cout, Cin, 3, 3) -> (9, Cin, Cout), tap-major (ky, kx)."""
    cout, cin = w_oihw.shape[0], w_oihw.shape[1]
    return jnp.transpose(w_oihw, (2, 3, 1, 0)).reshape(9, cin, cout)


def init_params(key, in_channels, out_channels):
    k1, k2 = jax.random.split(key)
    # PyTorch Conv2d weight shape: (Cout, Cin, 3, 3); deterministic synthetic init.
    w1_oihw = 0.1 * jax.random.normal(k1, (out_channels, in_channels, 3, 3), jnp.float32)
    w2_oihw = 0.1 * jax.random.normal(k2, (out_channels, out_channels, 3, 3), jnp.float32)
    return {
        "w1_oihw": w1_oihw,
        "w2_oihw": w2_oihw,
        "w1_folded": _fold_weights(w1_oihw),        # (9, Cin, Cout)
        "w2_folded": _fold_weights(w2_oihw),
        # BatchNorm2d default init: weight=1, bias=0
        "g1": jnp.ones((out_channels,), jnp.float32),
        "b1": jnp.zeros((out_channels,), jnp.float32),
        "g2": jnp.ones((out_channels,), jnp.float32),
        "b2": jnp.zeros((out_channels,), jnp.float32),
    }


if __name__ == "__main__":
    key = jax.random.PRNGKey(0)
    kx, kp = jax.random.split(key)

    N, C_IN, C_OUT, H, W = 2, 4, 8, 16, 16
    x = jax.random.normal(kx, (N, C_IN, H, W), jnp.float32)   # NCHW, like PyTorch
    params = init_params(kp, C_IN, C_OUT)

    out = jax.block_until_ready(double_conv(x, params))
    ref = jax.block_until_ready(_reference(x, params))

    assert out.shape == (N, C_OUT, H, W), out.shape
    err = float(jnp.max(jnp.abs(out - ref)))
    assert jnp.allclose(out, ref, rtol=1e-4, atol=1e-4), err
    print("KERNEL_OK")
</pallas_src>

<mosaic_0001>
module attributes {stable_mosaic.version = 11 : i64} {
  func.func @_conv_stats_kernel(%arg0: i32, %arg1: memref<1x16x16x4xf32, #tpu.memory_space<vmem>>, %arg2: memref<9x4x8xf32, #tpu.memory_space<vmem>>, %arg3: memref<1x16x16x8xf32, #tpu.memory_space<vmem>>, %arg4: memref<1x2x8xf32, #tpu.memory_space<vmem>>, %arg5: memref<18x18x4xf32, #tpu.memory_space<vmem>>) attributes {dimension_semantics = [#tpu.dimension_semantics<parallel>], iteration_bounds = array<i64: 2>, scalar_prefetch = 0 : i64, scratch_operands = 1 : i64, tpu.core_type = #tpu.core_type<tc>, window_params = [{transform_indices = @transform_0, window_bounds = array<i64: 1, 16, 16, 4>}, {pipeline_mode = #tpu.pipeline_mode<synchronous>, transform_indices = @transform_1, window_bounds = array<i64: 9, 4, 8>}, {transform_indices = @transform_2, window_bounds = array<i64: 1, 16, 16, 8>}, {transform_indices = @transform_3, window_bounds = array<i64: 1, 2, 8>}]} {
    %c0 = arith.constant 0 : index
    %c0_0 = arith.constant 0 : index
    %c0_1 = arith.constant 0 : index
    %c0_2 = arith.constant 0 : index
    %0 = vector.load %arg1[%c0, %c0_0, %c0_1, %c0_2] : memref<1x16x16x4xf32, #tpu.memory_space<vmem>>, vector<1x16x16x4xf32>
    %1 = vector.shape_cast %0 : vector<1x16x16x4xf32> to vector<16x16x4xf32>
    %cst = arith.constant 0.000000e+00 : f32
    %2 = vector.broadcast %cst : f32 to vector<18x18x4xf32>
    %c0_3 = arith.constant 0 : index
    %c0_4 = arith.constant 0 : index
    %c0_5 = arith.constant 0 : index
    %3 = vector.load %arg5[%c0_3, %c0_4, %c0_5] : memref<18x18x4xf32, #tpu.memory_space<vmem>>, vector<18x18x4xf32>
    tpu.vector_store %arg5[%c0_3, %c0_4, %c0_5], %2 {strides = array<i32>} : memref<18x18x4xf32, #tpu.memory_space<vmem>>, vector<18x18x4xf32>,
    %c1 = arith.constant 1 : index
    %c1_6 = arith.constant 1 : index
    %c0_7 = arith.constant 0 : index
    %4 = vector.load %arg5[%c1, %c1_6, %c0_7] : memref<18x18x4xf32, #tpu.memory_space<vmem>>, vector<16x16x4xf32>
    tpu.vector_store %arg5[%c1, %c1_6, %c0_7], %1 {strides = array<i32>} : memref<18x18x4xf32, #tpu.memory_space<vmem>>, vector<16x16x4xf32>,
    %cst_8 = arith.constant 0.000000e+00 : f32
    %5 = vector.broadcast %cst_8 : f32 to vector<256x8xf32>
    %c0_9 = arith.constant 0 : index
    %c0_10 = arith.constant 0 : index
    %c0_11 = arith.constant 0 : index
    %6 = vector.load %arg5[%c0_9, %c0_10, %c0_11] : memref<18x18x4xf32, #tpu.memory_space<vmem>>, vector<16x16x4xf32>
    %7 = vector.shape_cast %6 : vector<16x16x4xf32> to vector<256x4xf32>
    %c0_12 = arith.constant 0 : index
    %c0_13 = arith.constant 0 : index
    %c0_14 = arith.constant 0 : index
    %8 = vector.load %arg2[%c0_12, %c0_13, %c0_14] : memref<9x4x8xf32, #tpu.memory_space<vmem>>, vector<1x4x8xf32>
    %9 = vector.shape_cast %8 : vector<1x4x8xf32> to vector<4x8xf32>
    %cst_15 = arith.constant dense<0.000000e+00> : vector<256x8xf32>
    %10 = tpu.matmul %7, %9, %cst_15 {dimension_numbers = #tpu.dot_dimension_numbers<[1], [0], [0], [1], [0, 0, 1, 1], [], []>} : vector<256x4xf32>, vector<4x8xf32>, vector<256x8xf32> -> vector<256x8xf32>
    %11 = arith.addf %5, %10 : vector<256x8xf32>
    %c0_16 = arith.constant 0 : index
    %c1_17 = arith.constant 1 : index
    %c0_18 = arith.constant 0 : index
    %12 = vector.load %arg5[%c0_16, %c1_17, %c0_18] : memref<18x18x4xf32, #tpu.memory_space<vmem>>, vector<16x16x4xf32>
    %13 = vector.shape_cast %12 : vector<16x16x4xf32> to vector<256x4xf32>
    %c1_19 = arith.constant 1 : index
    %c0_20 = arith.constant 0 : index
    %c0_21 = arith.constant 0 : index
    %14 = vector.load %arg2[%c1_19, %c0_20, %c0_21] : memref<9x4x8xf32, #tpu.memory_space<vmem>>, vector<1x4x8xf32>
    %15 = vector.shape_cast %14 : vector<1x4x8xf32> to vector<4x8xf32>
    %cst_22 = arith.constant dense<0.000000e+00> : vector<256x8xf32>
    %16 = tpu.matmul %13, %15, %cst_22 {dimension_numbers = #tpu.dot_dimension_numbers<[1], [0], [0], [1], [0, 0, 1, 1], [], []>} : vector<256x4xf32>, vector<4x8xf32>, vector<256x8xf32> -> vector<256x8xf32>
    %17 = arith.addf %11, %16 : vector<256x8xf32>
    %c0_23 = arith.constant 0 : index
    %c2 = arith.constant 2 : index
    %c0_24 = arith.constant 0 : index
    %18 = vector.load %arg5[%c0_23, %c2, %c0_24] : memref<18x18x4xf32, #tpu.memory_space<vmem>>, vector<16x16x4xf32>
    %19 = vector.shape_cast %18 : vector<16x16x4xf32> to vector<256x4xf32>
    %c2_25 = arith.constant 2 : index
    %c0_26 = arith.constant 0 : index
    %c0_27 = arith.constant 0 : index
    %20 = vector.load %arg2[%c2_25, %c0_26, %c0_27] : memref<9x4x8xf32, #tpu.memory_space<vmem>>, vector<1x4x8xf32>
    %21 = vector.shape_cast %20 : vector<1x4x8xf32> to vector<4x8xf32>
    %cst_28 = arith.constant dense<0.000000e+00> : vector<256x8xf32>
    %22 = tpu.matmul %19, %21, %cst_28 {dimension_numbers = #tpu.dot_dimension_numbers<[1], [0], [0], [1], [0, 0, 1, 1], [], []>} : vector<256x4xf32>, vector<4x8xf32>, vector<256x8xf32> -> vector<256x8xf32>
    %23 = arith.addf %17, %22 : vector<256x8xf32>
    %c1_29 = arith.constant 1 : index
    %c0_30 = arith.constant 0 : index
    %c0_31 = arith.constant 0 : index
    %24 = vector.load %arg5[%c1_29, %c0_30, %c0_31] : memref<18x18x4xf32, #tpu.memory_space<vmem>>, vector<16x16x4xf32>
    %25 = vector.shape_cast %24 : vector<16x16x4xf32> to vector<256x4xf32>
    %c3 = arith.constant 3 : index
    %c0_32 = arith.constant 0 : index
    %c0_33 = arith.constant 0 : index
    %26 = vector.load %arg2[%c3, %c0_32, %c0_33] : memref<9x4x8xf32, #tpu.memory_space<vmem>>, vector<1x4x8xf32>
    %27 = vector.shape_cast %26 : vector<1x4x8xf32> to vector<4x8xf32>
    %cst_34 = arith.constant dense<0.000000e+00> : vector<256x8xf32>
    %28 = tpu.matmul %25, %27, %cst_34 {dimension_numbers = #tpu.dot_dimension_numbers<[1], [0], [0], [1], [0, 0, 1, 1], [], []>} : vector<256x4xf32>, vector<4x8xf32>, vector<256x8xf32> -> vector<256x8xf32>
    %29 = arith.addf %23, %28 : vector<256x8xf32>
    %c1_35 = arith.constant 1 : index
    %c1_36 = arith.constant 1 : index
    %c0_37 = arith.constant 0 : index
    %30 = vector.load %arg5[%c1_35, %c1_36, %c0_37] : memref<18x18x4xf32, #tpu.memory_space<vmem>>, vector<16x16x4xf32>
    %31 = vector.shape_cast %30 : vector<16x16x4xf32> to vector<256x4xf32>
    %c4 = arith.constant 4 : index
    %c0_38 = arith.constant 0 : index
    %c0_39 = arith.constant 0 : index
    %32 = vector.load %arg2[%c4, %c0_38, %c0_39] : memref<9x4x8xf32, #tpu.memory_space<vmem>>, vector<1x4x8xf32>
    %33 = vector.shape_cast %32 : vector<1x4x8xf32> to vector<4x8xf32>
    %cst_40 = arith.constant dense<0.000000e+00> : vector<256x8xf32>
    %34 = tpu.matmul %31, %33, %cst_40 {dimension_numbers = #tpu.dot_dimension_numbers<[1], [0], [0], [1], [0, 0, 1, 1], [], []>} : vector<256x4xf32>, vector<4x8xf32>, vector<256x8xf32> -> vector<256x8xf32>
    %35 = arith.addf %29, %34 : vector<256x8xf32>
    %c1_41 = arith.constant 1 : index
    %c2_42 = arith.constant 2 : index
    %c0_43 = arith.constant 0 : index
    %36 = vector.load %arg5[%c1_41, %c2_42, %c0_43] : memref<18x18x4xf32, #tpu.memory_space<vmem>>, vector<16x16x4xf32>
    %37 = vector.shape_cast %36 : vector<16x16x4xf32> to vector<256x4xf32>
    %c5 = arith.constant 5 : index
    %c0_44 = arith.constant 0 : index
    %c0_45 = arith.constant 0 : index
    %38 = vector.load %arg2[%c5, %c0_44, %c0_45] : memref<9x4x8xf32, #tpu.memory_space<vmem>>, vector<1x4x8xf32>
    %39 = vector.shape_cast %38 : vector<1x4x8xf32> to vector<4x8xf32>
    %cst_46 = arith.constant dense<0.000000e+00> : vector<256x8xf32>
    %40 = tpu.matmul %37, %39, %cst_46 {dimension_numbers = #tpu.dot_dimension_numbers<[1], [0], [0], [1], [0, 0, 1, 1], [], []>} : vector<256x4xf32>, vector<4x8xf32>, vector<256x8xf32> -> vector<256x8xf32>
    %41 = arith.addf %35, %40 : vector<256x8xf32>
    %c2_47 = arith.constant 2 : index
    %c0_48 = arith.constant 0 : index
    %c0_49 = arith.constant 0 : index
    %42 = vector.load %arg5[%c2_47, %c0_48, %c0_49] : memref<18x18x4xf32, #tpu.memory_space<vmem>>, vector<16x16x4xf32>
    %43 = vector.shape_cast %42 : vector<16x16x4xf32> to vector<256x4xf32>
    %c6 = arith.constant 6 : index
    %c0_50 = arith.constant 0 : index
    %c0_51 = arith.constant 0 : index
    %44 = vector.load %arg2[%c6, %c0_50, %c0_51] : memref<9x4x8xf32, #tpu.memory_space<vmem>>, vector<1x4x8xf32>
    %45 = vector.shape_cast %44 : vector<1x4x8xf32> to vector<4x8xf32>
    %cst_52 = arith.constant dense<0.000000e+00> : vector<256x8xf32>
    %46 = tpu.matmul %43, %45, %cst_52 {dimension_numbers = #tpu.dot_dimension_numbers<[1], [0], [0], [1], [0, 0, 1, 1], [], []>} : vector<256x4xf32>, vector<4x8xf32>, vector<256x8xf32> -> vector<256x8xf32>
    %47 = arith.addf %41, %46 : vector<256x8xf32>
    %c2_53 = arith.constant 2 : index
    %c1_54 = arith.constant 1 : index
    %c0_55 = arith.constant 0 : index
    %48 = vector.load %arg5[%c2_53, %c1_54, %c0_55] : memref<18x18x4xf32, #tpu.memory_space<vmem>>, vector<16x16x4xf32>
    %49 = vector.shape_cast %48 : vector<16x16x4xf32> to vector<256x4xf32>
    %c7 = arith.constant 7 : index
    %c0_56 = arith.constant 0 : index
    %c0_57 = arith.constant 0 : index
    %50 = vector.load %arg2[%c7, %c0_56, %c0_57] : memref<9x4x8xf32, #tpu.memory_space<vmem>>, vector<1x4x8xf32>
    %51 = vector.shape_cast %50 : vector<1x4x8xf32> to vector<4x8xf32>
    %cst_58 = arith.constant dense<0.000000e+00> : vector<256x8xf32>
    %52 = tpu.matmul %49, %51, %cst_58 {dimension_numbers = #tpu.dot_dimension_numbers<[1], [0], [0], [1], [0, 0, 1, 1], [], []>} : vector<256x4xf32>, vector<4x8xf32>, vector<256x8xf32> -> vector<256x8xf32>
    %53 = arith.addf %47, %52 : vector<256x8xf32>
    %c2_59 = arith.constant 2 : index
    %c2_60 = arith.constant 2 : index
    %c0_61 = arith.constant 0 : index
    %54 = vector.load %arg5[%c2_59, %c2_60, %c0_61] : memref<18x18x4xf32, #tpu.memory_space<vmem>>, vector<16x16x4xf32>
    %55 = vector.shape_cast %54 : vector<16x16x4xf32> to vector<256x4xf32>
    %c8 = arith.constant 8 : index
    %c0_62 = arith.constant 0 : index
    %c0_63 = arith.constant 0 : index
    %56 = vector.load %arg2[%c8, %c0_62, %c0_63] : memref<9x4x8xf32, #tpu.memory_space<vmem>>, vector<1x4x8xf32>
    %57 = vector.shape_cast %56 : vector<1x4x8xf32> to vector<4x8xf32>
    %cst_64 = arith.constant dense<0.000000e+00> : vector<256x8xf32>
    %58 = tpu.matmul %55, %57, %cst_64 {dimension_numbers = #tpu.dot_dimension_numbers<[1], [0], [0], [1], [0, 0, 1, 1], [], []>} : vector<256x4xf32>, vector<4x8xf32>, vector<256x8xf32> -> vector<256x8xf32>
    %59 = arith.addf %53, %58 : vector<256x8xf32>
    %60 = vector.shape_cast %59 : vector<256x8xf32> to vector<16x16x8xf32>
    %c0_65 = arith.constant 0 : index
    %c0_66 = arith.constant 0 : index
    %c0_67 = arith.constant 0 : index
    %c0_68 = arith.constant 0 : index
    %61 = vector.load %arg3[%c0_65, %c0_66, %c0_67, %c0_68] : memref<1x16x16x8xf32, #tpu.memory_space<vmem>>, vector<1x16x16x8xf32>
    %62 = vector.shape_cast %61 : vector<1x16x16x8xf32> to vector<16x16x8xf32>
    %63 = vector.shape_cast %60 : vector<16x16x8xf32> to vector<1x16x16x8xf32>
    tpu.vector_store %arg3[%c0_65, %c0_66, %c0_67, %c0_68], %63 {strides = array<i32>} : memref<1x16x16x8xf32, #tpu.memory_space<vmem>>, vector<1x16x16x8xf32>,
    %cst_69 = arith.constant dense<0.000000e+00> : vector<8xf32>
    %64 = vector.multi_reduction <add>, %59, %cst_69 [0] : vector<256x8xf32> to vector<8xf32>
    %65 = vector.shape_cast %64 : vector<8xf32> to vector<1x8xf32>
    %cst_70 = arith.constant 3.906250e-03 : f32
    %66 = vector.broadcast %cst_70 : f32 to vector<1x8xf32>
    %67 = arith.mulf %65, %66 : vector<1x8xf32>
    %68 = vector.broadcast %67 : vector<1x8xf32> to vector<256x8xf32>
    %69 = arith.subf %59, %68 : vector<256x8xf32>
    %70 = arith.mulf %69, %69 : vector<256x8xf32>
    %cst_71 = arith.constant dense<0.000000e+00> : vector<8xf32>
    %71 = vector.multi_reduction <add>, %70, %cst_71 [0] : vector<256x8xf32> to vector<8xf32>
    %72 = vector.shape_cast %71 : vector<8xf32> to vector<1x8xf32>
    %c0_72 = arith.constant 0 : index
    %c0_73 = arith.constant 0 : index
    %c0_74 = arith.constant 0 : index
    %73 = vector.load %arg4[%c0_72, %c0_73, %c0_74] : memref<1x2x8xf32, #tpu.memory_space<vmem>>, vector<1x1x8xf32>
    %74 = vector.shape_cast %73 : vector<1x1x8xf32> to vector<1x8xf32>
    %75 = vector.shape_cast %65 : vector<1x8xf32> to vector<1x1x8xf32>
    tpu.vector_store %arg4[%c0_72, %c0_73, %c0_74], %75 {strides = array<i32>} : memref<1x2x8xf32, #tpu.memory_space<vmem>>, vector<1x1x8xf32>,
    %c0_75 = arith.constant 0 : index
    %c1_76 = arith.constant 1 : index
    %c0_77 = arith.constant 0 : index
    %76 = vector.load %arg4[%c0_75, %c1_76, %c0_77] : memref<1x2x8xf32, #tpu.memory_space<vmem>>, vector<1x1x8xf32>
    %77 = vector.shape_cast %76 : vector<1x1x8xf32> to vector<1x8xf32>
    %78 = vector.shape_cast %72 : vector<1x8xf32> to vector<1x1x8xf32>
    tpu.vector_store %arg4[%c0_75, %c1_76, %c0_77], %78 {strides = array<i32>} : memref<1x2x8xf32, #tpu.memory_space<vmem>>, vector<1x1x8xf32>,
    return
  }
  func.func @transform_0(%arg0: i32) -> (i32, i32, i32, i32) {
    %c0_i32 = arith.constant 0 : i32
    %c0_i32_0 = arith.constant 0 : i32
    %c0_i32_1 = arith.constant 0 : i32
    %c0_i32_2 = arith.constant 0 : i32
    return %arg0, %c0_i32, %c0_i32_0, %c0_i32_1 : i32, i32, i32, i32
  }
  func.func @transform_1(%arg0: i32) -> (i32, i32, i32) {
    %c0_i32 = arith.constant 0 : i32
    %c0_i32_0 = arith.constant 0 : i32
    %c0_i32_1 = arith.constant 0 : i32
    %c0_i32_2 = arith.constant 0 : i32
    return %c0_i32, %c0_i32_0, %c0_i32_1 : i32, i32, i32
  }
  func.func @transform_2(%arg0: i32) -> (i32, i32, i32, i32) {
    %c0_i32 = arith.constant 0 : i32
    %c0_i32_0 = arith.constant 0 : i32
    %c0_i32_1 = arith.constant 0 : i32
    %c0_i32_2 = arith.constant 0 : i32
    return %arg0, %c0_i32, %c0_i32_0, %c0_i32_1 : i32, i32, i32, i32
  }
  func.func @transform_3(%arg0: i32) -> (i32, i32, i32) {
    %c0_i32 = arith.constant 0 : i32
    %c0_i32_0 = arith.constant 0 : i32
    %c0_i32_1 = arith.constant 0 : i32
    return %arg0, %c0_i32, %c0_i32_0 : i32, i32, i32
  }
}

</mosaic_0001>

<llo_original>
// kernel: tpu_custom_call.1
$region0: #{tpu_custom_call.1}
  #allocation0 [shape = 'u32[]', space=smem, size = 0x4, offset = 0x4, fixed_abs, tag = 'smem constant byte address 0x4 - core index']
  #allocation1 [shape = 'u32[144,128]{1,0:T(1,128)}', space=vmem, size = 0x12000, scoped, tag = 'internal scratch']
  #allocation2 [shape = 'f32[18,18,4]{2,1,0:T(8,128)}', space=vmem, size = 0x36000, scoped, tag = 'scratch operand']
  %s0 = inlined_call_operand.vmem [shape: f32[2,16,16,4], index: 0, kind: input, shape index: {}]
  %s1 = inlined_call_operand.vmem [shape: f32[9,4,8], index: 1, kind: input, shape index: {}]
  %s2 = inlined_call_operand.vmem [shape: f32[2,16,16,8], index: 2, kind: output, shape index: {0}]
  %s3 = inlined_call_operand.hbm [shape: f32[2,2,8], index: 3, kind: output, shape index: {1}]
  %4 = xla_tuple %s2, %s3
  %s5 = sld [smem:[#allocation0]]
  $region49: #{tpu_custom_call.1} parent=0
    _
  %s7 = ssub.s32 1, %s5
  %s8 = scalar_select 0, %s7, %s5
  $region1: #{tpu_custom_call.1} parent=0
    #allocation3 [shape = 'u8[2048]{0}', space=vmem, size = 0x800, scoped, tag = 'output window, operand 1']
    #allocation4 [shape = 's32[2]{0}', space=sflag, size = 0x8, scoped, tag = 'scoped memory for tpu_custom_call.1']
    %9 = vsyncpa [#allocation4], 0
    %s10 = scalar_lea.sflag [#allocation4], 1
    %11 = vsyncpa %s10, 0
    loop: start=0, step=1, limit=4
    $region2: #{tpu_custom_call.1} parent=1 // loop_pre_header
      _
    $region3: #{tpu_custom_call.1} parent=1 // loop_header
      %s13 = sphi 0, %s17
      %p14 = scmp.ge.s32.totalorder %s13, 4
      %s23 = sphi 0, %s25
      %s26 = sphi 0, %s23
      %s27 = sphi 0, %s26
      %s43 = sphi 0, %s27
      %s47 = sphi 0, %s47
      %s49 = sphi 0, %s47
      %s50 = sphi 0, %s49
      %s64 = sphi 0, %s50
      %s70 = sphi 0, %s72
      %s73 = sphi 0, %s70
      %s74 = sphi 0, %s73
      %s90 = sphi 0, %s74
      %s96 = sphi 0, %s98
      %s99 = sphi 0, %s96
      %s100 = sphi 0, %s99
      %s116 = sphi 0, %s100
    $region4: #{tpu_custom_call.1} parent=1 // loop_header_branch
      %16 = sbr.rel (%p14) target = $region8
    $region5: #{tpu_custom_call.1} parent=1 // loop_body
      %s18 = ssub.s32 %s13, 1
      %s19 = ssub.s32 %s13, 2
      %s20 = sadd.s32 %s13, 1
      %s21 = ssub.s32 %s13, %s20
      %p22 = scmp.eq.s32.totalorder %s21, 0
      %s24 = sadd.s32 %s23, 1
      %s25 = scalar_select %p22, %s23, %s24
      %p28 = pneg %p22
      %p29 = scmp.eq.s32.totalorder %s13, 1
      %p30 = por %p28, %p29
      %p31 = scmp.ne.s32.totalorder %s23, %s26
      %p32 = scmp.eq.s32.totalorder %s13, 0
      %p33 = por %p31, %p32
      %p34 = scmp.ne.s32.totalorder %s23, %s26
      %p35 = scmp.eq.s32.totalorder %s18, 1
      %p36 = por %p34, %p35
      %p37 = scmp.ne.s32.totalorder %s26, %s27
      %p38 = scmp.eq.s32.totalorder %s18, 0
      %p39 = por %p37, %p38
      %p40 = scmp.ne.s32.totalorder %s26, %s27
      %p41 = scmp.eq.s32.totalorder %s19, 1
      %p42 = por %p40, %p41
      %p44 = scmp.ne.s32.totalorder %s27, %s43
      %p45 = scmp.eq.s32.totalorder %s19, 0
      %p46 = por %p44, %p45
      %s48 = sadd.s32 %s47, 1
      %p51 = scmp.eq.s32.totalorder %s13, 1
      %p52 = scmp.ne.s32.totalorder %s47, %s49
      %p53 = scmp.eq.s32.totalorder %s13, 0
      %p54 = por %p52, %p53
      %p55 = scmp.ne.s32.totalorder %s47, %s49
      %p56 = scmp.eq.s32.totalorder %s18, 1
      %p57 = por %p55, %p56
      %p58 = scmp.ne.s32.totalorder %s49, %s50
      %p59 = scmp.eq.s32.totalorder %s18, 0
      %p60 = por %p58, %p59
      %p61 = scmp.ne.s32.totalorder %s49, %s50
      %p62 = scmp.eq.s32.totalorder %s19, 1
      %p63 = por %p61, %p62
      %p65 = scmp.ne.s32.totalorder %s50, %s64
      %p66 = scmp.eq.s32.totalorder %s19, 0
      %p67 = por %p65, %p66
      %s68 = ssub.s32 %s13, %s20
      %p69 = scmp.eq.s32.totalorder %s68, 0
      %s71 = sadd.s32 %s70, 1
      %s72 = scalar_select %p69, %s70, %s71
      %p75 = pneg %p69
      %p76 = scmp.eq.s32.totalorder %s13, 1
      %p77 = por %p75, %p76
      %p78 = scmp.ne.s32.totalorder %s70, %s73
      %p79 = scmp.eq.s32.totalorder %s13, 0
      %p80 = por %p78, %p79
      %p81 = scmp.ne.s32.totalorder %s70, %s73
      %p82 = scmp.eq.s32.totalorder %s18, 1
      %p83 = por %p81, %p82
      %p84 = scmp.ne.s32.totalorder %s73, %s74
      %p85 = scmp.eq.s32.totalorder %s18, 0
      %p86 = por %p84, %p85
      %p87 = scmp.ne.s32.totalorder %s73, %s74
      %p88 = scmp.eq.s32.totalorder %s19, 1
      %p89 = por %p87, %p88
      %p91 = scmp.ne.s32.totalorder %s74, %s90
      %p92 = scmp.eq.s32.totalorder %s19, 0
      %p93 = por %p91, %p92
      %s94 = ssub.s32 %s13, %s20
      %p95 = scmp.eq.s32.totalorder %s94, 0
      %s97 = sadd.s32 %s96, 1
      %s98 = scalar_select %p95, %s96, %s97
      %p101 = pneg %p95
      %p102 = scmp.eq.s32.totalorder %s13, 1
      %p103 = por %p101, %p102
      %p104 = scmp.ne.s32.totalorder %s96, %s99
      %p105 = scmp.eq.s32.totalorder %s13, 0
      %p106 = por %p104, %p105
      %p107 = scmp.ne.s32.totalorder %s96, %s99
      %p108 = scmp.eq.s32.totalorder %s18, 1
      %p109 = por %p107, %p108
      %p110 = scmp.ne.s32.totalorder %s99, %s100
      %p111 = scmp.eq.s32.totalorder %s18, 0
      %p112 = por %p110, %p111
      %p113 = scmp.ne.s32.totalorder %s99, %s100
      %p114 = scmp.eq.s32.totalorder %s19, 1
      %p115 = por %p113, %p114
      %p117 = scmp.ne.s32.totalorder %s100, %s116
      %p118 = scmp.eq.s32.totalorder %s19, 0
      %p119 = por %p117, %p118
      %p120 = scmp.le.s32.totalorder 1, %s13
      %p121 = scmp.lt.s32.totalorder %s13, 3
      %p122 = pnand %p120, %p121
      %p123 = pneg %p122
      // Predicated region
      $region9: #{tpu_custom_call.1} parent=5 // pred_check
        _
      $region10: #{tpu_custom_call.1} parent=5 // pred_check_branch
        %125 = sbr.rel (%p122) target = $region12
      $region11: #{tpu_custom_call.1} parent=5 // pred_region
        %s126 = ssub.s32 %s13, 1
        // Predicated region
        $region13: #{tpu_custom_call.1} parent=11 // pred_check
          %p127 = pneg %p60
        $region14: #{tpu_custom_call.1} parent=11 // pred_check_branch
          %129 = sbr.rel (%p127) target = $region16
        $region15: #{tpu_custom_call.1} parent=11 // pred_region
          _
        $region16: #{tpu_custom_call.1} parent=11 // pred_fallthru
          _
      $region12: #{tpu_custom_call.1} parent=5 // pred_fallthru
        _
      %p130 = scmp.lt.s32.totalorder %s13, 2
      // Predicated region
      $region17: #{tpu_custom_call.1} parent=5 // pred_check
        %p131 = pneg %p130
      $region18: #{tpu_custom_call.1} parent=5 // pred_check_branch
        %133 = sbr.rel (%p131) target = $region20
      $region19: #{tpu_custom_call.1} parent=5 // pred_region
        // Predicated region
        $region21: #{tpu_custom_call.1} parent=19 // pred_check
          %p134 = pneg %p33
        $region22: #{tpu_custom_call.1} parent=19 // pred_check_branch
          %136 = sbr.rel (%p134) target = $region24
        $region23: #{tpu_custom_call.1} parent=19 // pred_region
          %p137 = scmp.lt.s32.totalorder %s13, 1
          %s138 = scalar_select %p137, %s13, 1
          %s139 = smul.addr %s138, 32
          %s140 = smul.addr %s139, 8
          %s141 = scalar_lea.vmem %s0, %s140
        $region24: #{tpu_custom_call.1} parent=19 // pred_fallthru
          _
      $region20: #{tpu_custom_call.1} parent=5 // pred_fallthru
        _
      %p142 = scmp.le.s32.totalorder 1, %s13
      %p143 = scmp.lt.s32.totalorder %s13, 3
      %p144 = pnand %p142, %p143
      %p145 = pneg %p144
      // Predicated region
      $region25: #{tpu_custom_call.1} parent=5 // pred_check
        _
      $region26: #{tpu_custom_call.1} parent=5 // pred_check_branch
        %147 = sbr.rel (%p144) target = $region28
      $region27: #{tpu_custom_call.1} parent=5 // pred_region
        %s148 = ssub.s32 %s13, 1
        %p149 = scmp.lt.s32.totalorder %s18, 1
        %s150 = scalar_select %p149, %s18, 1
        %s151 = smul.addr %s150, 32
        %s152 = smul.addr %s151, 8
        %s153 = scalar_lea.vmem %s0, %s152
        %p154 = pneg %p39
        %p155 = pneg %p36
        %p156 = pneg %p60
        %p157 = pneg %p57
        %p158 = pneg %p86
        %p159 = pneg %p83
        %p160 = scmp.lt.s32.totalorder %s18, 1
        %s161 = scalar_select %p160, %s18, 1
        %s162 = smul.addr %s161, 32
        %s163 = smul.addr %s162, 8
        %s164 = scalar_lea.vmem %s2, %s163
        %p165 = pneg %p112
        %p166 = pneg %p109
        %s167 = sand.u32 %s99, 1
        %s168 = scalar_lea.sflag [#allocation4], %s167
        %s169 = sand.u32 %s99, 1
        %s170 = smul.addr %s169, 2
        %s171 = scalar_lea.vmem [#allocation3], %s170
        %p172 = scmp.lt.s32.totalorder %s18, 1
        %s173 = scalar_select %p172, %s18, 1
        %s174 = smul.addr %s173, 32
        %s175 = smul.addr %s174, 8
        %s176 = scalar_lea.vmem %s0, %s175
        %p177 = scmp.lt.s32.totalorder %s18, 1
        %s178 = scalar_select %p177, %s18, 1
        %s179 = smul.addr %s178, 32
        %s180 = smul.addr %s179, 8
        %s181 = scalar_lea.vmem %s2, %s180
        %v182 = vld [vmem:[%s176] sm:$0xff]
        %v183 = vld [vmem:[%s176 + $0x8] sm:$0xff]
        %v184 = vld [vmem:[%s176 + $0x10] sm:$0xff]
        %v185 = vld [vmem:[%s176 + $0x18] sm:$0xff]
        %v186 = vld [vmem:[%s176 + $0x20] sm:$0xff]
        %v187 = vld [vmem:[%s176 + $0x28] sm:$0xff]
        %v188 = vld [vmem:[%s176 + $0x30] sm:$0xff]
        %v189 = vld [vmem:[%s176 + $0x38] sm:$0xff]
        %v190 = vld [vmem:[%s176 + $0x40] sm:$0xff]
        %v191 = vld [vmem:[%s176 + $0x48] sm:$0xff]
        %v192 = vld [vmem:[%s176 + $0x50] sm:$0xff]
        %v193 = vld [vmem:[%s176 + $0x58] sm:$0xff]
        %v194 = vld [vmem:[%s176 + $0x60] sm:$0xff]
        %v195 = vld [vmem:[%s176 + $0x68] sm:$0xff]
        %v196 = vld [vmem:[%s176 + $0x70] sm:$0xff]
        %v197 = vld [vmem:[%s176 + $0x78] sm:$0xff]
        %v198 = vld [vmem:[%s176 + $0x80] sm:$0xff]
        %v199 = vld [vmem:[%s176 + $0x88] sm:$0xff]
        %v200 = vld [vmem:[%s176 + $0x90] sm:$0xff]
        %v201 = vld [vmem:[%s176 + $0x98] sm:$0xff]
        %v202 = vld [vmem:[%s176 + $0xa0] sm:$0xff]
        %v203 = vld [vmem:[%s176 + $0xa8] sm:$0xff]
        %v204 = vld [vmem:[%s176 + $0xb0] sm:$0xff]
        %v205 = vld [vmem:[%s176 + $0xb8] sm:$0xff]
        %v206 = vld [vmem:[%s176 + $0xc0] sm:$0xff]
        %v207 = vld [vmem:[%s176 + $0xc8] sm:$0xff]
        %v208 = vld [vmem:[%s176 + $0xd0] sm:$0xff]
        %v209 = vld [vmem:[%s176 + $0xd8] sm:$0xff]
        %v210 = vld [vmem:[%s176 + $0xe0] sm:$0xff]
        %v211 = vld [vmem:[%s176 + $0xe8] sm:$0xff]
        %v212 = vld [vmem:[%s176 + $0xf0] sm:$0xff]
        %v213 = vld [vmem:[%s176 + $0xf8] sm:$0xff]
        %vm214 = vcmask 31744
        %215 = vst.msk [vmem:[#allocation2] sm:$0xff] %vm214, 0.0
        %216 = vst.msk [vmem:[#allocation2 + $0x8] sm:$0xff] %vm214, 0.0
        %vm217 = vcmask 25600
        %218 = vst.msk [vmem:[#allocation2 + $0x10] sm:$0x3] %vm217, 0.0
        %219 = vst.msk [vmem:[#allocation2 + $0x18] sm:$0xff] %vm214, 0.0
        %220 = vst.msk [vmem:[#allocation2 + $0x20] sm:$0xff] %vm214, 0.0
        %221 = vst.msk [vmem:[#allocation2 + $0x28] sm:$0x3] %vm217, 0.0
        %222 = vst.msk [vmem:[#allocation2 + $0x30] sm:$0xff] %vm214, 0.0
        %223 = vst.msk [vmem:[#allocation2 + $0x38] sm:$0xff] %vm214, 0.0
        %224 = vst.msk [vmem:[#allocation2 + $0x40] sm:$0x3] %vm217, 0.0
        %225 = vst.msk [vmem:[#allocation2 + $0x48] sm:$0xff] %vm214, 0.0
        %226 = vst.msk [vmem:[#allocation2 + $0x50] sm:$0xff] %vm214, 0.0
        %227 = vst.msk [vmem:[#allocation2 + $0x58] sm:$0x3] %vm217, 0.0
        %228 = vst.msk [vmem:[#allocation2 + $0x60] sm:$0xff] %vm214, 0.0
        %229 = vst.msk [vmem:[#allocation2 + $0x68] sm:$0xff] %vm214, 0.0
        %230 = vst.msk [vmem:[#allocation2 + $0x70] sm:$0x3] %vm217, 0.0
        %231 = vst.msk [vmem:[#allocation2 + $0x78] sm:$0xff] %vm214, 0.0
        %232 = vst.msk [vmem:[#allocation2 + $0x80] sm:$0xff] %vm214, 0.0
        %233 = vst.msk [vmem:[#allocation2 + $0x88] sm:$0x3] %vm217, 0.0
        %234 = vst.msk [vmem:[#allocation2 + $0x90] sm:$0xff] %vm214, 0.0
        %235 = vst.msk [vmem:[#allocation2 + $0x98] sm:$0xff] %vm214, 0.0
        %236 = vst.msk [vmem:[#allocation2 + $0xa0] sm:$0x3] %vm217, 0.0
        %237 = vst.msk [vmem:[#allocation2 + $0xa8] sm:$0xff] %vm214, 0.0
        %238 = vst.msk [vmem:[#allocation2 + $0xb0] sm:$0xff] %vm214, 0.0
        %239 = vst.msk [vmem:[#allocation2 + $0xb8] sm:$0x3] %vm217, 0.0
        %240 = vst.msk [vmem:[#allocation2 + $0xc0] sm:$0xff] %vm214, 0.0
        %241 = vst.msk [vmem:[#allocation2 + $0xc8] sm:$0xff] %vm214, 0.0
        %242 = vst.msk [vmem:[#allocation2 + $0xd0] sm:$0x3] %vm217, 0.0
        %243 = vst.msk [vmem:[#allocation2 + $0xd8] sm:$0xff] %vm214, 0.0
        %244 = vst.msk [vmem:[#allocation2 + $0xe0] sm:$0xff] %vm214, 0.0
        %245 = vst.msk [vmem:[#allocation2 + $0xe8] sm:$0x3] %vm217, 0.0
        %246 = vst.msk [vmem:[#allocation2 + $0xf0] sm:$0xff] %vm214, 0.0
        %247 = vst.msk [vmem:[#allocation2 + $0xf8] sm:$0xff] %vm214, 0.0
        %248 = vst.msk [vmem:[#allocation2 + $0x100] sm:$0x3] %vm217, 0.0
        %249 = vst.msk [vmem:[#allocation2 + $0x108] sm:$0xff] %vm214, 0.0
        %250 = vst.msk [vmem:[#allocation2 + $0x110] sm:$0xff] %vm214, 0.0
        %251 = vst.msk [vmem:[#allocation2 + $0x118] sm:$0x3] %vm217, 0.0
        %252 = vst.msk [vmem:[#allocation2 + $0x120] sm:$0xff] %vm214, 0.0
        %253 = vst.msk [vmem:[#allocation2 + $0x128] sm:$0xff] %vm214, 0.0
        %254 = vst.msk [vmem:[#allocation2 + $0x130] sm:$0x3] %vm217, 0.0
        %255 = vst.msk [vmem:[#allocation2 + $0x138] sm:$0xff] %vm214, 0.0
        %256 = vst.msk [vmem:[#allocation2 + $0x140] sm:$0xff] %vm214, 0.0
        %257 = vst.msk [vmem:[#allocation2 + $0x148] sm:$0x3] %vm217, 0.0
        %258 = vst.msk [vmem:[#allocation2 + $0x150] sm:$0xff] %vm214, 0.0
        %259 = vst.msk [vmem:[#allocation2 + $0x158] sm:$0xff] %vm214, 0.0
        %260 = vst.msk [vmem:[#allocation2 + $0x160] sm:$0x3] %vm217, 0.0
        %261 = vst.msk [vmem:[#allocation2 + $0x168] sm:$0xff] %vm214, 0.0
        %262 = vst.msk [vmem:[#allocation2 + $0x170] sm:$0xff] %vm214, 0.0
        %263 = vst.msk [vmem:[#allocation2 + $0x178] sm:$0x3] %vm217, 0.0
        %264 = vst.msk [vmem:[#allocation2 + $0x180] sm:$0xff] %vm214, 0.0
        %265 = vst.msk [vmem:[#allocation2 + $0x188] sm:$0xff] %vm214, 0.0
        %266 = vst.msk [vmem:[#allocation2 + $0x190] sm:$0x3] %vm217, 0.0
        %267 = vst.msk [vmem:[#allocation2 + $0x198] sm:$0xff] %vm214, 0.0
        %268 = vst.msk [vmem:[#allocation2 + $0x1a0] sm:$0xff] %vm214, 0.0
        %269 = vst.msk [vmem:[#allocation2 + $0x1a8] sm:$0x3] %vm217, 0.0
        %s270 = scalar_lea.vmem [#allocation2], 24
        %271 = vst.msk [vmem:[%s270 + $0x1] sm:$0xff] %vm214, %v182
        %272 = vst.msk [vmem:[%s270 + $0x9] sm:$0xff] %vm214, %v183
        %273 = vst.msk [vmem:[%s270 + $0x19] sm:$0xff] %vm214, %v184
        %274 = vst.msk [vmem:[%s270 + $0x21] sm:$0xff] %vm214, %v185
        %275 = vst.msk [vmem:[%s270 + $0x31] sm:$0xff] %vm214, %v186
        %276 = vst.msk [vmem:[%s270 + $0x39] sm:$0xff] %vm214, %v187
        %277 = vst.msk [vmem:[%s270 + $0x49] sm:$0xff] %vm214, %v188
        %278 = vst.msk [vmem:[%s270 + $0x51] sm:$0xff] %vm214, %v189
        %279 = vst.msk [vmem:[%s270 + $0x61] sm:$0xff] %vm214, %v190
        %280 = vst.msk [vmem:[%s270 + $0x69] sm:$0xff] %vm214, %v191
        %281 = vst.msk [vmem:[%s270 + $0x79] sm:$0xff] %vm214, %v192
        %282 = vst.msk [vmem:[%s270 + $0x81] sm:$0xff] %vm214, %v193
        %283 = vst.msk [vmem:[%s270 + $0x91] sm:$0xff] %vm214, %v194
        %284 = vst.msk [vmem:[%s270 + $0x99] sm:$0xff] %vm214, %v195
        %285 = vst.msk [vmem:[%s270 + $0xa9] sm:$0xff] %vm214, %v196
        %286 = vst.msk [vmem:[%s270 + $0xb1] sm:$0xff] %vm214, %v197
        %287 = vst.msk [vmem:[%s270 + $0xc1] sm:$0xff] %vm214, %v198
        %288 = vst.msk [vmem:[%s270 + $0xc9] sm:$0xff] %vm214, %v199
        %289 = vst.msk [vmem:[%s270 + $0xd9] sm:$0xff] %vm214, %v200
        %290 = vst.msk [vmem:[%s270 + $0xe1] sm:$0xff] %vm214, %v201
        %291 = vst.msk [vmem:[%s270 + $0xf1] sm:$0xff] %vm214, %v202
        %292 = vst.msk [vmem:[%s270 + $0xf9] sm:$0xff] %vm214, %v203
        %293 = vst.msk [vmem:[%s270 + $0x109] sm:$0xff] %vm214, %v204
        %294 = vst.msk [vmem:[%s270 + $0x111] sm:$0xff] %vm214, %v205
        %295 = vst.msk [vmem:[%s270 + $0x121] sm:$0xff] %vm214, %v206
        %296 = vst.msk [vmem:[%s270 + $0x129] sm:$0xff] %vm214, %v207
        %297 = vst.msk [vmem:[%s270 + $0x139] sm:$0xff] %vm214, %v208
        %298 = vst.msk [vmem:[%s270 + $0x141] sm:$0xff] %vm214, %v209
        %299 = vst.msk [vmem:[%s270 + $0x151] sm:$0xff] %vm214, %v210
        %300 = vst.msk [vmem:[%s270 + $0x159] sm:$0xff] %vm214, %v211
        %301 = vst.msk [vmem:[%s270 + $0x169] sm:$0xff] %vm214, %v212
        %302 = vst.msk [vmem:[%s270 + $0x171] sm:$0xff] %vm214, %v213
        %v303 = vld [vmem:[#allocation2] sm:$0xff]
        %v304 = vld [vmem:[#allocation2 + $0x8] sm:$0xff]
        %v305 = vld [vmem:[#allocation2 + $0x18] sm:$0xff]
        %v306 = vld [vmem:[#allocation2 + $0x20] sm:$0xff]
        %v307 = vld [vmem:[#allocation2 + $0x30] sm:$0xff]
        %v308 = vld [vmem:[#allocation2 + $0x38] sm:$0xff]
        %v309 = vld [vmem:[#allocation2 + $0x48] sm:$0xff]
        %v310 = vld [vmem:[#allocation2 + $0x50] sm:$0xff]
        %v311 = vld [vmem:[#allocation2 + $0x60] sm:$0xff]
        %v312 = vld [vmem:[#allocation2 + $0x68] sm:$0xff]
        %v313 = vld [vmem:[#allocation2 + $0x78] sm:$0xff]
        %v314 = vld [vmem:[#allocation2 + $0x80] sm:$0xff]
        %v315 = vld [vmem:[#allocation2 + $0x90] sm:$0xff]
        %v316 = vld [vmem:[#allocation2 + $0x98] sm:$0xff]
        %v317 = vld [vmem:[#allocation2 + $0xa8] sm:$0xff]
        %v318 = vld [vmem:[#allocation2 + $0xb0] sm:$0xff]
        %v319 = vld [vmem:[#allocation2 + $0xc0] sm:$0xff]
        %v320 = vld [vmem:[#allocation2 + $0xc8] sm:$0xff]
        %v321 = vld [vmem:[#allocation2 + $0xd8] sm:$0xff]
        %v322 = vld [vmem:[#allocation2 + $0xe0] sm:$0xff]
        %v323 = vld [vmem:[#allocation2 + $0xf0] sm:$0xff]
        %v324 = vld [vmem:[#allocation2 + $0xf8] sm:$0xff]
        %v325 = vld [vmem:[#allocation2 + $0x108] sm:$0xff]
        %v326 = vld [vmem:[#allocation2 + $0x110] sm:$0xff]
        %v327 = vld [vmem:[#allocation2 + $0x120] sm:$0xff]
        %v328 = vld [vmem:[#allocation2 + $0x128] sm:$0xff]
        %v329 = vld [vmem:[#allocation2 + $0x138] sm:$0xff]
        %v330 = vld [vmem:[#allocation2 + $0x140] sm:$0xff]
        %v331 = vld [vmem:[#allocation2 + $0x150] sm:$0xff]
        %v332 = vld [vmem:[#allocation2 + $0x158] sm:$0xff]
        %v333 = vld [vmem:[#allocation2 + $0x168] sm:$0xff]
        %v334 = vld [vmem:[#allocation2 + $0x170] sm:$0xff]
        %v335 = vld [vmem:[%s1] sm:$0xf]
        %v336 = vld [vmem:[#allocation2 + $0x1] sm:$0xff]
        %v337 = vld [vmem:[#allocation2 + $0x9] sm:$0xff]
        %v338 = vld [vmem:[#allocation2 + $0x19] sm:$0xff]
        %v339 = vld [vmem:[#allocation2 + $0x21] sm:$0xff]
        %v340 = vld [vmem:[#allocation2 + $0x31] sm:$0xff]
        %v341 = vld [vmem:[#allocation2 + $0x39] sm:$0xff]
        %v342 = vld [vmem:[#allocation2 + $0x49] sm:$0xff]
        %v343 = vld [vmem:[#allocation2 + $0x51] sm:$0xff]
        %v344 = vld [vmem:[#allocation2 + $0x61] sm:$0xff]
        %v345 = vld [vmem:[#allocation2 + $0x69] sm:$0xff]
        %v346 = vld [vmem:[#allocation2 + $0x79] sm:$0xff]
        %v347 = vld [vmem:[#allocation2 + $0x81] sm:$0xff]
        %v348 = vld [vmem:[#allocation2 + $0x91] sm:$0xff]
        %v349 = vld [vmem:[#allocation2 + $0x99] sm:$0xff]
        %v350 = vld [vmem:[#allocation2 + $0xa9] sm:$0xff]
        %v351 = vld [vmem:[#allocation2 + $0xb1] sm:$0xff]
        %v352 = vld [vmem:[#allocation2 + $0xc1] sm:$0xff]
        %v353 = vld [vmem:[#allocation2 + $0xc9] sm:$0xff]
        %v354 = vld [vmem:[#allocation2 + $0xd9] sm:$0xff]
        %v355 = vld [vmem:[#allocation2 + $0xe1] sm:$0xff]
        %v356 = vld [vmem:[#allocation2 + $0xf1] sm:$0xff]
        %v357 = vld [vmem:[#allocation2 + $0xf9] sm:$0xff]
        %v358 = vld [vmem:[#allocation2 + $0x109] sm:$0xff]
        %v359 = vld [vmem:[#allocation2 + $0x111] sm:$0xff]
        %v360 = vld [vmem:[#allocation2 + $0x121] sm:$0xff]
        %v361 = vld [vmem:[#allocation2 + $0x129] sm:$0xff]
        %v362 = vld [vmem:[#allocation2 + $0x139] sm:$0xff]
        %v363 = vld [vmem:[#allocation2 + $0x141] sm:$0xff]
        %v364 = vld [vmem:[#allocation2 + $0x151] sm:$0xff]
        %v365 = vld [vmem:[#allocation2 + $0x159] sm:$0xff]
        %v366 = vld [vmem:[#allocation2 + $0x169] sm:$0xff]
        %v367 = vld [vmem:[#allocation2 + $0x171] sm:$0xff]
        %s368 = scalar_lea.vmem %s1, 4
        %v369 = vld [vmem:[%s368] sm:$0xf]
        %v371 = vsel %vm214, %v336, 0
        %v374 = vsel %vm214, %v337, 0
        %v377 = vsel %vm214, %v338, 0
        %v380 = vsel %vm214, %v339, 0
        %v383 = vsel %vm214, %v340, 0
        %v386 = vsel %vm214, %v341, 0
        %v389 = vsel %vm214, %v342, 0
        %v392 = vsel %vm214, %v343, 0
        %v395 = vsel %vm214, %v344, 0
        %v398 = vsel %vm214, %v345, 0
        %v401 = vsel %vm214, %v346, 0
        %v404 = vsel %vm214, %v347, 0
        %v407 = vsel %vm214, %v348, 0
        %v410 = vsel %vm214, %v349, 0
        %v413 = vsel %vm214, %v350, 0
        %v416 = vsel %vm214, %v351, 0
        %v419 = vsel %vm214, %v352, 0
        %v422 = vsel %vm214, %v353, 0
        %v425 = vsel %vm214, %v354, 0
        %v428 = vsel %vm214, %v355, 0
        %v431 = vsel %vm214, %v356, 0
        %v434 = vsel %vm214, %v357, 0
        %v437 = vsel %vm214, %v358, 0
        %v440 = vsel %vm214, %v359, 0
        %v443 = vsel %vm214, %v360, 0
        %v446 = vsel %vm214, %v361, 0
        %v449 = vsel %vm214, %v362, 0
        %v452 = vsel %vm214, %v363, 0
        %v455 = vsel %vm214, %v364, 0
        %v458 = vsel %vm214, %v365, 0
        %v461 = vsel %vm214, %v366, 0
        %v464 = vsel %vm214, %v367, 0
        %vm466 = vcmask 1043456
        %v468 = vsel %vm466, %v369, 0
        %470 = vmatprep.subr.mxu0 0.0
        %471 = vmatpush1.msra.mxu0 %v468
        %472 = vmatprep.subr.mxu0 0.0
        %473 = vmatpush1.msra.mxu0 0.0
        %474 = vmatprep.subr.mxu0 0.0
        %475 = vmatpush1.msra.mxu0 0.0
        %476 = vmatprep.subr.mxu0 0.0
        %477 = vmatpush1.msra.mxu0 0.0
        %478 = vmatprep.subr.mxu0 0.0
        %479 = vmatpush1.msra.mxu0 0.0
        %480 = vmatprep.subr.mxu0 0.0
        %481 = vmatpush1.msra.mxu0 0.0
        %482 = vmatprep.subr.mxu0 0.0
        %483 = vmatpush1.msra.mxu0 0.0
        %484 = vmatprep.subr.mxu0 0.0
        %485 = vmatpush1.msra.mxu0 0.0
        %486 = vmatprep.subr.mxu0 0.0
        %487 = vmatpush1.msra.mxu0 0.0
        %488 = vmatprep.subr.mxu0 0.0
        %489 = vmatpush1.msra.mxu0 0.0
        %490 = vmatprep.subr.mxu0 0.0
        %491 = vmatpush1.msra.mxu0 0.0
        %492 = vmatprep.subr.mxu0 0.0
        %493 = vmatpush1.msra.mxu0 0.0
        %494 = vmatprep.subr.mxu0 0.0
        %495 = vmatpush1.msra.mxu0 0.0
        %496 = vmatprep.subr.mxu0 0.0
        %497 = vmatpush1.msra.mxu0 0.0
        %498 = vmatprep.subr.mxu0 0.0
        %499 = vmatpush1.msra.mxu0 0.0
        %500 = vmatprep.subr.mxu0 0.0
        %501 = vmatpush1.msra.mxu0 0.0
        %502 = vmatprep.subr.mxu0 0.0
        %503 = vmatpush1.msra.mxu0 0.0
        %504 = vmatprep.subr.mxu0 0.0
        %505 = vmatpush1.msra.mxu0 0.0
        %506 = vmatprep.subr.mxu0 0.0
        %507 = vmatpush1.msra.mxu0 0.0
        %508 = vmatprep.subr.mxu0 0.0
        %509 = vmatpush1.msra.mxu0 0.0
        %510 = vmatprep.subr.mxu0 0.0
        %511 = vmatpush1.msra.mxu0 0.0
        %512 = vmatprep.subr.mxu0 0.0
        %513 = vmatpush1.msra.mxu0 0.0
        %514 = vmatprep.subr.mxu0 0.0
        %515 = vmatpush1.msra.mxu0 0.0
        %516 = vmatprep.subr.mxu0 0.0
        %517 = vmatpush1.msra.mxu0 0.0
        %518 = vmatprep.subr.mxu0 0.0
        %519 = vmatpush1.msra.mxu0 0.0
        %520 = vmatprep.subr.mxu0 0.0
        %521 = vmatpush1.msra.mxu0 0.0
        %522 = vmatprep.subr.mxu0 0.0
        %523 = vmatpush1.msra.mxu0 0.0
        %524 = vmatprep.subr.mxu0 0.0
        %525 = vmatpush1.msra.mxu0 0.0
        %526 = vmatprep.subr.mxu0 0.0
        %527 = vmatpush1.msra.mxu0 0.0
        %528 = vmatprep.subr.mxu0 0.0
        %529 = vmatpush1.msra.mxu0 0.0
        %530 = vmatprep.subr.mxu0 0.0
        %531 = vmatpush1.msra.mxu0 0.0
        %532 = vmatprep.subr.mxu0 0.0
        %533 = vmatpush1.msra.mxu0 0.0
        %534 = vmatprep.mubr.f32.mxu0 0.0
        %535 = vmatmul.mubr.f32.gmra.mrb[0].mxu0 %v371
        %v536 = vpop.f32.mrb[0].mxu0
        %v537 = vadd.f32 0.0, %v536
        %v538 = vpop.f32.mrb[0].mxu0
        %539 = vmatprep.mubr.f32.mxu0 0.0
        %540 = vmatmul.mubr.f32.gmra.mrb[0].mxu0 %v374
        %v541 = vpop.f32.mrb[0].mxu0
        %v542 = vadd.f32 0.0, %v541
        %v543 = vpop.f32.mrb[0].mxu0
        %544 = vmatprep.mubr.f32.mxu0 0.0
        %545 = vmatmul.mubr.f32.gmra.mrb[0].mxu0 %v377
        %v546 = vpop.f32.mrb[0].mxu0
        %v547 = vadd.f32 0.0, %v546
        %v548 = vpop.f32.mrb[0].mxu0
        %549 = vmatprep.mubr.f32.mxu0 0.0
        %550 = vmatmul.mubr.f32.gmra.mrb[0].mxu0 %v380
        %v551 = vpop.f32.mrb[0].mxu0
        %v552 = vadd.f32 0.0, %v551
        %v553 = vpop.f32.mrb[0].mxu0
        %554 = vmatprep.mubr.f32.mxu0 0.0
        %555 = vmatmul.mubr.f32.gmra.mrb[0].mxu0 %v383
        %v556 = vpop.f32.mrb[0].mxu0
        %v557 = vadd.f32 0.0, %v556
        %v558 = vpop.f32.mrb[0].mxu0
        %559 = vmatprep.mubr.f32.mxu0 0.0
        %560 = vmatmul.mubr.f32.gmra.mrb[0].mxu0 %v386
        %v561 = vpop.f32.mrb[0].mxu0
        %v562 = vadd.f32 0.0, %v561
        %v563 = vpop.f32.mrb[0].mxu0
        %564 = vmatprep.mubr.f32.mxu0 0.0
        %565 = vmatmul.mubr.f32.gmra.mrb[0].mxu0 %v389
        %v566 = vpop.f32.mrb[0].mxu0
        %v567 = vadd.f32 0.0, %v566
        %v568 = vpop.f32.mrb[0].mxu0
        %569 = vmatprep.mubr.f32.mxu0 0.0
        %570 = vmatmul.mubr.f32.gmra.mrb[0].mxu0 %v392
        %v571 = vpop.f32.mrb[0].mxu0
        %v572 = vadd.f32 0.0, %v571
        %v573 = vpop.f32.mrb[0].mxu0
        %574 = vmatprep.mubr.f32.mxu0 0.0
        %575 = vmatmul.mubr.f32.gmra.mrb[0].mxu0 %v395
        %v576 = vpop.f32.mrb[0].mxu0
        %v577 = vadd.f32 0.0, %v576
        %v578 = vpop.f32.mrb[0].mxu0
        %579 = vmatprep.mubr.f32.mxu0 0.0
        %580 = vmatmul.mubr.f32.gmra.mrb[0].mxu0 %v398
        %v581 = vpop.f32.mrb[0].mxu0
        %v582 = vadd.f32 0.0, %v581
        %v583 = vpop.f32.mrb[0].mxu0
        %584 = vmatprep.mubr.f32.mxu0 0.0
        %585 = vmatmul.mubr.f32.gmra.mrb[0].mxu0 %v401
        %v586 = vpop.f32.mrb[0].mxu0
        %v587 = vadd.f32 0.0, %v586
        %v588 = vpop.f32.mrb[0].mxu0
        %589 = vmatprep.mubr.f32.mxu0 0.0
        %590 = vmatmul.mubr.f32.gmra.mrb[0].mxu0 %v404
        %v591 = vpop.f32.mrb[0].mxu0
        %v592 = vadd.f32 0.0, %v591
        %v593 = vpop.f32.mrb[0].mxu0
        %594 = vmatprep.mubr.f32.mxu0 0.0
        %595 = vmatmul.mubr.f32.gmra.mrb[0].mxu0 %v407
        %v596 = vpop.f32.mrb[0].mxu0
        %v597 = vadd.f32 0.0, %v596
        %v598 = vpop.f32.mrb[0].mxu0
        %599 = vmatprep.mubr.f32.mxu0 0.0
        %600 = vmatmul.mubr.f32.gmra.mrb[0].mxu0 %v410
        %v601 = vpop.f32.mrb[0].mxu0
        %v602 = vadd.f32 0.0, %v601
        %v603 = vpop.f32.mrb[0].mxu0
        %604 = vmatprep.mubr.f32.mxu0 0.0
        %605 = vmatmul.mubr.f32.gmra.mrb[0].mxu0 %v413
        %v606 = vpop.f32.mrb[0].mxu0
        %v607 = vadd.f32 0.0, %v606
        %v608 = vpop.f32.mrb[0].mxu0
        %609 = vmatprep.mubr.f32.mxu0 0.0
        %610 = vmatmul.mubr.f32.gmra.mrb[0].mxu0 %v416
        %v611 = vpop.f32.mrb[0].mxu0
        %v612 = vadd.f32 0.0, %v611
        %v613 = vpop.f32.mrb[0].mxu0
        %614 = vmatprep.mubr.f32.mxu0 0.0
        %615 = vmatmul.mubr.f32.gmra.mrb[0].mxu0 %v419
        %v616 = vpop.f32.mrb[0].mxu0
        %v617 = vadd.f32 0.0, %v616
        %v618 = vpop.f32.mrb[0].mxu0
        %619 = vmatprep.mubr.f32.mxu0 0.0
        %620 = vmatmul.mubr.f32.gmra.mrb[0].mxu0 %v422
        %v621 = vpop.f32.mrb[0].mxu0
        %v622 = vadd.f32 0.0, %v621
        %v623 = vpop.f32.mrb[0].mxu0
        %624 = vmatprep.mubr.f32.mxu0 0.0
        %625 = vmatmul.mubr.f32.gmra.mrb[0].mxu0 %v425
        %v626 = vpop.f32.mrb[0].mxu0
        %v627 = vadd.f32 0.0, %v626
        %v628 = vpop.f32.mrb[0].mxu0
        %629 = vmatprep.mubr.f32.mxu0 0.0
        %630 = vmatmul.mubr.f32.gmra.mrb[0].mxu0 %v428
        %v631 = vpop.f32.mrb[0].mxu0
        %v632 = vadd.f32 0.0, %v631
        %v633 = vpop.f32.mrb[0].mxu0
        %634 = vmatprep.mubr.f32.mxu0 0.0
        %635 = vmatmul.mubr.f32.gmra.mrb[0].mxu0 %v431
        %v636 = vpop.f32.mrb[0].mxu0
        %v637 = vadd.f32 0.0, %v636
        %v638 = vpop.f32.mrb[0].mxu0
        %639 = vmatprep.mubr.f32.mxu0 0.0
        %640 = vmatmul.mubr.f32.gmra.mrb[0].mxu0 %v434
        %v641 = vpop.f32.mrb[0].mxu0
        %v642 = vadd.f32 0.0, %v641
        %v643 = vpop.f32.mrb[0].mxu0
        %644 = vmatprep.mubr.f32.mxu0 0.0
        %645 = vmatmul.mubr.f32.gmra.mrb[0].mxu0 %v437
        %v646 = vpop.f32.mrb[0].mxu0
        %v647 = vadd.f32 0.0, %v646
        %v648 = vpop.f32.mrb[0].mxu0
        %649 = vmatprep.mubr.f32.mxu0 0.0
        %650 = vmatmul.mubr.f32.gmra.mrb[0].mxu0 %v440
        %v651 = vpop.f32.mrb[0].mxu0
        %v652 = vadd.f32 0.0, %v651
        %v653 = vpop.f32.mrb[0].mxu0
        %654 = vmatprep.mubr.f32.mxu0 0.0
        %655 = vmatmul.mubr.f32.gmra.mrb[0].mxu0 %v443
        %v656 = vpop.f32.mrb[0].mxu0
        %v657 = vadd.f32 0.0, %v656
        %v658 = vpop.f32.mrb[0].mxu0
        %659 = vmatprep.mubr.f32.mxu0 0.0
        %660 = vmatmul.mubr.f32.gmra.mrb[0].mxu0 %v446
        %v661 = vpop.f32.mrb[0].mxu0
        %v662 = vadd.f32 0.0, %v661
        %v663 = vpop.f32.mrb[0].mxu0
        %664 = vmatprep.mubr.f32.mxu0 0.0
        %665 = vmatmul.mubr.f32.gmra.mrb[0].mxu0 %v449
        %v666 = vpop.f32.mrb[0].mxu0
        %v667 = vadd.f32 0.0, %v666
        %v668 = vpop.f32.mrb[0].mxu0
        %669 = vmatprep.mubr.f32.mxu0 0.0
        %670 = vmatmul.mubr.f32.gmra.mrb[0].mxu0 %v452
        %v671 = vpop.f32.mrb[0].mxu0
        %v672 = vadd.f32 0.0, %v671
        %v673 = vpop.f32.mrb[0].mxu0
        %674 = vmatprep.mubr.f32.mxu0 0.0
        %675 = vmatmul.mubr.f32.gmra.mrb[0].mxu0 %v455
        %v676 = vpop.f32.mrb[0].mxu0
        %v677 = vadd.f32 0.0, %v676
        %v678 = vpop.f32.mrb[0].mxu0
        %679 = vmatprep.mubr.f32.mxu0 0.0
        %680 = vmatmul.mubr.f32.gmra.mrb[0].mxu0 %v458
        %v681 = vpop.f32.mrb[0].mxu0
        %v682 = vadd.f32 0.0, %v681
        %v683 = vpop.f32.mrb[0].mxu0
        %684 = vmatprep.mubr.f32.mxu0 0.0
        %685 = vmatmul.mubr.f32.gmra.mrb[0].mxu0 %v461
        %v686 = vpop.f32.mrb[0].mxu0
        %v687 = vadd.f32 0.0, %v686
        %v688 = vpop.f32.mrb[0].mxu0
        %689 = vmatprep.mubr.f32.mxu0 0.0
        %690 = vmatmul.mubr.f32.gmra.mrb[0].mxu0 %v464
        %v691 = vpop.f32.mrb[0].mxu0
        %v692 = vadd.f32 0.0, %v691
        %v693 = vpop.f32.mrb[0].mxu0
        %694 = vdwg.mxu0
        %v696 = vsel %vm214, %v303, 0
        %v699 = vsel %vm214, %v304, 0
        %v702 = vsel %vm214, %v305, 0
        %v705 = vsel %vm214, %v306, 0
        %v708 = vsel %vm214, %v307, 0
        %v711 = vsel %vm214, %v308, 0
        %v714 = vsel %vm214, %v309, 0
        %v717 = vsel %vm214, %v310, 0
        %v720 = vsel %vm214, %v311, 0
        %v723 = vsel %vm214, %v312, 0
        %v726 = vsel %vm214, %v313, 0
        %v729 = vsel %vm214, %v314, 0
        %v732 = vsel %vm214, %v315, 0
        %v735 = vsel %vm214, %v316, 0
        %v738 = vsel %vm214, %v317, 0
        %v741 = vsel %vm214, %v318, 0
        %v744 = vsel %vm214, %v319, 0
        %v747 = vsel %vm214, %v320, 0
        %v750 = vsel %vm214, %v321, 0
        %v753 = vsel %vm214, %v322, 0
        %v756 = vsel %vm214, %v323, 0
        %v759 = vsel %vm214, %v324, 0
        %v762 = vsel %vm214, %v325, 0
        %v765 = vsel %vm214, %v326, 0
        %v768 = vsel %vm214, %v327, 0
        %v771 = vsel %vm214, %v328, 0
        %v774 = vsel %vm214, %v329, 0
        %v777 = vsel %vm214, %v330, 0
        %v780 = vsel %vm214, %v331, 0
        %v783 = vsel %vm214, %v332, 0
        %v786 = vsel %vm214, %v333, 0
        %v789 = vsel %vm214, %v334, 0
        %v792 = vsel %vm466, %v335, 0
        %794 = vmatprep.subr.mxu0 0.0
        %795 = vmatpush1.msra.mxu0 %v792
        %796 = vmatprep.subr.mxu0 0.0
        %797 = vmatpush1.msra.mxu0 0.0
        %798 = vmatprep.subr.mxu0 0.0
        %799 = vmatpush1.msra.mxu0 0.0
        %800 = vmatprep.subr.mxu0 0.0
        %801 = vmatpush1.msra.mxu0 0.0
        %802 = vmatprep.subr.mxu0 0.0
        %803 = vmatpush1.msra.mxu0 0.0
        %804 = vmatprep.subr.mxu0 0.0
        %805 = vmatpush1.msra.mxu0 0.0
        %806 = vmatprep.subr.mxu0 0.0
        %807 = vmatpush1.msra.mxu0 0.0
        %808 = vmatprep.subr.mxu0 0.0
        %809 = vmatpush1.msra.mxu0 0.0
        %810 = vmatprep.subr.mxu0 0.0
        %811 = vmatpush1.msra.mxu0 0.0
        %812 = vmatprep.subr.mxu0 0.0
        %813 = vmatpush1.msra.mxu0 0.0
        %814 = vmatprep.subr.mxu0 0.0
        %815 = vmatpush1.msra.mxu0 0.0
        %816 = vmatprep.subr.mxu0 0.0
        %817 = vmatpush1.msra.mxu0 0.0
        %818 = vmatprep.subr.mxu0 0.0
        %819 = vmatpush1.msra.mxu0 0.0
        %820 = vmatprep.subr.mxu0 0.0
        %821 = vmatpush1.msra.mxu0 0.0
        %822 = vmatprep.subr.mxu0 0.0
        %823 = vmatpush1.msra.mxu0 0.0
        %824 = vmatprep.subr.mxu0 0.0
        %825 = vmatpush1.msra.mxu0 0.0
        %826 = vmatprep.subr.mxu0 0.0
        %827 = vmatpush1.msra.mxu0 0.0
        %828 = vmatprep.subr.mxu0 0.0
        %829 = vmatpush1.msra.mxu0 0.0
        %830 = vmatprep.subr.mxu0 0.0
        %831 = vmatpush1.msra.mxu0 0.0
        %832 = vmatprep.subr.mxu0 0.0
        %833 = vmatpush1.msra.mxu0 0.0
        %834 = vmatprep.subr.mxu0 0.0
        %835 = vmatpush1.msra.mxu0 0.0
        %836 = vmatprep.subr.mxu0 0.0
        %837 = vmatpush1.msra.mxu0 0.0
        %838 = vmatprep.subr.mxu0 0.0
        %839 = vmatpush1.msra.mxu0 0.0
        %840 = vmatprep.subr.mxu0 0.0
        %841 = vmatpush1.msra.mxu0 0.0
        %842 = vmatprep.subr.mxu0 0.0
        %843 = vmatpush1.msra.mxu0 0.0
        %844 = vmatprep.subr.mxu0 0.0
        %845 = vmatpush1.msra.mxu0 0.0
        %846 = vmatprep.subr.mxu0 0.0
        %847 = vmatpush1.msra.mxu0 0.0
        %848 = vmatprep.subr.mxu0 0.0
        %849 = vmatpush1.msra.mxu0 0.0
        %850 = vmatprep.subr.mxu0 0.0
        %851 = vmatpush1.msra.mxu0 0.0
        %852 = vmatprep.subr.mxu0 0.0
        %853 = vmatpush1.msra.mxu0 0.0
        %854 = vmatprep.subr.mxu0 0.0
        %855 = vmatpush1.msra.mxu0 0.0
        %856 = vmatprep.subr.mxu0 0.0
        %857 = vmatpush1.msra.mxu0 0.0
        %858 = vmatprep.mubr.f32.mxu0 0.0
        %859 = vmatmul.mubr.f32.gmra.mrb[0].mxu0 %v696
        %v860 = vpop.f32.mrb[0].mxu0
        %v861 = vadd.f32 %v537, %v860
        %v862 = vpop.f32.mrb[0].mxu0
        %863 = vmatprep.mubr.f32.mxu0 0.0
        %864 = vmatmul.mubr.f32.gmra.mrb[0].mxu0 %v699
        %v865 = vpop.f32.mrb[0].mxu0
        %v866 = vadd.f32 %v542, %v865
        %v867 = vpop.f32.mrb[0].mxu0
        %868 = vmatprep.mubr.f32.mxu0 0.0
        %869 = vmatmul.mubr.f32.gmra.mrb[0].mxu0 %v702
        %v870 = vpop.f32.mrb[0].mxu0
        %v871 = vadd.f32 %v547, %v870
        %v872 = vpop.f32.mrb[0].mxu0
        %873 = vmatprep.mubr.f32.mxu0 0.0
        %874 = vmatmul.mubr.f32.gmra.mrb[0].mxu0 %v705
        %v875 = vpop.f32.mrb[0].mxu0
        %v876 = vadd.f32 %v552, %v875
        %v877 = vpop.f32.mrb[0].mxu0
        %878 = vmatprep.mubr.f32.mxu0 0.0
        %879 = vmatmul.mubr.f32.gmra.mrb[0].mxu0 %v708
        %v880 = vpop.f32.mrb[0].mxu0
        %v881 = vadd.f32 %v557, %v880
        %v882 = vpop.f32.mrb[0].mxu0
        %883 = vmatprep.mubr.f32.mxu0 0.0
        %884 = vmatmul.mubr.f32.gmra.mrb[0].mxu0 %v711
        %v885 = vpop.f32.mrb[0].mxu0
        %v886 = vadd.f32 %v562, %v885
        %v887 = vpop.f32.mrb[0].mxu0
        %888 = vmatprep.mubr.f32.mxu0 0.0
        %889 = vmatmul.mubr.f32.gmra.mrb[0].mxu0 %v714
        %v890 = vpop.f32.mrb[0].mxu0
        %v891 = vadd.f32 %v567, %v890
        %v892 = vpop.f32.mrb[0].mxu0
        %893 = vmatprep.mubr.f32.mxu0 0.0
        %894 = vmatmul.mubr.f32.gmra.mrb[0].mxu0 %v717
        %v895 = vpop.f32.mrb[0].mxu0
        %v896 = vadd.f32 %v572, %v895
        %v897 = vpop.f32.mrb[0].mxu0
        %898 = vmatprep.mubr.f32.mxu0 0.0
        %899 = vmatmul.mubr.f32.gmra.mrb[0].mxu0 %v720
        %v900 = vpop.f32.mrb[0].mxu0
        %v901 = vadd.f32 %v577, %v900
        %v902 = vpop.f32.mrb[0].mxu0
        %903 = vmatprep.mubr.f32.mxu0 0.0
        %904 = vmatmul.mubr.f32.gmra.mrb[0].mxu0 %v723
        %v905 = vpop.f32.mrb[0].mxu0
        %v906 = vadd.f32 %v582, %v905
        %v907 = vpop.f32.mrb[0].mxu0
        %908 = vmatprep.mubr.f32.mxu0 0.0
        %909 = vmatmul.mubr.f32.gmra.mrb[0].mxu0 %v726
        %v910 = vpop.f32.mrb[0].mxu0
        %v911 = vadd.f32 %v587, %v910
        %v912 = vpop.f32.mrb[0].mxu0
        %913 = vmatprep.mubr.f32.mxu0 0.0
        %914 = vmatmul.mubr.f32.gmra.mrb[0].mxu0 %v729
        %v915 = vpop.f32.mrb[0].mxu0
        %v916 = vadd.f32 %v592, %v915
        %v917 = vpop.f32.mrb[0].mxu0
        %918 = vmatprep.mubr.f32.mxu0 0.0
        %919 = vmatmul.mubr.f32.gmra.mrb[0].mxu0 %v732
        %v920 = vpop.f32.mrb[0].mxu0
        %v921 = vadd.f32 %v597, %v920
        %v922 = vpop.f32.mrb[0].mxu0
        %923 = vmatprep.mubr.f32.mxu0 0.0
        %924 = vmatmul.mubr.f32.gmra.mrb[0].mxu0 %v735
        %v925 = vpop.f32.mrb[0].mxu0
        %v926 = vadd.f32 %v602, %v925
        %v927 = vpop.f32.mrb[0].mxu0
        %928 = vmatprep.mubr.f32.mxu0 0.0
        %929 = vmatmul.mubr.f32.gmra.mrb[0].mxu0 %v738
        %v930 = vpop.f32.mrb[0].mxu0
        %v931 = vadd.f32 %v607, %v930
        %v932 = vpop.f32.mrb[0].mxu0
        %933 = vmatprep.mubr.f32.mxu0 0.0
        %934 = vmatmul.mubr.f32.gmra.mrb[0].mxu0 %v741
        %v935 = vpop.f32.mrb[0].mxu0
        %v936 = vadd.f32 %v612, %v935
        %v937 = vpop.f32.mrb[0].mxu0
        %938 = vmatprep.mubr.f32.mxu0 0.0
        %939 = vmatmul.mubr.f32.gmra.mrb[0].mxu0 %v744
        %v940 = vpop.f32.mrb[0].mxu0
        %v941 = vadd.f32 %v617, %v940
        %v942 = vpop.f32.mrb[0].mxu0
        %943 = vmatprep.mubr.f32.mxu0 0.0
        %944 = vmatmul.mubr.f32.gmra.mrb[0].mxu0 %v747
        %v945 = vpop.f32.mrb[0].mxu0
        %v946 = vadd.f32 %v622, %v945
        %v947 = vpop.f32.mrb[0].mxu0
        %948 = vmatprep.mubr.f32.mxu0 0.0
        %949 = vmatmul.mubr.f32.gmra.mrb[0].mxu0 %v750
        %v950 = vpop.f32.mrb[0].mxu0
        %v951 = vadd.f32 %v627, %v950
        %v952 = vpop.f32.mrb[0].mxu0
        %953 = vmatprep.mubr.f32.mxu0 0.0
        %954 = vmatmul.mubr.f32.gmra.mrb[0].mxu0 %v753
        %v955 = vpop.f32.mrb[0].mxu0
        %v956 = vadd.f32 %v632, %v955
        %v957 = vpop.f32.mrb[0].mxu0
        %958 = vmatprep.mubr.f32.mxu0 0.0
        %959 = vmatmul.mubr.f32.gmra.mrb[0].mxu0 %v756
        %v960 = vpop.f32.mrb[0].mxu0
        %v961 = vadd.f32 %v637, %v960
        %v962 = vpop.f32.mrb[0].mxu0
        %963 = vmatprep.mubr.f32.mxu0 0.0
        %964 = vmatmul.mubr.f32.gmra.mrb[0].mxu0 %v759
        %v965 = vpop.f32.mrb[0].mxu0
        %v966 = vadd.f32 %v642, %v965
        %v967 = vpop.f32.mrb[0].mxu0
        %968 = vmatprep.mubr.f32.mxu0 0.0
        %969 = vmatmul.mubr.f32.gmra.mrb[0].mxu0 %v762
        %v970 = vpop.f32.mrb[0].mxu0
        %v971 = vadd.f32 %v647, %v970
        %v972 = vpop.f32.mrb[0].mxu0
        %973 = vmatprep.mubr.f32.mxu0 0.0
        %974 = vmatmul.mubr.f32.gmra.mrb[0].mxu0 %v765
        %v975 = vpop.f32.mrb[0].mxu0
        %v976 = vadd.f32 %v652, %v975
        %v977 = vpop.f32.mrb[0].mxu0
        %978 = vmatprep.mubr.f32.mxu0 0.0
        %979 = vmatmul.mubr.f32.gmra.mrb[0].mxu0 %v768
        %v980 = vpop.f32.mrb[0].mxu0
        %v981 = vadd.f32 %v657, %v980
        %v982 = vpop.f32.mrb[0].mxu0
        %983 = vmatprep.mubr.f32.mxu0 0.0
        %984 = vmatmul.mubr.f32.gmra.mrb[0].mxu0 %v771
        %v985 = vpop.f32.mrb[0].mxu0
        %v986 = vadd.f32 %v662, %v985
        %v987 = vpop.f32.mrb[0].mxu0
        %988 = vmatprep.mubr.f32.mxu0 0.0
        %989 = vmatmul.mubr.f32.gmra.mrb[0].mxu0 %v774
        %v990 = vpop.f32.mrb[0].mxu0
        %v991 = vadd.f32 %v667, %v990
        %v992 = vpop.f32.mrb[0].mxu0
        %993 = vmatprep.mubr.f32.mxu0 0.0
        %994 = vmatmul.mubr.f32.gmra.mrb[0].mxu0 %v777
        %v995 = vpop.f32.mrb[0].mxu0
        %v996 = vadd.f32 %v672, %v995
        %v997 = vpop.f32.mrb[0].mxu0
        %998 = vmatprep.mubr.f32.mxu0 0.0
        %999 = vmatmul.mubr.f32.gmra.mrb[0].mxu0 %v780
        %v1000 = vpop.f32.mrb[0].mxu0
        %v1001 = vadd.f32 %v677, %v1000
        %v1002 = vpop.f32.mrb[0].mxu0
        %1003 = vmatprep.mubr.f32.mxu0 0.0
        %1004 = vmatmul.mubr.f32.gmra.mrb[0].mxu0 %v783
        %v1005 = vpop.f32.mrb[0].mxu0
        %v1006 = vadd.f32 %v682, %v1005
        %v1007 = vpop.f32.mrb[0].mxu0
        %1008 = vmatprep.mubr.f32.mxu0 0.0
        %1009 = vmatmul.mubr.f32.gmra.mrb[0].mxu0 %v786
        %v1010 = vpop.f32.mrb[0].mxu0
        %v1011 = vadd.f32 %v687, %v1010
        %v1012 = vpop.f32.mrb[0].mxu0
        %1013 = vmatprep.mubr.f32.mxu0 0.0
        %1014 = vmatmul.mubr.f32.gmra.mrb[0].mxu0 %v789
        %v1015 = vpop.f32.mrb[0].mxu0
        %v1016 = vadd.f32 %v692, %v1015
        %v1017 = vpop.f32.mrb[0].mxu0
        %1018 = vdwg.mxu0
        %v1019 = vld [vmem:[#allocation2 + $0x2] sm:$0xff]
        %v1020 = vld [vmem:[#allocation2 + $0xa] sm:$0xff]
        %v1021 = vld [vmem:[#allocation2 + $0x1a] sm:$0xff]
        %v1022 = vld [vmem:[#allocation2 + $0x22] sm:$0xff]
        %v1023 = vld [vmem:[#allocation2 + $0x32] sm:$0xff]
        %v1024 = vld [vmem:[#allocation2 + $0x3a] sm:$0xff]
        %v1025 = vld [vmem:[#allocation2 + $0x4a] sm:$0xff]
        %v1026 = vld [vmem:[#allocation2 + $0x52] sm:$0xff]
        %v1027 = vld [vmem:[#allocation2 + $0x62] sm:$0xff]
        %v1028 = vld [vmem:[#allocation2 + $0x6a] sm:$0xff]
        %v1029 = vld [vmem:[#allocation2 + $0x7a] sm:$0xff]
        %v1030 = vld [vmem:[#allocation2 + $0x82] sm:$0xff]
        %v1031 = vld [vmem:[#allocation2 + $0x92] sm:$0xff]
        %v1032 = vld [vmem:[#allocation2 + $0x9a] sm:$0xff]
        %v1033 = vld [vmem:[#allocation2 + $0xaa] sm:$0xff]
        %v1034 = vld [vmem:[#allocation2 + $0xb2] sm:$0xff]
        %v1035 = vld [vmem:[#allocation2 + $0xc2] sm:$0xff]
        %v1036 = vld [vmem:[#allocation2 + $0xca] sm:$0xff]
        %v1037 = vld [vmem:[#allocation2 + $0xda] sm:$0xff]
        %v1038 = vld [vmem:[#allocation2 + $0xe2] sm:$0xff]
        %v1039 = vld [vmem:[#allocation2 + $0xf2] sm:$0xff]
        %v1040 = vld [vmem:[#allocation2 + $0xfa] sm:$0xff]
        %v1041 = vld [vmem:[#allocation2 + $0x10a] sm:$0xff]
        %v1042 = vld [vmem:[#allocation2 + $0x112] sm:$0xff]
        %v1043 = vld [vmem:[#allocation2 + $0x122] sm:$0xff]
        %v1044 = vld [vmem:[#allocation2 + $0x12a] sm:$0xff]
        %v1045 = vld [vmem:[#allocation2 + $0x13a] sm:$0xff]
        %v1046 = vld [vmem:[#allocation2 + $0x142] sm:$0xff]
        %v1047 = vld [vmem:[#allocation2 + $0x152] sm:$0xff]
        %v1048 = vld [vmem:[#allocation2 + $0x15a] sm:$0xff]
        %v1049 = vld [vmem:[#allocation2 + $0x16a] sm:$0xff]
        %v1050 = vld [vmem:[#allocation2 + $0x172] sm:$0xff]
        %s1051 = scalar_lea.vmem %s1, 8
        %v1052 = vld [vmem:[%s1051] sm:$0xf]
        %v1054 = vsel %vm214, %v1019, 0
        %v1057 = vsel %vm214, %v1020, 0
        %v1060 = vsel %vm214, %v1021, 0
        %v1063 = vsel %vm214, %v1022, 0
        %v1066 = vsel %vm214, %v1023, 0
        %v1069 = vsel %vm214, %v1024, 0
        %v1072 = vsel %vm214, %v1025, 0
        %v1075 = vsel %vm214, %v1026, 0
        %v1078 = vsel %vm214, %v1027, 0
        %v1081 = vsel %vm214, %v1028, 0
        %v1084 = vsel %vm214, %v1029, 0
        %v1087 = vsel %vm214, %v1030, 0
        %v1090 = vsel %vm214, %v1031, 0
        %v1093 = vsel %vm214, %v1032, 0
        %v1096 = vsel %vm214, %v1033, 0
        %v1099 = vsel %vm214, %v1034, 0
        %v1102 = vsel %vm214, %v1035, 0
        %v1105 = vsel %vm214, %v1036, 0
        %v1108 = vsel %vm214, %v1037, 0
        %v1111 = vsel %vm214, %v1038, 0
        %v1114 = vsel %vm214, %v1039, 0
        %v1117 = vsel %vm214, %v1040, 0
        %v1120 = vsel %vm214, %v1041, 0
        %v1123 = vsel %vm214, %v1042, 0
        %v1126 = vsel %vm214, %v1043, 0
        %v1129 = vsel %vm214, %v1044, 0
        %v1132 = vsel %vm214, %v1045, 0
        %v1135 = vsel %vm214, %v1046, 0
        %v1138 = vsel %vm214, %v1047, 0
        %v1141 = vsel %vm214, %v1048, 0
        %v1144 = vsel %vm214, %v1049, 0
        %v1147 = vsel %vm214, %v1050, 0
        %v1150 = vsel %vm466, %v1052, 0
        %1152 = vmatprep.subr.mxu0 0.0
        %1153 = vmatpush1.msra.mxu0 %v1150
        %1154 = vmatprep.subr.mxu0 0.0
        %1155 = vmatpush1.msra.mxu0 0.0
        %1156 = vmatprep.subr.mxu0 0.0
        %1157 = vmatpush1.msra.mxu0 0.0
        %1158 = vmatprep.subr.mxu0 0.0
        %1159 = vmatpush1.msra.mxu0 0.0
        %1160 = vmatprep.subr.mxu0 0.0
        %1161 = vmatpush1.msra.mxu0 0.0
        %1162 = vmatprep.subr.mxu0 0.0
        %1163 = vmatpush1.msra.mxu0 0.0
        %1164 = vmatprep.subr.mxu0 0.0
        %1165 = vmatpush1.msra.mxu0 0.0
        %1166 = vmatprep.subr.mxu0 0.0
        %1167 = vmatpush1.msra.mxu0 0.0
        %1168 = vmatprep.subr.mxu0 0.0
        %1169 = vmatpush1.msra.mxu0 0.0
        %1170 = vmatprep.subr.mxu0 0.0
        %1171 = vmatpush1.msra.mxu0 0.0
        %1172 = vmatprep.subr.mxu0 0.0
        %1173 = vmatpush1.msra.mxu0 0.0
        %1174 = vmatprep.subr.mxu0 0.0
        %1175 = vmatpush1.msra.mxu0 0.0
        %1176 = vmatprep.subr.mxu0 0.0
        %1177 = vmatpush1.msra.mxu0 0.0
        %1178 = vmatprep.subr.mxu0 0.0
        %1179 = vmatpush1.msra.mxu0 0.0
        %1180 = vmatprep.subr.mxu0 0.0
        %1181 = vmatpush1.msra.mxu0 0.0
        %1182 = vmatprep.subr.mxu0 0.0
        %1183 = vmatpush1.msra.mxu0 0.0
        %1184 = vmatprep.subr.mxu0 0.0
        %1185 = vmatpush1.msra.mxu0 0.0
        %1186 = vmatprep.subr.mxu0 0.0
        %1187 = vmatpush1.msra.mxu0 0.0
        %1188 = vmatprep.subr.mxu0 0.0
        %1189 = vmatpush1.msra.mxu0 0.0
        %1190 = vmatprep.subr.mxu0 0.0
        %1191 = vmatpush1.msra.mxu0 0.0
        %1192 = vmatprep.subr.mxu0 0.0
        %1193 = vmatpush1.msra.mxu0 0.0
        %1194 = vmatprep.subr.mxu0 0.0
        %1195 = vmatpush1.msra.mxu0 0.0
        %1196 = vmatprep.subr.mxu0 0.0
        %1197 = vmatpush1.msra.mxu0 0.0
        %1198 = vmatprep.subr.mxu0 0.0
        %1199 = vmatpush1.msra.mxu0 0.0
        %1200 = vmatprep.subr.mxu0 0.0
        %1201 = vmatpush1.msra.mxu0 0.0
        %1202 = vmatprep.subr.mxu0 0.0
        %1203 = vmatpush1.msra.mxu0 0.0
        %1204 = vmatprep.subr.mxu0 0.0
        %1205 = vmatpush1.msra.mxu0 0.0
        %1206 = vmatprep.subr.mxu0 0.0
        %1207 = vmatpush1.msra.mxu0 0.0
        %1208 = vmatprep.subr.mxu0 0.0
        %1209 = vmatpush1.msra.mxu0 0.0
        %1210 = vmatprep.subr.mxu0 0.0
        %1211 = vmatpush1.msra.mxu0 0.0
        %1212 = vmatprep.subr.mxu0 0.0
        %1213 = vmatpush1.msra.mxu0 0.0
        %1214 = vmatprep.subr.mxu0 0.0
        %1215 = vmatpush1.msra.mxu0 0.0
        %1216 = vmatprep.mubr.f32.mxu0 0.0
        %1217 = vmatmul.mubr.f32.gmra.mrb[0].mxu0 %v1054
        %v1218 = vpop.f32.mrb[0].mxu0
        %v1219 = vadd.f32 0.0, %v1218
        %v1220 = vpop.f32.mrb[0].mxu0
        %1221 = vmatprep.mubr.f32.mxu0 0.0
        %1222 = vmatmul.mubr.f32.gmra.mrb[0].mxu0 %v1057
        %v1223 = vpop.f32.mrb[0].mxu0
        %v1224 = vadd.f32 0.0, %v1223
        %v1225 = vpop.f32.mrb[0].mxu0
        %1226 = vmatprep.mubr.f32.mxu0 0.0
        %1227 = vmatmul.mubr.f32.gmra.mrb[0].mxu0 %v1060
        %v1228 = vpop.f32.mrb[0].mxu0
        %v1229 = vadd.f32 0.0, %v1228
        %v1230 = vpop.f32.mrb[0].mxu0
        %1231 = vmatprep.mubr.f32.mxu0 0.0
        %1232 = vmatmul.mubr.f32.gmra.mrb[0].mxu0 %v1063
        %v1233 = vpop.f32.mrb[0].mxu0
        %v1234 = vadd.f32 0.0, %v1233
        %v1235 = vpop.f32.mrb[0].mxu0
        %1236 = vmatprep.mubr.f32.mxu0 0.0
        %1237 = vmatmul.mubr.f32.gmra.mrb[0].mxu0 %v1066
        %v1238 = vpop.f32.mrb[0].mxu0
        %v1239 = vadd.f32 0.0, %v1238
        %v1240 = vpop.f32.mrb[0].mxu0
        %1241 = vmatprep.mubr.f32.mxu0 0.0
        %1242 = vmatmul.mubr.f32.gmra.mrb[0].mxu0 %v1069
        %v1243 = vpop.f32.mrb[0].mxu0
        %v1244 = vadd.f32 0.0, %v1243
        %v1245 = vpop.f32.mrb[0].mxu0
        %1246 = vmatprep.mubr.f32.mxu0 0.0
        %1247 = vmatmul.mubr.f32.gmra.mrb[0].mxu0 %v1072
        %v1248 = vpop.f32.mrb[0].mxu0
        %v1249 = vadd.f32 0.0, %v1248
        %v1250 = vpop.f32.mrb[0].mxu0
        %1251 = vmatprep.mubr.f32.mxu0 0.0
        %1252 = vmatmul.mubr.f32.gmra.mrb[0].mxu0 %v1075
        %v1253 = vpop.f32.mrb[0].mxu0
        %v1254 = vadd.f32 0.0, %v1253
        %v1255 = vpop.f32.mrb[0].mxu0
        %1256 = vmatprep.mubr.f32.mxu0 0.0
        %1257 = vmatmul.mubr.f32.gmra.mrb[0].mxu0 %v1078
        %v1258 = vpop.f32.mrb[0].mxu0
        %v1259 = vadd.f32 0.0, %v1258
        %v1260 = vpop.f32.mrb[0].mxu0
        %1261 = vmatprep.mubr.f32.mxu0 0.0
        %1262 = vmatmul.mubr.f32.gmra.mrb[0].mxu0 %v1081
        %v1263 = vpop.f32.mrb[0].mxu0
        %v1264 = vadd.f32 0.0, %v1263
        %v1265 = vpop.f32.mrb[0].mxu0
        %1266 = vmatprep.mubr.f32.mxu0 0.0
        %1267 = vmatmul.mubr.f32.gmra.mrb[0].mxu0 %v1084
        %v1268 = vpop.f32.mrb[0].mxu0
        %v1269 = vadd.f32 0.0, %v1268
        %v1270 = vpop.f32.mrb[0].mxu0
        %1271 = vmatprep.mubr.f32.mxu0 0.0
        %1272 = vmatmul.mubr.f32.gmra.mrb[0].mxu0 %v1087
        %v1273 = vpop.f32.mrb[0].mxu0
        %v1274 = vadd.f32 0.0, %v1273
        %v1275 = vpop.f32.mrb[0].mxu0
        %1276 = vmatprep.mubr.f32.mxu0 0.0
        %1277 = vmatmul.mubr.f32.gmra.mrb[0].mxu0 %v1090
        %v1278 = vpop.f32.mrb[0].mxu0
        %v1279 = vadd.f32 0.0, %v1278
        %v1280 = vpop.f32.mrb[0].mxu0
        %1281 = vmatprep.mubr.f32.mxu0 0.0
        %1282 = vmatmul.mubr.f32.gmra.mrb[0].mxu0 %v1093
        %v1283 = vpop.f32.mrb[0].mxu0
        %v1284 = vadd.f32 0.0, %v1283
        %v1285 = vpop.f32.mrb[0].mxu0
        %1286 = vmatprep.mubr.f32.mxu0 0.0
        %1287 = vmatmul.mubr.f32.gmra.mrb[0].mxu0 %v1096
        %v1288 = vpop.f32.mrb[0].mxu0
        %v1289 = vadd.f32 0.0, %v1288
        %v1290 = vpop.f32.mrb[0].mxu0
        %1291 = vmatprep.mubr.f32.mxu0 0.0
        %1292 = vmatmul.mubr.f32.gmra.mrb[0].mxu0 %v1099
        %v1293 = vpop.f32.mrb[0].mxu0
        %v1294 = vadd.f32 0.0, %v1293
        %v1295 = vpop.f32.mrb[0].mxu0
        %1296 = vmatprep.mubr.f32.mxu0 0.0
        %1297 = vmatmul.mubr.f32.gmra.mrb[0].mxu0 %v1102
        %v1298 = vpop.f32.mrb[0].mxu0
        %v1299 = vadd.f32 0.0, %v1298
        %v1300 = vpop.f32.mrb[0].mxu0
        %1301 = vmatprep.mubr.f32.mxu0 0.0
        %1302 = vmatmul.mubr.f32.gmra.mrb[0].mxu0 %v1105
        %v1303 = vpop.f32.mrb[0].mxu0
        %v1304 = vadd.f32 0.0, %v1303
        %v1305 = vpop.f32.mrb[0].mxu0
        %1306 = vmatprep.mubr.f32.mxu0 0.0
        %1307 = vmatmul.mubr.f32.gmra.mrb[0].mxu0 %v1108
        %v1308 = vpop.f32.mrb[0].mxu0
        %v1309 = vadd.f32 0.0, %v1308
        %v1310 = vpop.f32.mrb[0].mxu0
        %1311 = vmatprep.mubr.f32.mxu0 0.0
        %1312 = vmatmul.mubr.f32.gmra.mrb[0].mxu0 %v1111
        %v1313 = vpop.f32.mrb[0].mxu0
        %v1314 = vadd.f32 0.0, %v1313
        %v1315 = vpop.f32.mrb[0].mxu0
        %1316 = vmatprep.mubr.f32.mxu0 0.0
        %1317 = vmatmul.mubr.f32.gmra.mrb[0].mxu0 %v1114
        %v1318 = vpop.f32.mrb[0].mxu0
        %v1319 = vadd.f32 0.0, %v1318
        %v1320 = vpop.f32.mrb[0].mxu0
        %1321 = vmatprep.mubr.f32.mxu0 0.0
        %1322 = vmatmul.mubr.f32.gmra.mrb[0].mxu0 %v1117
        %v1323 = vpop.f32.mrb[0].mxu0
        %v1324 = vadd.f32 0.0, %v1323
        %v1325 = vpop.f32.mrb[0].mxu0
        %1326 = vmatprep.mubr.f32.mxu0 0.0
        %1327 = vmatmul.mubr.f32.gmra.mrb[0].mxu0 %v1120
        %v1328 = vpop.f32.mrb[0].mxu0
        %v1329 = vadd.f32 0.0, %v1328
        %v1330 = vpop.f32.mrb[0].mxu0
        %1331 = vmatprep.mubr.f32.mxu0 0.0
        %1332 = vmatmul.mubr.f32.gmra.mrb[0].mxu0 %v1123
        %v1333 = vpop.f32.mrb[0].mxu0
        %v1334 = vadd.f32 0.0, %v1333
        %v1335 = vpop.f32.mrb[0].mxu0
        %1336 = vmatprep.mubr.f32.mxu0 0.0
        %1337 = vmatmul.mubr.f32.gmra.mrb[0].mxu0 %v1126
        %v1338 = vpop.f32.mrb[0].mxu0
        %v1339 = vadd.f32 0.0, %v1338
        %v1340 = vpop.f32.mrb[0].mxu0
        %1341 = vmatprep.mubr.f32.mxu0 0.0
        %1342 = vmatmul.mubr.f32.gmra.mrb[0].mxu0 %v1129
        %v1343 = vpop.f32.mrb[0].mxu0
        %v1344 = vadd.f32 0.0, %v1343
        %v1345 = vpop.f32.mrb[0].mxu0
        %1346 = vmatprep.mubr.f32.mxu0 0.0
        %1347 = vmatmul.mubr.f32.gmra.mrb[0].mxu0 %v1132
        %v1348 = vpop.f32.mrb[0].mxu0
        %v1349 = vadd.f32 0.0, %v1348
        %v1350 = vpop.f32.mrb[0].mxu0
        %1351 = vmatprep.mubr.f32.mxu0 0.0
        %1352 = vmatmul.mubr.f32.gmra.mrb[0].mxu0 %v1135
        %v1353 = vpop.f32.mrb[0].mxu0
        %v1354 = vadd.f32 0.0, %v1353
        %v1355 = vpop.f32.mrb[0].mxu0
        %1356 = vmatprep.mubr.f32.mxu0 0.0
        %1357 = vmatmul.mubr.f32.gmra.mrb[0].mxu0 %v1138
        %v1358 = vpop.f32.mrb[0].mxu0
        %v1359 = vadd.f32 0.0, %v1358
        %v1360 = vpop.f32.mrb[0].mxu0
        %1361 = vmatprep.mubr.f32.mxu0 0.0
        %1362 = vmatmul.mubr.f32.gmra.mrb[0].mxu0 %v1141
        %v1363 = vpop.f32.mrb[0].mxu0
        %v1364 = vadd.f32 0.0, %v1363
        %v1365 = vpop.f32.mrb[0].mxu0
        %1366 = vmatprep.mubr.f32.mxu0 0.0
        %1367 = vmatmul.mubr.f32.gmra.mrb[0].mxu0 %v1144
        %v1368 = vpop.f32.mrb[0].mxu0
        %v1369 = vadd.f32 0.0, %v1368
        %v1370 = vpop.f32.mrb[0].mxu0
        %1371 = vmatprep.mubr.f32.mxu0 0.0
        %1372 = vmatmul.mubr.f32.gmra.mrb[0].mxu0 %v1147
        %v1373 = vpop.f32.mrb[0].mxu0
        %v1374 = vadd.f32 0.0, %v1373
        %v1375 = vpop.f32.mrb[0].mxu0
        %1376 = vdwg.mxu0
        %v1377 = vadd.f32 %v861, %v1219
        %v1378 = vadd.f32 %v866, %v1224
        %v1379 = vadd.f32 %v871, %v1229
        %v1380 = vadd.f32 %v876, %v1234
        %v1381 = vadd.f32 %v881, %v1239
        %v1382 = vadd.f32 %v886, %v1244
        %v1383 = vadd.f32 %v891, %v1249
        %v1384 = vadd.f32 %v896, %v1254
        %v1385 = vadd.f32 %v901, %v1259
        %v1386 = vadd.f32 %v906, %v1264
        %v1387 = vadd.f32 %v911, %v1269
        %v1388 = vadd.f32 %v916, %v1274
        %v1389 = vadd.f32 %v921, %v1279
        %v1390 = vadd.f32 %v926, %v1284
        %v1391 = vadd.f32 %v931, %v1289
        %v1392 = vadd.f32 %v936, %v1294
        %v1393 = vadd.f32 %v941, %v1299
        %v1394 = vadd.f32 %v946, %v1304
        %v1395 = vadd.f32 %v951, %v1309
        %v1396 = vadd.f32 %v956, %v1314
        %v1397 = vadd.f32 %v961, %v1319
        %v1398 = vadd.f32 %v966, %v1324
        %v1399 = vadd.f32 %v971, %v1329
        %v1400 = vadd.f32 %v976, %v1334
        %v1401 = vadd.f32 %v981, %v1339
        %v1402 = vadd.f32 %v986, %v1344
        %v1403 = vadd.f32 %v991, %v1349
        %v1404 = vadd.f32 %v996, %v1354
        %v1405 = vadd.f32 %v1001, %v1359
        %v1406 = vadd.f32 %v1006, %v1364
        %v1407 = vadd.f32 %v1011, %v1369
        %v1408 = vadd.f32 %v1016, %v1374
        %v1409 = vld [vmem:[%s270] sm:$0xff]
        %v1410 = vld [vmem:[%s270 + $0x8] sm:$0xff]
        %v1411 = vld [vmem:[%s270 + $0x18] sm:$0xff]
        %v1412 = vld [vmem:[%s270 + $0x20] sm:$0xff]
        %v1413 = vld [vmem:[%s270 + $0x30] sm:$0xff]
        %v1414 = vld [vmem:[%s270 + $0x38] sm:$0xff]
        %v1415 = vld [vmem:[%s270 + $0x48] sm:$0xff]
        %v1416 = vld [vmem:[%s270 + $0x50] sm:$0xff]
        %v1417 = vld [vmem:[%s270 + $0x60] sm:$0xff]
        %v1418 = vld [vmem:[%s270 + $0x68] sm:$0xff]
        %v1419 = vld [vmem:[%s270 + $0x78] sm:$0xff]
        %v1420 = vld [vmem:[%s270 + $0x80] sm:$0xff]
        %v1421 = vld [vmem:[%s270 + $0x90] sm:$0xff]
        %v1422 = vld [vmem:[%s270 + $0x98] sm:$0xff]
        %v1423 = vld [vmem:[%s270 + $0xa8] sm:$0xff]
        %v1424 = vld [vmem:[%s270 + $0xb0] sm:$0xff]
        %v1425 = vld [vmem:[%s270 + $0xc0] sm:$0xff]
        %v1426 = vld [vmem:[%s270 + $0xc8] sm:$0xff]
        %v1427 = vld [vmem:[%s270 + $0xd8] sm:$0xff]
        %v1428 = vld [vmem:[%s270 + $0xe0] sm:$0xff]
        %v1429 = vld [vmem:[%s270 + $0xf0] sm:$0xff]
        %v1430 = vld [vmem:[%s270 + $0xf8] sm:$0xff]
        %v1431 = vld [vmem:[%s270 + $0x108] sm:$0xff]
        %v1432 = vld [vmem:[%s270 + $0x110] sm:$0xff]
        %v1433 = vld [vmem:[%s270 + $0x120] sm:$0xff]
        %v1434 = vld [vmem:[%s270 + $0x128] sm:$0xff]
        %v1435 = vld [vmem:[%s270 + $0x138] sm:$0xff]
        %v1436 = vld [vmem:[%s270 + $0x140] sm:$0xff]
        %v1437 = vld [vmem:[%s270 + $0x150] sm:$0xff]
        %v1438 = vld [vmem:[%s270 + $0x158] sm:$0xff]
        %v1439 = vld [vmem:[%s270 + $0x168] sm:$0xff]
        %v1440 = vld [vmem:[%s270 + $0x170] sm:$0xff]
        %s1441 = scalar_lea.vmem %s1, 12
        %v1442 = vld [vmem:[%s1441] sm:$0xf]
        %v1444 = vsel %vm214, %v1409, 0
        %v1447 = vsel %vm214, %v1410, 0
        %v1450 = vsel %vm214, %v1411, 0
        %v1453 = vsel %vm214, %v1412, 0
        %v1456 = vsel %vm214, %v1413, 0
        %v1459 = vsel %vm214, %v1414, 0
        %v1462 = vsel %vm214, %v1415, 0
        %v1465 = vsel %vm214, %v1416, 0
        %v1468 = vsel %vm214, %v1417, 0
        %v1471 = vsel %vm214, %v1418, 0
        %v1474 = vsel %vm214, %v1419, 0
        %v1477 = vsel %vm214, %v1420, 0
        %v1480 = vsel %vm214, %v1421, 0
        %v1483 = vsel %vm214, %v1422, 0
        %v1486 = vsel %vm214, %v1423, 0
        %v1489 = vsel %vm214, %v1424, 0
        %v1492 = vsel %vm214, %v1425, 0
        %v1495 = vsel %vm214, %v1426, 0
        %v1498 = vsel %vm214, %v1427, 0
        %v1501 = vsel %vm214, %v1428, 0
        %v1504 = vsel %vm214, %v1429, 0
        %v1507 = vsel %vm214, %v1430, 0
        %v1510 = vsel %vm214, %v1431, 0
        %v1513 = vsel %vm214, %v1432, 0
        %v1516 = vsel %vm214, %v1433, 0
        %v1519 = vsel %vm214, %v1434, 0
        %v1522 = vsel %vm214, %v1435, 0
        %v1525 = vsel %vm214, %v1436, 0
        %v1528 = vsel %vm214, %v1437, 0
        %v1531 = vsel %vm214, %v1438, 0
        %v1534 = vsel %vm214, %v1439, 0
        %v1537 = vsel %vm214, %v1440, 0
        %v1540 = vsel %vm466, %v1442, 0
        %1542 = vmatprep.subr.mxu0 0.0
        %1543 = vmatpush1.msra.mxu0 %v1540
        %1544 = vmatprep.subr.mxu0 0.0
        %1545 = vmatpush1.msra.mxu0 0.0
        %1546 = vmatprep.subr.mxu0 0.0
        %1547 = vmatpush1.msra.mxu0 0.0
        %1548 = vmatprep.subr.mxu0 0.0
        %1549 = vmatpush1.msra.mxu0 0.0
        %1550 = vmatprep.subr.mxu0 0.0
        %1551 = vmatpush1.msra.mxu0 0.0
        %1552 = vmatprep.subr.mxu0 0.0
        %1553 = vmatpush1.msra.mxu0 0.0
        %1554 = vmatprep.subr.mxu0 0.0
        %1555 = vmatpush1.msra.mxu0 0.0
        %1556 = vmatprep.subr.mxu0 0.0
        %1557 = vmatpush1.msra.mxu0 0.0
        %1558 = vmatprep.subr.mxu0 0.0
        %1559 = vmatpush1.msra.mxu0 0.0
        %1560 = vmatprep.subr.mxu0 0.0
        %1561 = vmatpush1.msra.mxu0 0.0
        %1562 = vmatprep.subr.mxu0 0.0
        %1563 = vmatpush1.msra.mxu0 0.0
        %1564 = vmatprep.subr.mxu0 0.0
        %1565 = vmatpush1.msra.mxu0 0.0
        %1566 = vmatprep.subr.mxu0 0.0
        %1567 = vmatpush1.msra.mxu0 0.0
        %1568 = vmatprep.subr.mxu0 0.0
        %1569 = vmatpush1.msra.mxu0 0.0
        %1570 = vmatprep.subr.mxu0 0.0
        %1571 = vmatpush1.msra.mxu0 0.0
        %1572 = vmatprep.subr.mxu0 0.0
        %1573 = vmatpush1.msra.mxu0 0.0
        %1574 = vmatprep.subr.mxu0 0.0
        %1575 = vmatpush1.msra.mxu0 0.0
        %1576 = vmatprep.subr.mxu0 0.0
        %1577 = vmatpush1.msra.mxu0 0.0
        %1578 = vmatprep.subr.mxu0 0.0
        %1579 = vmatpush1.msra.mxu0 0.0
        %1580 = vmatprep.subr.mxu0 0.0
        %1581 = vmatpush1.msra.mxu0 0.0
        %1582 = vmatprep.subr.mxu0 0.0
        %1583 = vmatpush1.msra.mxu0 0.0
        %1584 = vmatprep.subr.mxu0 0.0
        %1585 = vmatpush1.msra.mxu0 0.0
        %1586 = vmatprep.subr.mxu0 0.0
        %1587 = vmatpush1.msra.mxu0 0.0
        %1588 = vmatprep.subr.mxu0 0.0
        %1589 = vmatpush1.msra.mxu0 0.0
        %1590 = vmatprep.subr.mxu0 0.0
        %1591 = vmatpush1.msra.mxu0 0.0
        %1592 = vmatprep.subr.mxu0 0.0
        %1593 = vmatpush1.msra.mxu0 0.0
        %1594 = vmatprep.subr.mxu0 0.0
        %1595 = vmatpush1.msra.mxu0 0.0
        %1596 = vmatprep.subr.mxu0 0.0
        %1597 = vmatpush1.msra.mxu0 0.0
        %1598 = vmatprep.subr.mxu0 0.0
        %1599 = vmatpush1.msra.mxu0 0.0
        %1600 = vmatprep.subr.mxu0 0.0
        %1601 = vmatpush1.msra.mxu0 0.0
        %1602 = vmatprep.subr.mxu0 0.0
        %1603 = vmatpush1.msra.mxu0 0.0
        %1604 = vmatprep.subr.mxu0 0.0
        %1605 = vmatpush1.msra.mxu0 0.0
        %1606 = vmatprep.mubr.f32.mxu0 0.0
        %1607 = vmatmul.mubr.f32.gmra.mrb[0].mxu0 %v1444
        %v1608 = vpop.f32.mrb[0].mxu0
        %v1609 = vadd.f32 0.0, %v1608
        %v1610 = vpop.f32.mrb[0].mxu0
        %1611 = vmatprep.mubr.f32.mxu0 0.0
        %1612 = vmatmul.mubr.f32.gmra.mrb[0].mxu0 %v1447
        %v1613 = vpop.f32.mrb[0].mxu0
        %v1614 = vadd.f32 0.0, %v1613
        %v1615 = vpop.f32.mrb[0].mxu0
        %1616 = vmatprep.mubr.f32.mxu0 0.0
        %1617 = vmatmul.mubr.f32.gmra.mrb[0].mxu0 %v1450
        %v1618 = vpop.f32.mrb[0].mxu0
        %v1619 = vadd.f32 0.0, %v1618
        %v1620 = vpop.f32.mrb[0].mxu0
        %1621 = vmatprep.mubr.f32.mxu0 0.0
        %1622 = vmatmul.mubr.f32.gmra.mrb[0].mxu0 %v1453
        %v1623 = vpop.f32.mrb[0].mxu0
        %v1624 = vadd.f32 0.0, %v1623
        %v1625 = vpop.f32.mrb[0].mxu0
        %1626 = vmatprep.mubr.f32.mxu0 0.0
        %1627 = vmatmul.mubr.f32.gmra.mrb[0].mxu0 %v1456
        %v1628 = vpop.f32.mrb[0].mxu0
        %v1629 = vadd.f32 0.0, %v1628
        %v1630 = vpop.f32.mrb[0].mxu0
        %1631 = vmatprep.mubr.f32.mxu0 0.0
        %1632 = vmatmul.mubr.f32.gmra.mrb[0].mxu0 %v1459
        %v1633 = vpop.f32.mrb[0].mxu0
        %v1634 = vadd.f32 0.0, %v1633
        %v1635 = vpop.f32.mrb[0].mxu0
        %1636 = vmatprep.mubr.f32.mxu0 0.0
        %1637 = vmatmul.mubr.f32.gmra.mrb[0].mxu0 %v1462
        %v1638 = vpop.f32.mrb[0].mxu0
        %v1639 = vadd.f32 0.0, %v1638
        %v1640 = vpop.f32.mrb[0].mxu0
        %1641 = vmatprep.mubr.f32.mxu0 0.0
        %1642 = vmatmul.mubr.f32.gmra.mrb[0].mxu0 %v1465
        %v1643 = vpop.f32.mrb[0].mxu0
        %v1644 = vadd.f32 0.0, %v1643
        %v1645 = vpop.f32.mrb[0].mxu0
        %1646 = vmatprep.mubr.f32.mxu0 0.0
        %1647 = vmatmul.mubr.f32.gmra.mrb[0].mxu0 %v1468
        %v1648 = vpop.f32.mrb[0].mxu0
        %v1649 = vadd.f32 0.0, %v1648
        %v1650 = vpop.f32.mrb[0].mxu0
        %1651 = vmatprep.mubr.f32.mxu0 0.0
        %1652 = vmatmul.mubr.f32.gmra.mrb[0].mxu0 %v1471
        %v1653 = vpop.f32.mrb[0].mxu0
        %v1654 = vadd.f32 0.0, %v1653
        %v1655 = vpop.f32.mrb[0].mxu0
        %1656 = vmatprep.mubr.f32.mxu0 0.0
        %1657 = vmatmul.mubr.f32.gmra.mrb[0].mxu0 %v1474
        %v1658 = vpop.f32.mrb[0].mxu0
        %v1659 = vadd.f32 0.0, %v1658
        %v1660 = vpop.f32.mrb[0].mxu0
        %1661 = vmatprep.mubr.f32.mxu0 0.0
        %1662 = vmatmul.mubr.f32.gmra.mrb[0].mxu0 %v1477
        %v1663 = vpop.f32.mrb[0].mxu0
        %v1664 = vadd.f32 0.0, %v1663
        %v1665 = vpop.f32.mrb[0].mxu0
        %1666 = vmatprep.mubr.f32.mxu0 0.0
        %1667 = vmatmul.mubr.f32.gmra.mrb[0].mxu0 %v1480
        %v1668 = vpop.f32.mrb[0].mxu0
        %v1669 = vadd.f32 0.0, %v1668
        %v1670 = vpop.f32.mrb[0].mxu0
        %1671 = vmatprep.mubr.f32.mxu0 0.0
        %1672 = vmatmul.mubr.f32.gmra.mrb[0].mxu0 %v1483
        %v1673 = vpop.f32.mrb[0].mxu0
        %v1674 = vadd.f32 0.0, %v1673
        %v1675 = vpop.f32.mrb[0].mxu0
        %1676 = vmatprep.mubr.f32.mxu0 0.0
        %1677 = vmatmul.mubr.f32.gmra.mrb[0].mxu0 %v1486
        %v1678 = vpop.f32.mrb[0].mxu0
        %v1679 = vadd.f32 0.0, %v1678
        %v1680 = vpop.f32.mrb[0].mxu0
        %1681 = vmatprep.mubr.f32.mxu0 0.0
        %1682 = vmatmul.mubr.f32.gmra.mrb[0].mxu0 %v1489
        %v1683 = vpop.f32.mrb[0].mxu0
        %v1684 = vadd.f32 0.0, %v1683
        %v1685 = vpop.f32.mrb[0].mxu0
        %1686 = vmatprep.mubr.f32.mxu0 0.0
        %1687 = vmatmul.mubr.f32.gmra.mrb[0].mxu0 %v1492
        %v1688 = vpop.f32.mrb[0].mxu0
        %v1689 = vadd.f32 0.0, %v1688
        %v1690 = vpop.f32.mrb[0].mxu0
        %1691 = vmatprep.mubr.f32.mxu0 0.0
        %1692 = vmatmul.mubr.f32.gmra.mrb[0].mxu0 %v1495
        %v1693 = vpop.f32.mrb[0].mxu0
        %v1694 = vadd.f32 0.0, %v1693
        %v1695 = vpop.f32.mrb[0].mxu0
        %1696 = vmatprep.mubr.f32.mxu0 0.0
        %1697 = vmatmul.mubr.f32.gmra.mrb[0].mxu0 %v1498
        %v1698 = vpop.f32.mrb[0].mxu0
        %v1699 = vadd.f32 0.0, %v1698
        %v1700 = vpop.f32.mrb[0].mxu0
        %1701 = vmatprep.mubr.f32.mxu0 0.0
        %1702 = vmatmul.mubr.f32.gmra.mrb[0].mxu0 %v1501
        %v1703 = vpop.f32.mrb[0].mxu0
        %v1704 = vadd.f32 0.0, %v1703
        %v1705 = vpop.f32.mrb[0].mxu0
        %1706 = vmatprep.mubr.f32.mxu0 0.0
        %1707 = vmatmul.mubr.f32.gmra.mrb[0].mxu0 %v1504
        %v1708 = vpop.f32.mrb[0].mxu0
        %v1709 = vadd.f32 0.0, %v1708
        %v1710 = vpop.f32.mrb[0].mxu0
        %1711 = vmatprep.mubr.f32.mxu0 0.0
        %1712 = vmatmul.mubr.f32.gmra.mrb[0].mxu0 %v1507
        %v1713 = vpop.f32.mrb[0].mxu0
        %v1714 = vadd.f32 0.0, %v1713
        %v1715 = vpop.f32.mrb[0].mxu0
        %1716 = vmatprep.mubr.f32.mxu0 0.0
        %1717 = vmatmul.mubr.f32.gmra.mrb[0].mxu0 %v1510
        %v1718 = vpop.f32.mrb[0].mxu0
        %v1719 = vadd.f32 0.0, %v1718
        %v1720 = vpop.f32.mrb[0].mxu0
        %1721 = vmatprep.mubr.f32.mxu0 0.0
        %1722 = vmatmul.mubr.f32.gmra.mrb[0].mxu0 %v1513
        %v1723 = vpop.f32.mrb[0].mxu0
        %v1724 = vadd.f32 0.0, %v1723
        %v1725 = vpop.f32.mrb[0].mxu0
        %1726 = vmatprep.mubr.f32.mxu0 0.0
        %1727 = vmatmul.mubr.f32.gmra.mrb[0].mxu0 %v1516
        %v1728 = vpop.f32.mrb[0].mxu0
        %v1729 = vadd.f32 0.0, %v1728
        %v1730 = vpop.f32.mrb[0].mxu0
        %1731 = vmatprep.mubr.f32.mxu0 0.0
        %1732 = vmatmul.mubr.f32.gmra.mrb[0].mxu0 %v1519
        %v1733 = vpop.f32.mrb[0].mxu0
        %v1734 = vadd.f32 0.0, %v1733
        %v1735 = vpop.f32.mrb[0].mxu0
        %1736 = vmatprep.mubr.f32.mxu0 0.0
        %1737 = vmatmul.mubr.f32.gmra.mrb[0].mxu0 %v1522
        %v1738 = vpop.f32.mrb[0].mxu0
        %v1739 = vadd.f32 0.0, %v1738
        %v1740 = vpop.f32.mrb[0].mxu0
        %1741 = vmatprep.mubr.f32.mxu0 0.0
        %1742 = vmatmul.mubr.f32.gmra.mrb[0].mxu0 %v1525
        %v1743 = vpop.f32.mrb[0].mxu0
        %v1744 = vadd.f32 0.0, %v1743
        %v1745 = vpop.f32.mrb[0].mxu0
        %1746 = vmatprep.mubr.f32.mxu0 0.0
        %1747 = vmatmul.mubr.f32.gmra.mrb[0].mxu0 %v1528
        %v1748 = vpop.f32.mrb[0].mxu0
        %v1749 = vadd.f32 0.0, %v1748
        %v1750 = vpop.f32.mrb[0].mxu0
        %1751 = vmatprep.mubr.f32.mxu0 0.0
        %1752 = vmatmul.mubr.f32.gmra.mrb[0].mxu0 %v1531
        %v1753 = vpop.f32.mrb[0].mxu0
        %v1754 = vadd.f32 0.0, %v1753
        %v1755 = vpop.f32.mrb[0].mxu0
        %1756 = vmatprep.mubr.f32.mxu0 0.0
        %1757 = vmatmul.mubr.f32.gmra.mrb[0].mxu0 %v1534
        %v1758 = vpop.f32.mrb[0].mxu0
        %v1759 = vadd.f32 0.0, %v1758
        %v1760 = vpop.f32.mrb[0].mxu0
        %1761 = vmatprep.mubr.f32.mxu0 0.0
        %1762 = vmatmul.mubr.f32.gmra.mrb[0].mxu0 %v1537
        %v1763 = vpop.f32.mrb[0].mxu0
        %v1764 = vadd.f32 0.0, %v1763
        %v1765 = vpop.f32.mrb[0].mxu0
        %1766 = vdwg.mxu0
        %v1767 = vadd.f32 %v1377, %v1609
        %v1768 = vadd.f32 %v1378, %v1614
        %v1769 = vadd.f32 %v1379, %v1619
        %v1770 = vadd.f32 %v1380, %v1624
        %v1771 = vadd.f32 %v1381, %v1629
        %v1772 = vadd.f32 %v1382, %v1634
        %v1773 = vadd.f32 %v1383, %v1639
        %v1774 = vadd.f32 %v1384, %v1644
        %v1775 = vadd.f32 %v1385, %v1649
        %v1776 = vadd.f32 %v1386, %v1654
        %v1777 = vadd.f32 %v1387, %v1659
        %v1778 = vadd.f32 %v1388, %v1664
        %v1779 = vadd.f32 %v1389, %v1669
        %v1780 = vadd.f32 %v1390, %v1674
        %v1781 = vadd.f32 %v1391, %v1679
        %v1782 = vadd.f32 %v1392, %v1684
        %v1783 = vadd.f32 %v1393, %v1689
        %v1784 = vadd.f32 %v1394, %v1694
        %v1785 = vadd.f32 %v1395, %v1699
        %v1786 = vadd.f32 %v1396, %v1704
        %v1787 = vadd.f32 %v1397, %v1709
        %v1788 = vadd.f32 %v1398, %v1714
        %v1789 = vadd.f32 %v1399, %v1719
        %v1790 = vadd.f32 %v1400, %v1724
        %v1791 = vadd.f32 %v1401, %v1729
        %v1792 = vadd.f32 %v1402, %v1734
        %v1793 = vadd.f32 %v1403, %v1739
        %v1794 = vadd.f32 %v1404, %v1744
        %v1795 = vadd.f32 %v1405, %v1749
        %v1796 = vadd.f32 %v1406, %v1754
        %v1797 = vadd.f32 %v1407, %v1759
        %v1798 = vadd.f32 %v1408, %v1764
        %v1799 = vld [vmem:[%s270 + $0x1] sm:$0xff]
        %v1800 = vld [vmem:[%s270 + $0x9] sm:$0xff]
        %v1801 = vld [vmem:[%s270 + $0x19] sm:$0xff]
        %v1802 = vld [vmem:[%s270 + $0x21] sm:$0xff]
        %v1803 = vld [vmem:[%s270 + $0x31] sm:$0xff]
        %v1804 = vld [vmem:[%s270 + $0x39] sm:$0xff]
        %v1805 = vld [vmem:[%s270 + $0x49] sm:$0xff]
        %v1806 = vld [vmem:[%s270 + $0x51] sm:$0xff]
        %v1807 = vld [vmem:[%s270 + $0x61] sm:$0xff]
        %v1808 = vld [vmem:[%s270 + $0x69] sm:$0xff]
        %v1809 = vld [vmem:[%s270 + $0x79] sm:$0xff]
        %v1810 = vld [vmem:[%s270 + $0x81] sm:$0xff]
        %v1811 = vld [vmem:[%s270 + $0x91] sm:$0xff]
        %v1812 = vld [vmem:[%s270 + $0x99] sm:$0xff]
        %v1813 = vld [vmem:[%s270 + $0xa9] sm:$0xff]
        %v1814 = vld [vmem:[%s270 + $0xb1] sm:$0xff]
        %v1815 = vld [vmem:[%s270 + $0xc1] sm:$0xff]
        %v1816 = vld [vmem:[%s270 + $0xc9] sm:$0xff]
        %v1817 = vld [vmem:[%s270 + $0xd9] sm:$0xff]
        %v1818 = vld [vmem:[%s270 + $0xe1] sm:$0xff]
        %v1819 = vld [vmem:[%s270 + $0xf1] sm:$0xff]
        %v1820 = vld [vmem:[%s270 + $0xf9] sm:$0xff]
        %v1821 = vld [vmem:[%s270 + $0x109] sm:$0xff]
        %v1822 = vld [vmem:[%s270 + $0x111] sm:$0xff]
        %v1823 = vld [vmem:[%s270 + $0x121] sm:$0xff]
        %v1824 = vld [vmem:[%s270 + $0x129] sm:$0xff]
        %v1825 = vld [vmem:[%s270 + $0x139] sm:$0xff]
        %v1826 = vld [vmem:[%s270 + $0x141] sm:$0xff]
        %v1827 = vld [vmem:[%s270 + $0x151] sm:$0xff]
        %v1828 = vld [vmem:[%s270 + $0x159] sm:$0xff]
        %v1829 = vld [vmem:[%s270 + $0x169] sm:$0xff]
        %v1830 = vld [vmem:[%s270 + $0x171] sm:$0xff]
        %s1831 = scalar_lea.vmem %s1, 16
        %v1832 = vld [vmem:[%s1831] sm:$0xf]
        %v1834 = vsel %vm214, %v1799, 0
        %v1837 = vsel %vm214, %v1800, 0
        %v1840 = vsel %vm214, %v1801, 0
        %v1843 = vsel %vm214, %v1802, 0
        %v1846 = vsel %vm214, %v1803, 0
        %v1849 = vsel %vm214, %v1804, 0
        %v1852 = vsel %vm214, %v1805, 0
        %v1855 = vsel %vm214, %v1806, 0
        %v1858 = vsel %vm214, %v1807, 0
        %v1861 = vsel %vm214, %v1808, 0
        %v1864 = vsel %vm214, %v1809, 0
        %v1867 = vsel %vm214, %v1810, 0
        %v1870 = vsel %vm214, %v1811, 0
        %v1873 = vsel %vm214, %v1812, 0
        %v1876 = vsel %vm214, %v1813, 0
        %v1879 = vsel %vm214, %v1814, 0
        %v1882 = vsel %vm214, %v1815, 0
        %v1885 = vsel %vm214, %v1816, 0
        %v1888 = vsel %vm214, %v1817, 0
        %v1891 = vsel %vm214, %v1818, 0
        %v1894 = vsel %vm214, %v1819, 0
        %v1897 = vsel %vm214, %v1820, 0
        %v1900 = vsel %vm214, %v1821, 0
        %v1903 = vsel %vm214, %v1822, 0
        %v1906 = vsel %vm214, %v1823, 0
        %v1909 = vsel %vm214, %v1824, 0
        %v1912 = vsel %vm214, %v1825, 0
        %v1915 = vsel %vm214, %v1826, 0
        %v1918 = vsel %vm214, %v1827, 0
        %v1921 = vsel %vm214, %v1828, 0
        %v1924 = vsel %vm214, %v1829, 0
        %v1927 = vsel %vm214, %v1830, 0
        %v1930 = vsel %vm466, %v1832, 0
        %1932 = vmatprep.subr.mxu0 0.0
        %1933 = vmatpush1.msra.mxu0 %v1930
        %1934 = vmatprep.subr.mxu0 0.0
        %1935 = vmatpush1.msra.mxu0 0.0
        %1936 = vmatprep.subr.mxu0 0.0
        %1937 = vmatpush1.msra.mxu0 0.0
        %1938 = vmatprep.subr.mxu0 0.0
        %1939 = vmatpush1.msra.mxu0 0.0
        %1940 = vmatprep.subr.mxu0 0.0
        %1941 = vmatpush1.msra.mxu0 0.0
        %1942 = vmatprep.subr.mxu0 0.0
        %1943 = vmatpush1.msra.mxu0 0.0
        %1944 = vmatprep.subr.mxu0 0.0
        %1945 = vmatpush1.msra.mxu0 0.0
        %1946 = vmatprep.subr.mxu0 0.0
        %1947 = vmatpush1.msra.mxu0 0.0
        %1948 = vmatprep.subr.mxu0 0.0
        %1949 = vmatpush1.msra.mxu0 0.0
        %1950 = vmatprep.subr.mxu0 0.0
        %1951 = vmatpush1.msra.mxu0 0.0
        %1952 = vmatprep.subr.mxu0 0.0
        %1953 = vmatpush1.msra.mxu0 0.0
        %1954 = vmatprep.subr.mxu0 0.0
        %1955 = vmatpush1.msra.mxu0 0.0
        %1956 = vmatprep.subr.mxu0 0.0
        %1957 = vmatpush1.msra.mxu0 0.0
        %1958 = vmatprep.subr.mxu0 0.0
        %1959 = vmatpush1.msra.mxu0 0.0
        %1960 = vmatprep.subr.mxu0 0.0
        %1961 = vmatpush1.msra.mxu0 0.0
        %1962 = vmatprep.subr.mxu0 0.0
        %1963 = vmatpush1.msra.mxu0 0.0
        %1964 = vmatprep.subr.mxu0 0.0
        %1965 = vmatpush1.msra.mxu0 0.0
        %1966 = vmatprep.subr.mxu0 0.0
        %1967 = vmatpush1.msra.mxu0 0.0
        %1968 = vmatprep.subr.mxu0 0.0
        %1969 = vmatpush1.msra.mxu0 0.0
        %1970 = vmatprep.subr.mxu0 0.0
        %1971 = vmatpush1.msra.mxu0 0.0
        %1972 = vmatprep.subr.mxu0 0.0
        %1973 = vmatpush1.msra.mxu0 0.0
        %1974 = vmatprep.subr.mxu0 0.0
        %1975 = vmatpush1.msra.mxu0 0.0
        %1976 = vmatprep.subr.mxu0 0.0
        %1977 = vmatpush1.msra.mxu0 0.0
        %1978 = vmatprep.subr.mxu0 0.0
        %1979 = vmatpush1.msra.mxu0 0.0
        %1980 = vmatprep.subr.mxu0 0.0
        %1981 = vmatpush1.msra.mxu0 0.0
        %1982 = vmatprep.subr.mxu0 0.0
        %1983 = vmatpush1.msra.mxu0 0.0
        %1984 = vmatprep.subr.mxu0 0.0
        %1985 = vmatpush1.msra.mxu0 0.0
        %1986 = vmatprep.subr.mxu0 0.0
        %1987 = vmatpush1.msra.mxu0 0.0
        %1988 = vmatprep.subr.mxu0 0.0
        %1989 = vmatpush1.msra.mxu0 0.0
        %1990 = vmatprep.subr.mxu0 0.0
        %1991 = vmatpush1.msra.mxu0 0.0
        %1992 = vmatprep.subr.mxu0 0.0
        %1993 = vmatpush1.msra.mxu0 0.0
        %1994 = vmatprep.subr.mxu0 0.0
        %1995 = vmatpush1.msra.mxu0 0.0
        %1996 = vmatprep.mubr.f32.mxu0 0.0
        %1997 = vmatmul.mubr.f32.gmra.mrb[0].mxu0 %v1834
        %v1998 = vpop.f32.mrb[0].mxu0
        %v1999 = vadd.f32 0.0, %v1998
        %v2000 = vpop.f32.mrb[0].mxu0
        %2001 = vmatprep.mubr.f32.mxu0 0.0
        %2002 = vmatmul.mubr.f32.gmra.mrb[0].mxu0 %v1837
        %v2003 = vpop.f32.mrb[0].mxu0
        %v2004 = vadd.f32 0.0, %v2003
        %v2005 = vpop.f32.mrb[0].mxu0
        %2006 = vmatprep.mubr.f32.mxu0 0.0
        %2007 = vmatmul.mubr.f32.gmra.mrb[0].mxu0 %v1840
        %v2008 = vpop.f32.mrb[0].mxu0
        %v2009 = vadd.f32 0.0, %v2008
        %v2010 = vpop.f32.mrb[0].mxu0
        %2011 = vmatprep.mubr.f32.mxu0 0.0
        %2012 = vmatmul.mubr.f32.gmra.mrb[0].mxu0 %v1843
        %v2013 = vpop.f32.mrb[0].mxu0
        %v2014 = vadd.f32 0.0, %v2013
        %v2015 = vpop.f32.mrb[0].mxu0
        %2016 = vmatprep.mubr.f32.mxu0 0.0
        %2017 = vmatmul.mubr.f32.gmra.mrb[0].mxu0 %v1846
        %v2018 = vpop.f32.mrb[0].mxu0
        %v2019 = vadd.f32 0.0, %v2018
        %v2020 = vpop.f32.mrb[0].mxu0
        %2021 = vmatprep.mubr.f32.mxu0 0.0
        %2022 = vmatmul.mubr.f32.gmra.mrb[0].mxu0 %v1849
        %v2023 = vpop.f32.mrb[0].mxu0
        %v2024 = vadd.f32 0.0, %v2023
        %v2025 = vpop.f32.mrb[0].mxu0
        %2026 = vmatprep.mubr.f32.mxu0 0.0
        %2027 = vmatmul.mubr.f32.gmra.mrb[0].mxu0 %v1852
        %v2028 = vpop.f32.mrb[0].mxu0
        %v2029 = vadd.f32 0.0, %v2028
        %v2030 = vpop.f32.mrb[0].mxu0
        %2031 = vmatprep.mubr.f32.mxu0 0.0
        %2032 = vmatmul.mubr.f32.gmra.mrb[0].mxu0 %v1855
        %v2033 = vpop.f32.mrb[0].mxu0
        %v2034 = vadd.f32 0.0, %v2033
        %v2035 = vpop.f32.mrb[0].mxu0
        %2036 = vmatprep.mubr.f32.mxu0 0.0
        %2037 = vmatmul.mubr.f32.gmra.mrb[0].mxu0 %v1858
        %v2038 = vpop.f32.mrb[0].mxu0
        %v2039 = vadd.f32 0.0, %v2038
        %v2040 = vpop.f32.mrb[0].mxu0
        %2041 = vmatprep.mubr.f32.mxu0 0.0
        %2042 = vmatmul.mubr.f32.gmra.mrb[0].mxu0 %v1861
        %v2043 = vpop.f32.mrb[0].mxu0
        %v2044 = vadd.f32 0.0, %v2043
        %v2045 = vpop.f32.mrb[0].mxu0
        %2046 = vmatprep.mubr.f32.mxu0 0.0
        %2047 = vmatmul.mubr.f32.gmra.mrb[0].mxu0 %v1864
        %v2048 = vpop.f32.mrb[0].mxu0
        %v2049 = vadd.f32 0.0, %v2048
        %v2050 = vpop.f32.mrb[0].mxu0
        %2051 = vmatprep.mubr.f32.mxu0 0.0
        %2052 = vmatmul.mubr.f32.gmra.mrb[0].mxu0 %v1867
        %v2053 = vpop.f32.mrb[0].mxu0
        %v2054 = vadd.f32 0.0, %v2053
        %v2055 = vpop.f32.mrb[0].mxu0
        %2056 = vmatprep.mubr.f32.mxu0 0.0
        %2057 = vmatmul.mubr.f32.gmra.mrb[0].mxu0 %v1870
        %v2058 = vpop.f32.mrb[0].mxu0
        %v2059 = vadd.f32 0.0, %v2058
        %v2060 = vpop.f32.mrb[0].mxu0
        %2061 = vmatprep.mubr.f32.mxu0 0.0
        %2062 = vmatmul.mubr.f32.gmra.mrb[0].mxu0 %v1873
        %v2063 = vpop.f32.mrb[0].mxu0
        %v2064 = vadd.f32 0.0, %v2063
        %v2065 = vpop.f32.mrb[0].mxu0
        %2066 = vmatprep.mubr.f32.mxu0 0.0
        %2067 = vmatmul.mubr.f32.gmra.mrb[0].mxu0 %v1876
        %v2068 = vpop.f32.mrb[0].mxu0
        %v2069 = vadd.f32 0.0, %v2068
        %v2070 = vpop.f32.mrb[0].mxu0
        %2071 = vmatprep.mubr.f32.mxu0 0.0
        %2072 = vmatmul.mubr.f32.gmra.mrb[0].mxu0 %v1879
        %v2073 = vpop.f32.mrb[0].mxu0
        %v2074 = vadd.f32 0.0, %v2073
        %v2075 = vpop.f32.mrb[0].mxu0
        %2076 = vmatprep.mubr.f32.mxu0 0.0
        %2077 = vmatmul.mubr.f32.gmra.mrb[0].mxu0 %v1882
        %v2078 = vpop.f32.mrb[0].mxu0
        %v2079 = vadd.f32 0.0, %v2078
        %v2080 = vpop.f32.mrb[0].mxu0
        %2081 = vmatprep.mubr.f32.mxu0 0.0
        %2082 = vmatmul.mubr.f32.gmra.mrb[0].mxu0 %v1885
        %v2083 = vpop.f32.mrb[0].mxu0
        %v2084 = vadd.f32 0.0, %v2083
        %v2085 = vpop.f32.mrb[0].mxu0
        %2086 = vmatprep.mubr.f32.mxu0 0.0
        %2087 = vmatmul.mubr.f32.gmra.mrb[0].mxu0 %v1888
        %v2088 = vpop.f32.mrb[0].mxu0
        %v2089 = vadd.f32 0.0, %v2088
        %v2090 = vpop.f32.mrb[0].mxu0
        %2091 = vmatprep.mubr.f32.mxu0 0.0
        %2092 = vmatmul.mubr.f32.gmra.mrb[0].mxu0 %v1891
        %v2093 = vpop.f32.mrb[0].mxu0
        %v2094 = vadd.f32 0.0, %v2093
        %v2095 = vpop.f32.mrb[0].mxu0
        %2096 = vmatprep.mubr.f32.mxu0 0.0
        %2097 = vmatmul.mubr.f32.gmra.mrb[0].mxu0 %v1894
        %v2098 = vpop.f32.mrb[0].mxu0
        %v2099 = vadd.f32 0.0, %v2098
        %v2100 = vpop.f32.mrb[0].mxu0
        %2101 = vmatprep.mubr.f32.mxu0 0.0
        %2102 = vmatmul.mubr.f32.gmra.mrb[0].mxu0 %v1897
        %v2103 = vpop.f32.mrb[0].mxu0
        %v2104 = vadd.f32 0.0, %v2103
        %v2105 = vpop.f32.mrb[0].mxu0
        %2106 = vmatprep.mubr.f32.mxu0 0.0
        %2107 = vmatmul.mubr.f32.gmra.mrb[0].mxu0 %v1900
        %v2108 = vpop.f32.mrb[0].mxu0
        %v2109 = vadd.f32 0.0, %v2108
        %v2110 = vpop.f32.mrb[0].mxu0
        %2111 = vmatprep.mubr.f32.mxu0 0.0
        %2112 = vmatmul.mubr.f32.gmra.mrb[0].mxu0 %v1903
        %v2113 = vpop.f32.mrb[0].mxu0
        %v2114 = vadd.f32 0.0, %v2113
        %v2115 = vpop.f32.mrb[0].mxu0
        %2116 = vmatprep.mubr.f32.mxu0 0.0
        %2117 = vmatmul.mubr.f32.gmra.mrb[0].mxu0 %v1906
        %v2118 = vpop.f32.mrb[0].mxu0
        %v2119 = vadd.f32 0.0, %v2118
        %v2120 = vpop.f32.mrb[0].mxu0
        %2121 = vmatprep.mubr.f32.mxu0 0.0
        %2122 = vmatmul.mubr.f32.gmra.mrb[0].mxu0 %v1909
        %v2123 = vpop.f32.mrb[0].mxu0
        %v2124 = vadd.f32 0.0, %v2123
        %v2125 = vpop.f32.mrb[0].mxu0
        %2126 = vmatprep.mubr.f32.mxu0 0.0
        %2127 = vmatmul.mubr.f32.gmra.mrb[0].mxu0 %v1912
        %v2128 = vpop.f32.mrb[0].mxu0
        %v2129 = vadd.f32 0.0, %v2128
        %v2130 = vpop.f32.mrb[0].mxu0
        %2131 = vmatprep.mubr.f32.mxu0 0.0
        %2132 = vmatmul.mubr.f32.gmra.mrb[0].mxu0 %v1915
        %v2133 = vpop.f32.mrb[0].mxu0
        %v2134 = vadd.f32 0.0, %v2133
        %v2135 = vpop.f32.mrb[0].mxu0
        %2136 = vmatprep.mubr.f32.mxu0 0.0
        %2137 = vmatmul.mubr.f32.gmra.mrb[0].mxu0 %v1918
        %v2138 = vpop.f32.mrb[0].mxu0
        %v2139 = vadd.f32 0.0, %v2138
        %v2140 = vpop.f32.mrb[0].mxu0
        %2141 = vmatprep.mubr.f32.mxu0 0.0
        %2142 = vmatmul.mubr.f32.gmra.mrb[0].mxu0 %v1921
        %v2143 = vpop.f32.mrb[0].mxu0
        %v2144 = vadd.f32 0.0, %v2143
        %v2145 = vpop.f32.mrb[0].mxu0
        %2146 = vmatprep.mubr.f32.mxu0 0.0
        %2147 = vmatmul.mubr.f32.gmra.mrb[0].mxu0 %v1924
        %v2148 = vpop.f32.mrb[0].mxu0
        %v2149 = vadd.f32 0.0, %v2148
        %v2150 = vpop.f32.mrb[0].mxu0
        %2151 = vmatprep.mubr.f32.mxu0 0.0
        %2152 = vmatmul.mubr.f32.gmra.mrb[0].mxu0 %v1927
        %v2153 = vpop.f32.mrb[0].mxu0
        %v2154 = vadd.f32 0.0, %v2153
        %v2155 = vpop.f32.mrb[0].mxu0
        %2156 = vdwg.mxu0
        %v2157 = vadd.f32 %v1767, %v1999
        %v2158 = vadd.f32 %v1768, %v2004
        %v2159 = vadd.f32 %v1769, %v2009
        %v2160 = vadd.f32 %v1770, %v2014
        %v2161 = vadd.f32 %v1771, %v2019
        %v2162 = vadd.f32 %v1772, %v2024
        %v2163 = vadd.f32 %v1773, %v2029
        %v2164 = vadd.f32 %v1774, %v2034
        %v2165 = vadd.f32 %v1775, %v2039
        %v2166 = vadd.f32 %v1776, %v2044
        %v2167 = vadd.f32 %v1777, %v2049
        %v2168 = vadd.f32 %v1778, %v2054
        %v2169 = vadd.f32 %v1779, %v2059
        %v2170 = vadd.f32 %v1780, %v2064
        %v2171 = vadd.f32 %v1781, %v2069
        %v2172 = vadd.f32 %v1782, %v2074
        %v2173 = vadd.f32 %v1783, %v2079
        %v2174 = vadd.f32 %v1784, %v2084
        %v2175 = vadd.f32 %v1785, %v2089
        %v2176 = vadd.f32 %v1786, %v2094
        %v2177 = vadd.f32 %v1787, %v2099
        %v2178 = vadd.f32 %v1788, %v2104
        %v2179 = vadd.f32 %v1789, %v2109
        %v2180 = vadd.f32 %v1790, %v2114
        %v2181 = vadd.f32 %v1791, %v2119
        %v2182 = vadd.f32 %v1792, %v2124
        %v2183 = vadd.f32 %v1793, %v2129
        %v2184 = vadd.f32 %v1794, %v2134
        %v2185 = vadd.f32 %v1795, %v2139
        %v2186 = vadd.f32 %v1796, %v2144
        %v2187 = vadd.f32 %v1797, %v2149
        %v2188 = vadd.f32 %v1798, %v2154
        %v2189 = vld [vmem:[%s270 + $0x2] sm:$0xff]
        %v2190 = vld [vmem:[%s270 + $0xa] sm:$0xff]
        %v2191 = vld [vmem:[%s270 + $0x1a] sm:$0xff]
        %v2192 = vld [vmem:[%s270 + $0x22] sm:$0xff]
        %v2193 = vld [vmem:[%s270 + $0x32] sm:$0xff]
        %v2194 = vld [vmem:[%s270 + $0x3a] sm:$0xff]
        %v2195 = vld [vmem:[%s270 + $0x4a] sm:$0xff]
        %v2196 = vld [vmem:[%s270 + $0x52] sm:$0xff]
        %v2197 = vld [vmem:[%s270 + $0x62] sm:$0xff]
        %v2198 = vld [vmem:[%s270 + $0x6a] sm:$0xff]
        %v2199 = vld [vmem:[%s270 + $0x7a] sm:$0xff]
        %v2200 = vld [vmem:[%s270 + $0x82] sm:$0xff]
        %v2201 = vld [vmem:[%s270 + $0x92] sm:$0xff]
        %v2202 = vld [vmem:[%s270 + $0x9a] sm:$0xff]
        %v2203 = vld [vmem:[%s270 + $0xaa] sm:$0xff]
        %v2204 = vld [vmem:[%s270 + $0xb2] sm:$0xff]
        %v2205 = vld [vmem:[%s270 + $0xc2] sm:$0xff]
        %v2206 = vld [vmem:[%s270 + $0xca] sm:$0xff]
        %v2207 = vld [vmem:[%s270 + $0xda] sm:$0xff]
        %v2208 = vld [vmem:[%s270 + $0xe2] sm:$0xff]
        %v2209 = vld [vmem:[%s270 + $0xf2] sm:$0xff]
        %v2210 = vld [vmem:[%s270 + $0xfa] sm:$0xff]
        %v2211 = vld [vmem:[%s270 + $0x10a] sm:$0xff]
        %v2212 = vld [vmem:[%s270 + $0x112] sm:$0xff]
        %v2213 = vld [vmem:[%s270 + $0x122] sm:$0xff]
        %v2214 = vld [vmem:[%s270 + $0x12a] sm:$0xff]
        %v2215 = vld [vmem:[%s270 + $0x13a] sm:$0xff]
        %v2216 = vld [vmem:[%s270 + $0x142] sm:$0xff]
        %v2217 = vld [vmem:[%s270 + $0x152] sm:$0xff]
        %v2218 = vld [vmem:[%s270 + $0x15a] sm:$0xff]
        %v2219 = vld [vmem:[%s270 + $0x16a] sm:$0xff]
        %v2220 = vld [vmem:[%s270 + $0x172] sm:$0xff]
        %s2221 = scalar_lea.vmem %s1, 20
        %v2222 = vld [vmem:[%s2221] sm:$0xf]
        %v2224 = vsel %vm214, %v2189, 0
        %v2227 = vsel %vm214, %v2190, 0
        %v2230 = vsel %vm214, %v2191, 0
        %v2233 = vsel %vm214, %v2192, 0
        %v2236 = vsel %vm214, %v2193, 0
        %v2239 = vsel %vm214, %v2194, 0
        %v2242 = vsel %vm214, %v2195, 0
        %v2245 = vsel %vm214, %v2196, 0
        %v2248 = vsel %vm214, %v2197, 0
        %v2251 = vsel %vm214, %v2198, 0
        %v2254 = vsel %vm214, %v2199, 0
        %v2257 = vsel %vm214, %v2200, 0
        %v2260 = vsel %vm214, %v2201, 0
        %v2263 = vsel %vm214, %v2202, 0
        %v2266 = vsel %vm214, %v2203, 0
        %v2269 = vsel %vm214, %v2204, 0
        %v2272 = vsel %vm214, %v2205, 0
        %v2275 = vsel %vm214, %v2206, 0
        %v2278 = vsel %vm214, %v2207, 0
        %v2281 = vsel %vm214, %v2208, 0
        %v2284 = vsel %vm214, %v2209, 0
        %v2287 = vsel %vm214, %v2210, 0
        %v2290 = vsel %vm214, %v2211, 0
        %v2293 = vsel %vm214, %v2212, 0
        %v2296 = vsel %vm214, %v2213, 0
        %v2299 = vsel %vm214, %v2214, 0
        %v2302 = vsel %vm214, %v2215, 0
        %v2305 = vsel %vm214, %v2216, 0
        %v2308 = vsel %vm214, %v2217, 0
        %v2311 = vsel %vm214, %v2218, 0
        %v2314 = vsel %vm214, %v2219, 0
        %v2317 = vsel %vm214, %v2220, 0
        %v2320 = vsel %vm466, %v2222, 0
        %2322 = vmatprep.subr.mxu0 0.0
        %2323 = vmatpush1.msra.mxu0 %v2320
        %2324 = vmatprep.subr.mxu0 0.0
        %2325 = vmatpush1.msra.mxu0 0.0
        %2326 = vmatprep.subr.mxu0 0.0
        %2327 = vmatpush1.msra.mxu0 0.0
        %2328 = vmatprep.subr.mxu0 0.0
        %2329 = vmatpush1.msra.mxu0 0.0
        %2330 = vmatprep.subr.mxu0 0.0
        %2331 = vmatpush1.msra.mxu0 0.0
        %2332 = vmatprep.subr.mxu0 0.0
        %2333 = vmatpush1.msra.mxu0 0.0
        %2334 = vmatprep.subr.mxu0 0.0
        %2335 = vmatpush1.msra.mxu0 0.0
        %2336 = vmatprep.subr.mxu0 0.0
        %2337 = vmatpush1.msra.mxu0 0.0
        %2338 = vmatprep.subr.mxu0 0.0
        %2339 = vmatpush1.msra.mxu0 0.0
        %2340 = vmatprep.subr.mxu0 0.0
        %2341 = vmatpush1.msra.mxu0 0.0
        %2342 = vmatprep.subr.mxu0 0.0
        %2343 = vmatpush1.msra.mxu0 0.0
        %2344 = vmatprep.subr.mxu0 0.0
        %2345 = vmatpush1.msra.mxu0 0.0
        %2346 = vmatprep.subr.mxu0 0.0
        %2347 = vmatpush1.msra.mxu0 0.0
        %2348 = vmatprep.subr.mxu0 0.0
        %2349 = vmatpush1.msra.mxu0 0.0
        %2350 = vmatprep.subr.mxu0 0.0
        %2351 = vmatpush1.msra.mxu0 0.0
        %2352 = vmatprep.subr.mxu0 0.0
        %2353 = vmatpush1.msra.mxu0 0.0
        %2354 = vmatprep.subr.mxu0 0.0
        %2355 = vmatpush1.msra.mxu0 0.0
        %2356 = vmatprep.subr.mxu0 0.0
        %2357 = vmatpush1.msra.mxu0 0.0
        %2358 = vmatprep.subr.mxu0 0.0
        %2359 = vmatpush1.msra.mxu0 0.0
        %2360 = vmatprep.subr.mxu0 0.0
        %2361 = vmatpush1.msra.mxu0 0.0
        %2362 = vmatprep.subr.mxu0 0.0
        %2363 = vmatpush1.msra.mxu0 0.0
        %2364 = vmatprep.subr.mxu0 0.0
        %2365 = vmatpush1.msra.mxu0 0.0
        %2366 = vmatprep.subr.mxu0 0.0
        %2367 = vmatpush1.msra.mxu0 0.0
        %2368 = vmatprep.subr.mxu0 0.0
        %2369 = vmatpush1.msra.mxu0 0.0
        %2370 = vmatprep.subr.mxu0 0.0
        %2371 = vmatpush1.msra.mxu0 0.0
        %2372 = vmatprep.subr.mxu0 0.0
        %2373 = vmatpush1.msra.mxu0 0.0
        %2374 = vmatprep.subr.mxu0 0.0
        %2375 = vmatpush1.msra.mxu0 0.0
        %2376 = vmatprep.subr.mxu0 0.0
        %2377 = vmatpush1.msra.mxu0 0.0
        %2378 = vmatprep.subr.mxu0 0.0
        %2379 = vmatpush1.msra.mxu0 0.0
        %2380 = vmatprep.subr.mxu0 0.0
        %2381 = vmatpush1.msra.mxu0 0.0
        %2382 = vmatprep.subr.mxu0 0.0
        %2383 = vmatpush1.msra.mxu0 0.0
        %2384 = vmatprep.subr.mxu0 0.0
        %2385 = vmatpush1.msra.mxu0 0.0
        %2386 = vmatprep.mubr.f32.mxu0 0.0
        %2387 = vmatmul.mubr.f32.gmra.mrb[0].mxu0 %v2224
        %v2388 = vpop.f32.mrb[0].mxu0
        %v2389 = vadd.f32 0.0, %v2388
        %v2390 = vpop.f32.mrb[0].mxu0
        %2391 = vmatprep.mubr.f32.mxu0 0.0
        %2392 = vmatmul.mubr.f32.gmra.mrb[0].mxu0 %v2227
        %v2393 = vpop.f32.mrb[0].mxu0
        %v2394 = vadd.f32 0.0, %v2393
        %v2395 = vpop.f32.mrb[0].mxu0
        %2396 = vmatprep.mubr.f32.mxu0 0.0
        %2397 = vmatmul.mubr.f32.gmra.mrb[0].mxu0 %v2230
        %v2398 = vpop.f32.mrb[0].mxu0
        %v2399 = vadd.f32 0.0, %v2398
        %v2400 = vpop.f32.mrb[0].mxu0
        %2401 = vmatprep.mubr.f32.mxu0 0.0
        %2402 = vmatmul.mubr.f32.gmra.mrb[0].mxu0 %v2233
        %v2403 = vpop.f32.mrb[0].mxu0
        %v2404 = vadd.f32 0.0, %v2403
        %v2405 = vpop.f32.mrb[0].mxu0
        %2406 = vmatprep.mubr.f32.mxu0 0.0
        %2407 = vmatmul.mubr.f32.gmra.mrb[0].mxu0 %v2236
        %v2408 = vpop.f32.mrb[0].mxu0
        %v2409 = vadd.f32 0.0, %v2408
        %v2410 = vpop.f32.mrb[0].mxu0
        %2411 = vmatprep.mubr.f32.mxu0 0.0
        %2412 = vmatmul.mubr.f32.gmra.mrb[0].mxu0 %v2239
        %v2413 = vpop.f32.mrb[0].mxu0
        %v2414 = vadd.f32 0.0, %v2413
        %v2415 = vpop.f32.mrb[0].mxu0
        %2416 = vmatprep.mubr.f32.mxu0 0.0
        %2417 = vmatmul.mubr.f32.gmra.mrb[0].mxu0 %v2242
        %v2418 = vpop.f32.mrb[0].mxu0
        %v2419 = vadd.f32 0.0, %v2418
        %v2420 = vpop.f32.mrb[0].mxu0
        %2421 = vmatprep.mubr.f32.mxu0 0.0
        %2422 = vmatmul.mubr.f32.gmra.mrb[0].mxu0 %v2245
        %v2423 = vpop.f32.mrb[0].mxu0
        %v2424 = vadd.f32 0.0, %v2423
        %v2425 = vpop.f32.mrb[0].mxu0
        %2426 = vmatprep.mubr.f32.mxu0 0.0
        %2427 = vmatmul.mubr.f32.gmra.mrb[0].mxu0 %v2248
        %v2428 = vpop.f32.mrb[0].mxu0
        %v2429 = vadd.f32 0.0, %v2428
        %v2430 = vpop.f32.mrb[0].mxu0
        %2431 = vmatprep.mubr.f32.mxu0 0.0
        %2432 = vmatmul.mubr.f32.gmra.mrb[0].mxu0 %v2251
        %v2433 = vpop.f32.mrb[0].mxu0
        %v2434 = vadd.f32 0.0, %v2433
        %v2435 = vpop.f32.mrb[0].mxu0
        %2436 = vmatprep.mubr.f32.mxu0 0.0
        %2437 = vmatmul.mubr.f32.gmra.mrb[0].mxu0 %v2254
        %v2438 = vpop.f32.mrb[0].mxu0
        %v2439 = vadd.f32 0.0, %v2438
        %v2440 = vpop.f32.mrb[0].mxu0
        %2441 = vmatprep.mubr.f32.mxu0 0.0
        %2442 = vmatmul.mubr.f32.gmra.mrb[0].mxu0 %v2257
        %v2443 = vpop.f32.mrb[0].mxu0
        %v2444 = vadd.f32 0.0, %v2443
        %v2445 = vpop.f32.mrb[0].mxu0
        %2446 = vmatprep.mubr.f32.mxu0 0.0
        %2447 = vmatmul.mubr.f32.gmra.mrb[0].mxu0 %v2260
        %v2448 = vpop.f32.mrb[0].mxu0
        %v2449 = vadd.f32 0.0, %v2448
        %v2450 = vpop.f32.mrb[0].mxu0
        %2451 = vmatprep.mubr.f32.mxu0 0.0
        %2452 = vmatmul.mubr.f32.gmra.mrb[0].mxu0 %v2263
        %v2453 = vpop.f32.mrb[0].mxu0
        %v2454 = vadd.f32 0.0, %v2453
        %v2455 = vpop.f32.mrb[0].mxu0
        %2456 = vmatprep.mubr.f32.mxu0 0.0
        %2457 = vmatmul.mubr.f32.gmra.mrb[0].mxu0 %v2266
        %v2458 = vpop.f32.mrb[0].mxu0
        %v2459 = vadd.f32 0.0, %v2458
        %v2460 = vpop.f32.mrb[0].mxu0
        %2461 = vmatprep.mubr.f32.mxu0 0.0
        %2462 = vmatmul.mubr.f32.gmra.mrb[0].mxu0 %v2269
        %v2463 = vpop.f32.mrb[0].mxu0
        %v2464 = vadd.f32 0.0, %v2463
        %v2465 = vpop.f32.mrb[0].mxu0
        %2466 = vmatprep.mubr.f32.mxu0 0.0
        %2467 = vmatmul.mubr.f32.gmra.mrb[0].mxu0 %v2272
        %v2468 = vpop.f32.mrb[0].mxu0
        %v2469 = vadd.f32 0.0, %v2468
        %v2470 = vpop.f32.mrb[0].mxu0
        %2471 = vmatprep.mubr.f32.mxu0 0.0
        %2472 = vmatmul.mubr.f32.gmra.mrb[0].mxu0 %v2275
        %v2473 = vpop.f32.mrb[0].mxu0
        %v2474 = vadd.f32 0.0, %v2473
        %v2475 = vpop.f32.mrb[0].mxu0
        %2476 = vmatprep.mubr.f32.mxu0 0.0
        %2477 = vmatmul.mubr.f32.gmra.mrb[0].mxu0 %v2278
        %v2478 = vpop.f32.mrb[0].mxu0
        %v2479 = vadd.f32 0.0, %v2478
        %v2480 = vpop.f32.mrb[0].mxu0
        %2481 = vmatprep.mubr.f32.mxu0 0.0
        %2482 = vmatmul.mubr.f32.gmra.mrb[0].mxu0 %v2281
        %v2483 = vpop.f32.mrb[0].mxu0
        %v2484 = vadd.f32 0.0, %v2483
        %v2485 = vpop.f32.mrb[0].mxu0
        %2486 = vmatprep.mubr.f32.mxu0 0.0
        %2487 = vmatmul.mubr.f32.gmra.mrb[0].mxu0 %v2284
        %v2488 = vpop.f32.mrb[0].mxu0
        %v2489 = vadd.f32 0.0, %v2488
        %v2490 = vpop.f32.mrb[0].mxu0
        %2491 = vmatprep.mubr.f32.mxu0 0.0
        %2492 = vmatmul.mubr.f32.gmra.mrb[0].mxu0 %v2287
        %v2493 = vpop.f32.mrb[0].mxu0
        %v2494 = vadd.f32 0.0, %v2493
        %v2495 = vpop.f32.mrb[0].mxu0
        %2496 = vmatprep.mubr.f32.mxu0 0.0
        %2497 = vmatmul.mubr.f32.gmra.mrb[0].mxu0 %v2290
        %v2498 = vpop.f32.mrb[0].mxu0
        %v2499 = vadd.f32 0.0, %v2498
        %v2500 = vpop.f32.mrb[0].mxu0
        %2501 = vmatprep.mubr.f32.mxu0 0.0
        %2502 = vmatmul.mubr.f32.gmra.mrb[0].mxu0 %v2293
        %v2503 = vpop.f32.mrb[0].mxu0
        %v2504 = vadd.f32 0.0, %v2503
        %v2505 = vpop.f32.mrb[0].mxu0
        %2506 = vmatprep.mubr.f32.mxu0 0.0
        %2507 = vmatmul.mubr.f32.gmra.mrb[0].mxu0 %v2296
        %v2508 = vpop.f32.mrb[0].mxu0
        %v2509 = vadd.f32 0.0, %v2508
        %v2510 = vpop.f32.mrb[0].mxu0
        %2511 = vmatprep.mubr.f32.mxu0 0.0
        %2512 = vmatmul.mubr.f32.gmra.mrb[0].mxu0 %v2299
        %v2513 = vpop.f32.mrb[0].mxu0
        %v2514 = vadd.f32 0.0, %v2513
        %v2515 = vpop.f32.mrb[0].mxu0
        %2516 = vmatprep.mubr.f32.mxu0 0.0
        %2517 = vmatmul.mubr.f32.gmra.mrb[0].mxu0 %v2302
        %v2518 = vpop.f32.mrb[0].mxu0
        %v2519 = vadd.f32 0.0, %v2518
        %v2520 = vpop.f32.mrb[0].mxu0
        %2521 = vmatprep.mubr.f32.mxu0 0.0
        %2522 = vmatmul.mubr.f32.gmra.mrb[0].mxu0 %v2305
        %v2523 = vpop.f32.mrb[0].mxu0
        %v2524 = vadd.f32 0.0, %v2523
        %v2525 = vpop.f32.mrb[0].mxu0
        %2526 = vmatprep.mubr.f32.mxu0 0.0
        %2527 = vmatmul.mubr.f32.gmra.mrb[0].mxu0 %v2308
        %v2528 = vpop.f32.mrb[0].mxu0
        %v2529 = vadd.f32 0.0, %v2528
        %v2530 = vpop.f32.mrb[0].mxu0
        %2531 = vmatprep.mubr.f32.mxu0 0.0
        %2532 = vmatmul.mubr.f32.gmra.mrb[0].mxu0 %v2311
        %v2533 = vpop.f32.mrb[0].mxu0
        %v2534 = vadd.f32 0.0, %v2533
        %v2535 = vpop.f32.mrb[0].mxu0
        %2536 = vmatprep.mubr.f32.mxu0 0.0
        %2537 = vmatmul.mubr.f32.gmra.mrb[0].mxu0 %v2314
        %v2538 = vpop.f32.mrb[0].mxu0
        %v2539 = vadd.f32 0.0, %v2538
        %v2540 = vpop.f32.mrb[0].mxu0
        %2541 = vmatprep.mubr.f32.mxu0 0.0
        %2542 = vmatmul.mubr.f32.gmra.mrb[0].mxu0 %v2317
        %v2543 = vpop.f32.mrb[0].mxu0
        %v2544 = vadd.f32 0.0, %v2543
        %v2545 = vpop.f32.mrb[0].mxu0
        %2546 = vdwg.mxu0
        %v2547 = vadd.f32 %v2157, %v2389
        %v2548 = vadd.f32 %v2158, %v2394
        %v2549 = vadd.f32 %v2159, %v2399
        %v2550 = vadd.f32 %v2160, %v2404
        %v2551 = vadd.f32 %v2161, %v2409
        %v2552 = vadd.f32 %v2162, %v2414
        %v2553 = vadd.f32 %v2163, %v2419
        %v2554 = vadd.f32 %v2164, %v2424
        %v2555 = vadd.f32 %v2165, %v2429
        %v2556 = vadd.f32 %v2166, %v2434
        %v2557 = vadd.f32 %v2167, %v2439
        %v2558 = vadd.f32 %v2168, %v2444
        %v2559 = vadd.f32 %v2169, %v2449
        %v2560 = vadd.f32 %v2170, %v2454
        %v2561 = vadd.f32 %v2171, %v2459
        %v2562 = vadd.f32 %v2172, %v2464
        %v2563 = vadd.f32 %v2173, %v2469
        %v2564 = vadd.f32 %v2174, %v2474
        %v2565 = vadd.f32 %v2175, %v2479
        %v2566 = vadd.f32 %v2176, %v2484
        %v2567 = vadd.f32 %v2177, %v2489
        %v2568 = vadd.f32 %v2178, %v2494
        %v2569 = vadd.f32 %v2179, %v2499
        %v2570 = vadd.f32 %v2180, %v2504
        %v2571 = vadd.f32 %v2181, %v2509
        %v2572 = vadd.f32 %v2182, %v2514
        %v2573 = vadd.f32 %v2183, %v2519
        %v2574 = vadd.f32 %v2184, %v2524
        %v2575 = vadd.f32 %v2185, %v2529
        %v2576 = vadd.f32 %v2186, %v2534
        %v2577 = vadd.f32 %v2187, %v2539
        %v2578 = vadd.f32 %v2188, %v2544
        %s2579 = scalar_lea.vmem [#allocation2], 48
        %v2580 = vld [vmem:[%s2579] sm:$0xff]
        %v2581 = vld [vmem:[%s2579 + $0x8] sm:$0xff]
        %v2582 = vld [vmem:[%s2579 + $0x18] sm:$0xff]
        %v2583 = vld [vmem:[%s2579 + $0x20] sm:$0xff]
        %v2584 = vld [vmem:[%s2579 + $0x30] sm:$0xff]
        %v2585 = vld [vmem:[%s2579 + $0x38] sm:$0xff]
        %v2586 = vld [vmem:[%s2579 + $0x48] sm:$0xff]
        %v2587 = vld [vmem:[%s2579 + $0x50] sm:$0xff]
        %v2588 = vld [vmem:[%s2579 + $0x60] sm:$0xff]
        %v2589 = vld [vmem:[%s2579 + $0x68] sm:$0xff]
        %v2590 = vld [vmem:[%s2579 + $0x78] sm:$0xff]
        %v2591 = vld [vmem:[%s2579 + $0x80] sm:$0xff]
        %v2592 = vld [vmem:[%s2579 + $0x90] sm:$0xff]
        %v2593 = vld [vmem:[%s2579 + $0x98] sm:$0xff]
        %v2594 = vld [vmem:[%s2579 + $0xa8] sm:$0xff]
        %v2595 = vld [vmem:[%s2579 + $0xb0] sm:$0xff]
        %v2596 = vld [vmem:[%s2579 + $0xc0] sm:$0xff]
        %v2597 = vld [vmem:[%s2579 + $0xc8] sm:$0xff]
        %v2598 = vld [vmem:[%s2579 + $0xd8] sm:$0xff]
        %v2599 = vld [vmem:[%s2579 + $0xe0] sm:$0xff]
        %v2600 = vld [vmem:[%s2579 + $0xf0] sm:$0xff]
        %v2601 = vld [vmem:[%s2579 + $0xf8] sm:$0xff]
        %v2602 = vld [vmem:[%s2579 + $0x108] sm:$0xff]
        %v2603 = vld [vmem:[%s2579 + $0x110] sm:$0xff]
        %v2604 = vld [vmem:[%s2579 + $0x120] sm:$0xff]
        %v2605 = vld [vmem:[%s2579 + $0x128] sm:$0xff]
        %v2606 = vld [vmem:[%s2579 + $0x138] sm:$0xff]
        %v2607 = vld [vmem:[%s2579 + $0x140] sm:$0xff]
        %v2608 = vld [vmem:[%s2579 + $0x150] sm:$0xff]
        %v2609 = vld [vmem:[%s2579 + $0x158] sm:$0xff]
        %v2610 = vld [vmem:[%s2579 + $0x168] sm:$0xff]
        %v2611 = vld [vmem:[%s2579 + $0x170] sm:$0xff]
        %s2612 = scalar_lea.vmem %s1, 24
        %v2613 = vld [vmem:[%s2612] sm:$0xf]
        %v2615 = vsel %vm214, %v2580, 0
        %v2618 = vsel %vm214, %v2581, 0
        %v2621 = vsel %vm214, %v2582, 0
        %v2624 = vsel %vm214, %v2583, 0
        %v2627 = vsel %vm214, %v2584, 0
        %v2630 = vsel %vm214, %v2585, 0
        %v2633 = vsel %vm214, %v2586, 0
        %v2636 = vsel %vm214, %v2587, 0
        %v2639 = vsel %vm214, %v2588, 0
        %v2642 = vsel %vm214, %v2589, 0
        %v2645 = vsel %vm214, %v2590, 0
        %v2648 = vsel %vm214, %v2591, 0
        %v2651 = vsel %vm214, %v2592, 0
        %v2654 = vsel %vm214, %v2593, 0
        %v2657 = vsel %vm214, %v2594, 0
        %v2660 = vsel %vm214, %v2595, 0
        %v2663 = vsel %vm214, %v2596, 0
        %v2666 = vsel %vm214, %v2597, 0
        %v2669 = vsel %vm214, %v2598, 0
        %v2672 = vsel %vm214, %v2599, 0
        %v2675 = vsel %vm214, %v2600, 0
        %v2678 = vsel %vm214, %v2601, 0
        %v2681 = vsel %vm214, %v2602, 0
        %v2684 = vsel %vm214, %v2603, 0
        %v2687 = vsel %vm214, %v2604, 0
        %v2690 = vsel %vm214, %v2605, 0
        %v2693 = vsel %vm214, %v2606, 0
        %v2696 = vsel %vm214, %v2607, 0
        %v2699 = vsel %vm214, %v2608, 0
        %v2702 = vsel %vm214, %v2609, 0
        %v2705 = vsel %vm214, %v2610, 0
        %v2708 = vsel %vm214, %v2611, 0
        %v2711 = vsel %vm466, %v2613, 0
        %2713 = vmatprep.subr.mxu0 0.0
        %2714 = vmatpush1.msra.mxu0 %v2711
        %2715 = vmatprep.subr.mxu0 0.0
        %2716 = vmatpush1.msra.mxu0 0.0
        %2717 = vmatprep.subr.mxu0 0.0
        %2718 = vmatpush1.msra.mxu0 0.0
        %2719 = vmatprep.subr.mxu0 0.0
        %2720 = vmatpush1.msra.mxu0 0.0
        %2721 = vmatprep.subr.mxu0 0.0
        %2722 = vmatpush1.msra.mxu0 0.0
        %2723 = vmatprep.subr.mxu0 0.0
        %2724 = vmatpush1.msra.mxu0 0.0
        %2725 = vmatprep.subr.mxu0 0.0
        %2726 = vmatpush1.msra.mxu0 0.0
        %2727 = vmatprep.subr.mxu0 0.0
        %2728 = vmatpush1.msra.mxu0 0.0
        %2729 = vmatprep.subr.mxu0 0.0
        %2730 = vmatpush1.msra.mxu0 0.0
        %2731 = vmatprep.subr.mxu0 0.0
        %2732 = vmatpush1.msra.mxu0 0.0
        %2733 = vmatprep.subr.mxu0 0.0
        %2734 = vmatpush1.msra.mxu0 0.0
        %2735 = vmatprep.subr.mxu0 0.0
        %2736 = vmatpush1.msra.mxu0 0.0
        %2737 = vmatprep.subr.mxu0 0.0
        %2738 = vmatpush1.msra.mxu0 0.0
        %2739 = vmatprep.subr.mxu0 0.0
        %2740 = vmatpush1.msra.mxu0 0.0
        %2741 = vmatprep.subr.mxu0 0.0
        %2742 = vmatpush1.msra.mxu0 0.0
        %2743 = vmatprep.subr.mxu0 0.0
        %2744 = vmatpush1.msra.mxu0 0.0
        %2745 = vmatprep.subr.mxu0 0.0
        %2746 = vmatpush1.msra.mxu0 0.0
        %2747 = vmatprep.subr.mxu0 0.0
        %2748 = vmatpush1.msra.mxu0 0.0
        %2749 = vmatprep.subr.mxu0 0.0
        %2750 = vmatpush1.msra.mxu0 0.0
        %2751 = vmatprep.subr.mxu0 0.0
        %2752 = vmatpush1.msra.mxu0 0.0
        %2753 = vmatprep.subr.mxu0 0.0
        %2754 = vmatpush1.msra.mxu0 0.0
        %2755 = vmatprep.subr.mxu0 0.0
        %2756 = vmatpush1.msra.mxu0 0.0
        %2757 = vmatprep.subr.mxu0 0.0
        %2758 = vmatpush1.msra.mxu0 0.0
        %2759 = vmatprep.subr.mxu0 0.0
        %2760 = vmatpush1.msra.mxu0 0.0
        %2761 = vmatprep.subr.mxu0 0.0
        %2762 = vmatpush1.msra.mxu0 0.0
        %2763 = vmatprep.subr.mxu0 0.0
        %2764 = vmatpush1.msra.mxu0 0.0
        %2765 = vmatprep.subr.mxu0 0.0
        %2766 = vmatpush1.msra.mxu0 0.0
        %2767 = vmatprep.subr.mxu0 0.0
        %2768 = vmatpush1.msra.mxu0 0.0
        %2769 = vmatprep.subr.mxu0 0.0
        %2770 = vmatpush1.msra.mxu0 0.0
        %2771 = vmatprep.subr.mxu0 0.0
        %2772 = vmatpush1.msra.mxu0 0.0
        %2773 = vmatprep.subr.mxu0 0.0
        %2774 = vmatpush1.msra.mxu0 0.0
        %2775 = vmatprep.subr.mxu0 0.0
        %2776 = vmatpush1.msra.mxu0 0.0
        %2777 = vmatprep.mubr.f32.mxu0 0.0
        %2778 = vmatmul.mubr.f32.gmra.mrb[0].mxu0 %v2615
        %v2779 = vpop.f32.mrb[0].mxu0
        %v2780 = vadd.f32 0.0, %v2779
        %v2781 = vpop.f32.mrb[0].mxu0
        %2782 = vmatprep.mubr.f32.mxu0 0.0
        %2783 = vmatmul.mubr.f32.gmra.mrb[0].mxu0 %v2618
        %v2784 = vpop.f32.mrb[0].mxu0
        %v2785 = vadd.f32 0.0, %v2784
        %v2786 = vpop.f32.mrb[0].mxu0
        %2787 = vmatprep.mubr.f32.mxu0 0.0
        %2788 = vmatmul.mubr.f32.gmra.mrb[0].mxu0 %v2621
        %v2789 = vpop.f32.mrb[0].mxu0
        %v2790 = vadd.f32 0.0, %v2789
        %v2791 = vpop.f32.mrb[0].mxu0
        %2792 = vmatprep.mubr.f32.mxu0 0.0
        %2793 = vmatmul.mubr.f32.gmra.mrb[0].mxu0 %v2624
        %v2794 = vpop.f32.mrb[0].mxu0
        %v2795 = vadd.f32 0.0, %v2794
        %v2796 = vpop.f32.mrb[0].mxu0
        %2797 = vmatprep.mubr.f32.mxu0 0.0
        %2798 = vmatmul.mubr.f32.gmra.mrb[0].mxu0 %v2627
        %v2799 = vpop.f32.mrb[0].mxu0
        %v2800 = vadd.f32 0.0, %v2799
        %v2801 = vpop.f32.mrb[0].mxu0
        %2802 = vmatprep.mubr.f32.mxu0 0.0
        %2803 = vmatmul.mubr.f32.gmra.mrb[0].mxu0 %v2630
        %v2804 = vpop.f32.mrb[0].mxu0
        %v2805 = vadd.f32 0.0, %v2804
        %v2806 = vpop.f32.mrb[0].mxu0
        %2807 = vmatprep.mubr.f32.mxu0 0.0
        %2808 = vmatmul.mubr.f32.gmra.mrb[0].mxu0 %v2633
        %v2809 = vpop.f32.mrb[0].mxu0
        %v2810 = vadd.f32 0.0, %v2809
        %v2811 = vpop.f32.mrb[0].mxu0
        %2812 = vmatprep.mubr.f32.mxu0 0.0
        %2813 = vmatmul.mubr.f32.gmra.mrb[0].mxu0 %v2636
        %v2814 = vpop.f32.mrb[0].mxu0
        %v2815 = vadd.f32 0.0, %v2814
        %v2816 = vpop.f32.mrb[0].mxu0
        %2817 = vmatprep.mubr.f32.mxu0 0.0
        %2818 = vmatmul.mubr.f32.gmra.mrb[0].mxu0 %v2639
        %v2819 = vpop.f32.mrb[0].mxu0
        %v2820 = vadd.f32 0.0, %v2819
        %v2821 = vpop.f32.mrb[0].mxu0
        %2822 = vmatprep.mubr.f32.mxu0 0.0
        %2823 = vmatmul.mubr.f32.gmra.mrb[0].mxu0 %v2642
        %v2824 = vpop.f32.mrb[0].mxu0
        %v2825 = vadd.f32 0.0, %v2824
        %v2826 = vpop.f32.mrb[0].mxu0
        %2827 = vmatprep.mubr.f32.mxu0 0.0
        %2828 = vmatmul.mubr.f32.gmra.mrb[0].mxu0 %v2645
        %v2829 = vpop.f32.mrb[0].mxu0
        %v2830 = vadd.f32 0.0, %v2829
        %v2831 = vpop.f32.mrb[0].mxu0
        %2832 = vmatprep.mubr.f32.mxu0 0.0
        %2833 = vmatmul.mubr.f32.gmra.mrb[0].mxu0 %v2648
        %v2834 = vpop.f32.mrb[0].mxu0
        %v2835 = vadd.f32 0.0, %v2834
        %v2836 = vpop.f32.mrb[0].mxu0
        %2837 = vmatprep.mubr.f32.mxu0 0.0
        %2838 = vmatmul.mubr.f32.gmra.mrb[0].mxu0 %v2651
        %v2839 = vpop.f32.mrb[0].mxu0
        %v2840 = vadd.f32 0.0, %v2839
        %v2841 = vpop.f32.mrb[0].mxu0
        %2842 = vmatprep.mubr.f32.mxu0 0.0
        %2843 = vmatmul.mubr.f32.gmra.mrb[0].mxu0 %v2654
        %v2844 = vpop.f32.mrb[0].mxu0
        %v2845 = vadd.f32 0.0, %v2844
        %v2846 = vpop.f32.mrb[0].mxu0
        %2847 = vmatprep.mubr.f32.mxu0 0.0
        %2848 = vmatmul.mubr.f32.gmra.mrb[0].mxu0 %v2657
        %v2849 = vpop.f32.mrb[0].mxu0
        %v2850 = vadd.f32 0.0, %v2849
        %v2851 = vpop.f32.mrb[0].mxu0
        %2852 = vmatprep.mubr.f32.mxu0 0.0
        %2853 = vmatmul.mubr.f32.gmra.mrb[0].mxu0 %v2660
        %v2854 = vpop.f32.mrb[0].mxu0
        %v2855 = vadd.f32 0.0, %v2854
        %v2856 = vpop.f32.mrb[0].mxu0
        %2857 = vmatprep.mubr.f32.mxu0 0.0
        %2858 = vmatmul.mubr.f32.gmra.mrb[0].mxu0 %v2663
        %v2859 = vpop.f32.mrb[0].mxu0
        %v2860 = vadd.f32 0.0, %v2859
        %v2861 = vpop.f32.mrb[0].mxu0
        %2862 = vmatprep.mubr.f32.mxu0 0.0
        %2863 = vmatmul.mubr.f32.gmra.mrb[0].mxu0 %v2666
        %v2864 = vpop.f32.mrb[0].mxu0
        %v2865 = vadd.f32 0.0, %v2864
        %v2866 = vpop.f32.mrb[0].mxu0
        %2867 = vmatprep.mubr.f32.mxu0 0.0
        %2868 = vmatmul.mubr.f32.gmra.mrb[0].mxu0 %v2669
        %v2869 = vpop.f32.mrb[0].mxu0
        %v2870 = vadd.f32 0.0, %v2869
        %v2871 = vpop.f32.mrb[0].mxu0
        %2872 = vmatprep.mubr.f32.mxu0 0.0
        %2873 = vmatmul.mubr.f32.gmra.mrb[0].mxu0 %v2672
        %v2874 = vpop.f32.mrb[0].mxu0
        %v2875 = vadd.f32 0.0, %v2874
        %v2876 = vpop.f32.mrb[0].mxu0
        %2877 = vmatprep.mubr.f32.mxu0 0.0
        %2878 = vmatmul.mubr.f32.gmra.mrb[0].mxu0 %v2675
        %v2879 = vpop.f32.mrb[0].mxu0
        %v2880 = vadd.f32 0.0, %v2879
        %v2881 = vpop.f32.mrb[0].mxu0
        %2882 = vmatprep.mubr.f32.mxu0 0.0
        %2883 = vmatmul.mubr.f32.gmra.mrb[0].mxu0 %v2678
        %v2884 = vpop.f32.mrb[0].mxu0
        %v2885 = vadd.f32 0.0, %v2884
        %v2886 = vpop.f32.mrb[0].mxu0
        %2887 = vmatprep.mubr.f32.mxu0 0.0
        %2888 = vmatmul.mubr.f32.gmra.mrb[0].mxu0 %v2681
        %v2889 = vpop.f32.mrb[0].mxu0
        %v2890 = vadd.f32 0.0, %v2889
        %v2891 = vpop.f32.mrb[0].mxu0
        %2892 = vmatprep.mubr.f32.mxu0 0.0
        %2893 = vmatmul.mubr.f32.gmra.mrb[0].mxu0 %v2684
        %v2894 = vpop.f32.mrb[0].mxu0
        %v2895 = vadd.f32 0.0, %v2894
        %v2896 = vpop.f32.mrb[0].mxu0
        %2897 = vmatprep.mubr.f32.mxu0 0.0
        %2898 = vmatmul.mubr.f32.gmra.mrb[0].mxu0 %v2687
        %v2899 = vpop.f32.mrb[0].mxu0
        %v2900 = vadd.f32 0.0, %v2899
        %v2901 = vpop.f32.mrb[0].mxu0
        %2902 = vmatprep.mubr.f32.mxu0 0.0
        %2903 = vmatmul.mubr.f32.gmra.mrb[0].mxu0 %v2690
        %v2904 = vpop.f32.mrb[0].mxu0
        %v2905 = vadd.f32 0.0, %v2904
        %v2906 = vpop.f32.mrb[0].mxu0
        %2907 = vmatprep.mubr.f32.mxu0 0.0
        %2908 = vmatmul.mubr.f32.gmra.mrb[0].mxu0 %v2693
        %v2909 = vpop.f32.mrb[0].mxu0
        %v2910 = vadd.f32 0.0, %v2909
        %v2911 = vpop.f32.mrb[0].mxu0
        %2912 = vmatprep.mubr.f32.mxu0 0.0
        %2913 = vmatmul.mubr.f32.gmra.mrb[0].mxu0 %v2696
        %v2914 = vpop.f32.mrb[0].mxu0
        %v2915 = vadd.f32 0.0, %v2914
        %v2916 = vpop.f32.mrb[0].mxu0
        %2917 = vmatprep.mubr.f32.mxu0 0.0
        %2918 = vmatmul.mubr.f32.gmra.mrb[0].mxu0 %v2699
        %v2919 = vpop.f32.mrb[0].mxu0
        %v2920 = vadd.f32 0.0, %v2919
        %v2921 = vpop.f32.mrb[0].mxu0
        %2922 = vmatprep.mubr.f32.mxu0 0.0
        %2923 = vmatmul.mubr.f32.gmra.mrb[0].mxu0 %v2702
        %v2924 = vpop.f32.mrb[0].mxu0
        %v2925 = vadd.f32 0.0, %v2924
        %v2926 = vpop.f32.mrb[0].mxu0
        %2927 = vmatprep.mubr.f32.mxu0 0.0
        %2928 = vmatmul.mubr.f32.gmra.mrb[0].mxu0 %v2705
        %v2929 = vpop.f32.mrb[0].mxu0
        %v2930 = vadd.f32 0.0, %v2929
        %v2931 = vpop.f32.mrb[0].mxu0
        %2932 = vmatprep.mubr.f32.mxu0 0.0
        %2933 = vmatmul.mubr.f32.gmra.mrb[0].mxu0 %v2708
        %v2934 = vpop.f32.mrb[0].mxu0
        %v2935 = vadd.f32 0.0, %v2934
        %v2936 = vpop.f32.mrb[0].mxu0
        %2937 = vdwg.mxu0
        %v2938 = vadd.f32 %v2547, %v2780
        %v2939 = vadd.f32 %v2548, %v2785
        %v2940 = vadd.f32 %v2549, %v2790
        %v2941 = vadd.f32 %v2550, %v2795
        %v2942 = vadd.f32 %v2551, %v2800
        %v2943 = vadd.f32 %v2552, %v2805
        %v2944 = vadd.f32 %v2553, %v2810
        %v2945 = vadd.f32 %v2554, %v2815
        %v2946 = vadd.f32 %v2555, %v2820
        %v2947 = vadd.f32 %v2556, %v2825
        %v2948 = vadd.f32 %v2557, %v2830
        %v2949 = vadd.f32 %v2558, %v2835
        %v2950 = vadd.f32 %v2559, %v2840
        %v2951 = vadd.f32 %v2560, %v2845
        %v2952 = vadd.f32 %v2561, %v2850
        %v2953 = vadd.f32 %v2562, %v2855
        %v2954 = vadd.f32 %v2563, %v2860
        %v2955 = vadd.f32 %v2564, %v2865
        %v2956 = vadd.f32 %v2565, %v2870
        %v2957 = vadd.f32 %v2566, %v2875
        %v2958 = vadd.f32 %v2567, %v2880
        %v2959 = vadd.f32 %v2568, %v2885
        %v2960 = vadd.f32 %v2569, %v2890
        %v2961 = vadd.f32 %v2570, %v2895
        %v2962 = vadd.f32 %v2571, %v2900
        %v2963 = vadd.f32 %v2572, %v2905
        %v2964 = vadd.f32 %v2573, %v2910
        %v2965 = vadd.f32 %v2574, %v2915
        %v2966 = vadd.f32 %v2575, %v2920
        %v2967 = vadd.f32 %v2576, %v2925
        %v2968 = vadd.f32 %v2577, %v2930
        %v2969 = vadd.f32 %v2578, %v2935
        %v2970 = vld [vmem:[%s2579 + $0x1] sm:$0xff]
        %v2971 = vld [vmem:[%s2579 + $0x9] sm:$0xff]
        %v2972 = vld [vmem:[%s2579 + $0x19] sm:$0xff]
        %v2973 = vld [vmem:[%s2579 + $0x21] sm:$0xff]
        %v2974 = vld [vmem:[%s2579 + $0x31] sm:$0xff]
        %v2975 = vld [vmem:[%s2579 + $0x39] sm:$0xff]
        %v2976 = vld [vmem:[%s2579 + $0x49] sm:$0xff]
        %v2977 = vld [vmem:[%s2579 + $0x51] sm:$0xff]
        %v2978 = vld [vmem:[%s2579 + $0x61] sm:$0xff]
        %v2979 = vld [vmem:[%s2579 + $0x69] sm:$0xff]
        %v2980 = vld [vmem:[%s2579 + $0x79] sm:$0xff]
        %v2981 = vld [vmem:[%s2579 + $0x81] sm:$0xff]
        %v2982 = vld [vmem:[%s2579 + $0x91] sm:$0xff]
        %v2983 = vld [vmem:[%s2579 + $0x99] sm:$0xff]
        %v2984 = vld [vmem:[%s2579 + $0xa9] sm:$0xff]
        %v2985 = vld [vmem:[%s2579 + $0xb1] sm:$0xff]
        %v2986 = vld [vmem:[%s2579 + $0xc1] sm:$0xff]
        %v2987 = vld [vmem:[%s2579 + $0xc9] sm:$0xff]
        %v2988 = vld [vmem:[%s2579 + $0xd9] sm:$0xff]
        %v2989 = vld [vmem:[%s2579 + $0xe1] sm:$0xff]
        %v2990 = vld [vmem:[%s2579 + $0xf1] sm:$0xff]
        %v2991 = vld [vmem:[%s2579 + $0xf9] sm:$0xff]
        %v2992 = vld [vmem:[%s2579 + $0x109] sm:$0xff]
        %v2993 = vld [vmem:[%s2579 + $0x111] sm:$0xff]
        %v2994 = vld [vmem:[%s2579 + $0x121] sm:$0xff]
        %v2995 = vld [vmem:[%s2579 + $0x129] sm:$0xff]
        %v2996 = vld [vmem:[%s2579 + $0x139] sm:$0xff]
        %v2997 = vld [vmem:[%s2579 + $0x141] sm:$0xff]
        %v2998 = vld [vmem:[%s2579 + $0x151] sm:$0xff]
        %v2999 = vld [vmem:[%s2579 + $0x159] sm:$0xff]
        %v3000 = vld [vmem:[%s2579 + $0x169] sm:$0xff]
        %v3001 = vld [vmem:[%s2579 + $0x171] sm:$0xff]
        %s3002 = scalar_lea.vmem %s1, 28
        %v3003 = vld [vmem:[%s3002] sm:$0xf]
        %v3005 = vsel %vm214, %v2970, 0
        %v3008 = vsel %vm214, %v2971, 0
        %v3011 = vsel %vm214, %v2972, 0
        %v3014 = vsel %vm214, %v2973, 0
        %v3017 = vsel %vm214, %v2974, 0
        %v3020 = vsel %vm214, %v2975, 0
        %v3023 = vsel %vm214, %v2976, 0
        %v3026 = vsel %vm214, %v2977, 0
        %v3029 = vsel %vm214, %v2978, 0
        %v3032 = vsel %vm214, %v2979, 0
        %v3035 = vsel %vm214, %v2980, 0
        %v3038 = vsel %vm214, %v2981, 0
        %v3041 = vsel %vm214, %v2982, 0
        %v3044 = vsel %vm214, %v2983, 0
        %v3047 = vsel %vm214, %v2984, 0
        %v3050 = vsel %vm214, %v2985, 0
        %v3053 = vsel %vm214, %v2986, 0
        %v3056 = vsel %vm214, %v2987, 0
        %v3059 = vsel %vm214, %v2988, 0
        %v3062 = vsel %vm214, %v2989, 0
        %v3065 = vsel %vm214, %v2990, 0
        %v3068 = vsel %vm214, %v2991, 0
        %v3071 = vsel %vm214, %v2992, 0
        %v3074 = vsel %vm214, %v2993, 0
        %v3077 = vsel %vm214, %v2994, 0
        %v3080 = vsel %vm214, %v2995, 0
        %v3083 = vsel %vm214, %v2996, 0
        %v3086 = vsel %vm214, %v2997, 0
        %v3089 = vsel %vm214, %v2998, 0
        %v3092 = vsel %vm214, %v2999, 0
        %v3095 = vsel %vm214, %v3000, 0
        %v3098 = vsel %vm214, %v3001, 0
        %v3101 = vsel %vm466, %v3003, 0
        %3103 = vmatprep.subr.mxu0 0.0
        %3104 = vmatpush1.msra.mxu0 %v3101
        %3105 = vmatprep.subr.mxu0 0.0
        %3106 = vmatpush1.msra.mxu0 0.0
        %3107 = vmatprep.subr.mxu0 0.0
        %3108 = vmatpush1.msra.mxu0 0.0
        %3109 = vmatprep.subr.mxu0 0.0
        %3110 = vmatpush1.msra.mxu0 0.0
        %3111 = vmatprep.subr.mxu0 0.0
        %3112 = vmatpush1.msra.mxu0 0.0
        %3113 = vmatprep.subr.mxu0 0.0
        %3114 = vmatpush1.msra.mxu0 0.0
        %3115 = vmatprep.subr.mxu0 0.0
        %3116 = vmatpush1.msra.mxu0 0.0
        %3117 = vmatprep.subr.mxu0 0.0
        %3118 = vmatpush1.msra.mxu0 0.0
        %3119 = vmatprep.subr.mxu0 0.0
        %3120 = vmatpush1.msra.mxu0 0.0
        %3121 = vmatprep.subr.mxu0 0.0
        %3122 = vmatpush1.msra.mxu0 0.0
        %3123 = vmatprep.subr.mxu0 0.0
        %3124 = vmatpush1.msra.mxu0 0.0
        %3125 = vmatprep.subr.mxu0 0.0
        %3126 = vmatpush1.msra.mxu0 0.0
        %3127 = vmatprep.subr.mxu0 0.0
        %3128 = vmatpush1.msra.mxu0 0.0
        %3129 = vmatprep.subr.mxu0 0.0
        %3130 = vmatpush1.msra.mxu0 0.0
        %3131 = vmatprep.subr.mxu0 0.0
        %3132 = vmatpush1.msra.mxu0 0.0
        %3133 = vmatprep.subr.mxu0 0.0
        %3134 = vmatpush1.msra.mxu0 0.0
        %3135 = vmatprep.subr.mxu0 0.0
        %3136 = vmatpush1.msra.mxu0 0.0
        %3137 = vmatprep.subr.mxu0 0.0
        %3138 = vmatpush1.msra.mxu0 0.0
        %3139 = vmatprep.subr.mxu0 0.0
        %3140 = vmatpush1.msra.mxu0 0.0
        %3141 = vmatprep.subr.mxu0 0.0
        %3142 = vmatpush1.msra.mxu0 0.0
        %3143 = vmatprep.subr.mxu0 0.0
        %3144 = vmatpush1.msra.mxu0 0.0
        %3145 = vmatprep.subr.mxu0 0.0
        %3146 = vmatpush1.msra.mxu0 0.0
        %3147 = vmatprep.subr.mxu0 0.0
        %3148 = vmatpush1.msra.mxu0 0.0
        %3149 = vmatprep.subr.mxu0 0.0
        %3150 = vmatpush1.msra.mxu0 0.0
        %3151 = vmatprep.subr.mxu0 0.0
        %3152 = vmatpush1.msra.mxu0 0.0
        %3153 = vmatprep.subr.mxu0 0.0
        %3154 = vmatpush1.msra.mxu0 0.0
        %3155 = vmatprep.subr.mxu0 0.0
        %3156 = vmatpush1.msra.mxu0 0.0
        %3157 = vmatprep.subr.mxu0 0.0
        %3158 = vmatpush1.msra.mxu0 0.0
        %3159 = vmatprep.subr.mxu0 0.0
        %3160 = vmatpush1.msra.mxu0 0.0
        %3161 = vmatprep.subr.mxu0 0.0
        %3162 = vmatpush1.msra.mxu0 0.0
        %3163 = vmatprep.subr.mxu0 0.0
        %3164 = vmatpush1.msra.mxu0 0.0
        %3165 = vmatprep.subr.mxu0 0.0
        %3166 = vmatpush1.msra.mxu0 0.0
        %3167 = vmatprep.mubr.f32.mxu0 0.0
        %3168 = vmatmul.mubr.f32.gmra.mrb[0].mxu0 %v3005
        %v3169 = vpop.f32.mrb[0].mxu0
        %v3170 = vadd.f32 0.0, %v3169
        %v3171 = vpop.f32.mrb[0].mxu0
        %3172 = vmatprep.mubr.f32.mxu0 0.0
        %3173 = vmatmul.mubr.f32.gmra.mrb[0].mxu0 %v3008
        %v3174 = vpop.f32.mrb[0].mxu0
        %v3175 = vadd.f32 0.0, %v3174
        %v3176 = vpop.f32.mrb[0].mxu0
        %3177 = vmatprep.mubr.f32.mxu0 0.0
        %3178 = vmatmul.mubr.f32.gmra.mrb[0].mxu0 %v3011
        %v3179 = vpop.f32.mrb[0].mxu0
        %v3180 = vadd.f32 0.0, %v3179
        %v3181 = vpop.f32.mrb[0].mxu0
        %3182 = vmatprep.mubr.f32.mxu0 0.0
        %3183 = vmatmul.mubr.f32.gmra.mrb[0].mxu0 %v3014
        %v3184 = vpop.f32.mrb[0].mxu0
        %v3185 = vadd.f32 0.0, %v3184
        %v3186 = vpop.f32.mrb[0].mxu0
        %3187 = vmatprep.mubr.f32.mxu0 0.0
        %3188 = vmatmul.mubr.f32.gmra.mrb[0].mxu0 %v3017
        %v3189 = vpop.f32.mrb[0].mxu0
        %v3190 = vadd.f32 0.0, %v3189
        %v3191 = vpop.f32.mrb[0].mxu0
        %3192 = vmatprep.mubr.f32.mxu0 0.0
        %3193 = vmatmul.mubr.f32.gmra.mrb[0].mxu0 %v3020
        %v3194 = vpop.f32.mrb[0].mxu0
        %v3195 = vadd.f32 0.0, %v3194
        %v3196 = vpop.f32.mrb[0].mxu0
        %3197 = vmatprep.mubr.f32.mxu0 0.0
        %3198 = vmatmul.mubr.f32.gmra.mrb[0].mxu0 %v3023
        %v3199 = vpop.f32.mrb[0].mxu0
        %v3200 = vadd.f32 0.0, %v3199
        %v3201 = vpop.f32.mrb[0].mxu0
        %3202 = vmatprep.mubr.f32.mxu0 0.0
        %3203 = vmatmul.mubr.f32.gmra.mrb[0].mxu0 %v3026
        %v3204 = vpop.f32.mrb[0].mxu0
        %v3205 = vadd.f32 0.0, %v3204
        %v3206 = vpop.f32.mrb[0].mxu0
        %3207 = vmatprep.mubr.f32.mxu0 0.0
        %3208 = vmatmul.mubr.f32.gmra.mrb[0].mxu0 %v3029
        %v3209 = vpop.f32.mrb[0].mxu0
        %v3210 = vadd.f32 0.0, %v3209
        %v3211 = vpop.f32.mrb[0].mxu0
        %3212 = vmatprep.mubr.f32.mxu0 0.0
        %3213 = vmatmul.mubr.f32.gmra.mrb[0].mxu0 %v3032
        %v3214 = vpop.f32.mrb[0].mxu0
        %v3215 = vadd.f32 0.0, %v3214
        %v3216 = vpop.f32.mrb[0].mxu0
        %3217 = vmatprep.mubr.f32.mxu0 0.0
        %3218 = vmatmul.mubr.f32.gmra.mrb[0].mxu0 %v3035
        %v3219 = vpop.f32.mrb[0].mxu0
        %v3220 = vadd.f32 0.0, %v3219
        %v3221 = vpop.f32.mrb[0].mxu0
        %3222 = vmatprep.mubr.f32.mxu0 0.0
        %3223 = vmatmul.mubr.f32.gmra.mrb[0].mxu0 %v3038
        %v3224 = vpop.f32.mrb[0].mxu0
        %v3225 = vadd.f32 0.0, %v3224
        %v3226 = vpop.f32.mrb[0].mxu0
        %3227 = vmatprep.mubr.f32.mxu0 0.0
        %3228 = vmatmul.mubr.f32.gmra.mrb[0].mxu0 %v3041
        %v3229 = vpop.f32.mrb[0].mxu0
        %v3230 = vadd.f32 0.0, %v3229
        %v3231 = vpop.f32.mrb[0].mxu0
        %3232 = vmatprep.mubr.f32.mxu0 0.0
        %3233 = vmatmul.mubr.f32.gmra.mrb[0].mxu0 %v3044
        %v3234 = vpop.f32.mrb[0].mxu0
        %v3235 = vadd.f32 0.0, %v3234
        %v3236 = vpop.f32.mrb[0].mxu0
        %3237 = vmatprep.mubr.f32.mxu0 0.0
        %3238 = vmatmul.mubr.f32.gmra.mrb[0].mxu0 %v3047
        %v3239 = vpop.f32.mrb[0].mxu0
        %v3240 = vadd.f32 0.0, %v3239
        %v3241 = vpop.f32.mrb[0].mxu0
        %3242 = vmatprep.mubr.f32.mxu0 0.0
        %3243 = vmatmul.mubr.f32.gmra.mrb[0].mxu0 %v3050
        %v3244 = vpop.f32.mrb[0].mxu0
        %v3245 = vadd.f32 0.0, %v3244
        %v3246 = vpop.f32.mrb[0].mxu0
        %3247 = vmatprep.mubr.f32.mxu0 0.0
        %3248 = vmatmul.mubr.f32.gmra.mrb[0].mxu0 %v3053
        %v3249 = vpop.f32.mrb[0].mxu0
        %v3250 = vadd.f32 0.0, %v3249
        %v3251 = vpop.f32.mrb[0].mxu0
        %3252 = vmatprep.mubr.f32.mxu0 0.0
        %3253 = vmatmul.mubr.f32.gmra.mrb[0].mxu0 %v3056
        %v3254 = vpop.f32.mrb[0].mxu0
        %v3255 = vadd.f32 0.0, %v3254
        %v3256 = vpop.f32.mrb[0].mxu0
        %3257 = vmatprep.mubr.f32.mxu0 0.0
        %3258 = vmatmul.mubr.f32.gmra.mrb[0].mxu0 %v3059
        %v3259 = vpop.f32.mrb[0].mxu0
        %v3260 = vadd.f32 0.0, %v3259
        %v3261 = vpop.f32.mrb[0].mxu0
        %3262 = vmatprep.mubr.f32.mxu0 0.0
        %3263 = vmatmul.mubr.f32.gmra.mrb[0].mxu0 %v3062
        %v3264 = vpop.f32.mrb[0].mxu0
        %v3265 = vadd.f32 0.0, %v3264
        %v3266 = vpop.f32.mrb[0].mxu0
        %3267 = vmatprep.mubr.f32.mxu0 0.0
        %3268 = vmatmul.mubr.f32.gmra.mrb[0].mxu0 %v3065
        %v3269 = vpop.f32.mrb[0].mxu0
        %v3270 = vadd.f32 0.0, %v3269
        %v3271 = vpop.f32.mrb[0].mxu0
        %3272 = vmatprep.mubr.f32.mxu0 0.0
        %3273 = vmatmul.mubr.f32.gmra.mrb[0].mxu0 %v3068
        %v3274 = vpop.f32.mrb[0].mxu0
        %v3275 = vadd.f32 0.0, %v3274
        %v3276 = vpop.f32.mrb[0].mxu0
        %3277 = vmatprep.mubr.f32.mxu0 0.0
        %3278 = vmatmul.mubr.f32.gmra.mrb[0].mxu0 %v3071
        %v3279 = vpop.f32.mrb[0].mxu0
        %v3280 = vadd.f32 0.0, %v3279
        %v3281 = vpop.f32.mrb[0].mxu0
        %3282 = vmatprep.mubr.f32.mxu0 0.0
        %3283 = vmatmul.mubr.f32.gmra.mrb[0].mxu0 %v3074
        %v3284 = vpop.f32.mrb[0].mxu0
        %v3285 = vadd.f32 0.0, %v3284
        %v3286 = vpop.f32.mrb[0].mxu0
        %3287 = vmatprep.mubr.f32.mxu0 0.0
        %3288 = vmatmul.mubr.f32.gmra.mrb[0].mxu0 %v3077
        %v3289 = vpop.f32.mrb[0].mxu0
        %v3290 = vadd.f32 0.0, %v3289
        %v3291 = vpop.f32.mrb[0].mxu0
        %3292 = vmatprep.mubr.f32.mxu0 0.0
        %3293 = vmatmul.mubr.f32.gmra.mrb[0].mxu0 %v3080
        %v3294 = vpop.f32.mrb[0].mxu0
        %v3295 = vadd.f32 0.0, %v3294
        %v3296 = vpop.f32.mrb[0].mxu0
        %3297 = vmatprep.mubr.f32.mxu0 0.0
        %3298 = vmatmul.mubr.f32.gmra.mrb[0].mxu0 %v3083
        %v3299 = vpop.f32.mrb[0].mxu0
        %v3300 = vadd.f32 0.0, %v3299
        %v3301 = vpop.f32.mrb[0].mxu0
        %3302 = vmatprep.mubr.f32.mxu0 0.0
        %3303 = vmatmul.mubr.f32.gmra.mrb[0].mxu0 %v3086
        %v3304 = vpop.f32.mrb[0].mxu0
        %v3305 = vadd.f32 0.0, %v3304
        %v3306 = vpop.f32.mrb[0].mxu0
        %3307 = vmatprep.mubr.f32.mxu0 0.0
        %3308 = vmatmul.mubr.f32.gmra.mrb[0].mxu0 %v3089
        %v3309 = vpop.f32.mrb[0].mxu0
        %v3310 = vadd.f32 0.0, %v3309
        %v3311 = vpop.f32.mrb[0].mxu0
        %3312 = vmatprep.mubr.f32.mxu0 0.0
        %3313 = vmatmul.mubr.f32.gmra.mrb[0].mxu0 %v3092
        %v3314 = vpop.f32.mrb[0].mxu0
        %v3315 = vadd.f32 0.0, %v3314
        %v3316 = vpop.f32.mrb[0].mxu0
        %3317 = vmatprep.mubr.f32.mxu0 0.0
        %3318 = vmatmul.mubr.f32.gmra.mrb[0].mxu0 %v3095
        %v3319 = vpop.f32.mrb[0].mxu0
        %v3320 = vadd.f32 0.0, %v3319
        %v3321 = vpop.f32.mrb[0].mxu0
        %3322 = vmatprep.mubr.f32.mxu0 0.0
        %3323 = vmatmul.mubr.f32.gmra.mrb[0].mxu0 %v3098
        %v3324 = vpop.f32.mrb[0].mxu0
        %v3325 = vadd.f32 0.0, %v3324
        %v3326 = vpop.f32.mrb[0].mxu0
        %3327 = vdwg.mxu0
        %v3328 = vadd.f32 %v2938, %v3170
        %v3329 = vadd.f32 %v2939, %v3175
        %v3330 = vadd.f32 %v2940, %v3180
        %v3331 = vadd.f32 %v2941, %v3185
        %v3332 = vadd.f32 %v2942, %v3190
        %v3333 = vadd.f32 %v2943, %v3195
        %v3334 = vadd.f32 %v2944, %v3200
        %v3335 = vadd.f32 %v2945, %v3205
        %v3336 = vadd.f32 %v2946, %v3210
        %v3337 = vadd.f32 %v2947, %v3215
        %v3338 = vadd.f32 %v2948, %v3220
        %v3339 = vadd.f32 %v2949, %v3225
        %v3340 = vadd.f32 %v2950, %v3230
        %v3341 = vadd.f32 %v2951, %v3235
        %v3342 = vadd.f32 %v2952, %v3240
        %v3343 = vadd.f32 %v2953, %v3245
        %v3344 = vadd.f32 %v2954, %v3250
        %v3345 = vadd.f32 %v2955, %v3255
        %v3346 = vadd.f32 %v2956, %v3260
        %v3347 = vadd.f32 %v2957, %v3265
        %v3348 = vadd.f32 %v2958, %v3270
        %v3349 = vadd.f32 %v2959, %v3275
        %v3350 = vadd.f32 %v2960, %v3280
        %v3351 = vadd.f32 %v2961, %v3285
        %v3352 = vadd.f32 %v2962, %v3290
        %v3353 = vadd.f32 %v2963, %v3295
        %v3354 = vadd.f32 %v2964, %v3300
        %v3355 = vadd.f32 %v2965, %v3305
        %v3356 = vadd.f32 %v2966, %v3310
        %v3357 = vadd.f32 %v2967, %v3315
        %v3358 = vadd.f32 %v2968, %v3320
        %v3359 = vadd.f32 %v2969, %v3325
        %v3360 = vld [vmem:[%s2579 + $0x2] sm:$0xff]
        %v3361 = vld [vmem:[%s2579 + $0xa] sm:$0xff]
        %v3362 = vld [vmem:[%s2579 + $0x1a] sm:$0xff]
        %v3363 = vld [vmem:[%s2579 + $0x22] sm:$0xff]
        %v3364 = vld [vmem:[%s2579 + $0x32] sm:$0xff]
        %v3365 = vld [vmem:[%s2579 + $0x3a] sm:$0xff]
        %v3366 = vld [vmem:[%s2579 + $0x4a] sm:$0xff]
        %v3367 = vld [vmem:[%s2579 + $0x52] sm:$0xff]
        %v3368 = vld [vmem:[%s2579 + $0x62] sm:$0xff]
        %v3369 = vld [vmem:[%s2579 + $0x6a] sm:$0xff]
        %v3370 = vld [vmem:[%s2579 + $0x7a] sm:$0xff]
        %v3371 = vld [vmem:[%s2579 + $0x82] sm:$0xff]
        %v3372 = vld [vmem:[%s2579 + $0x92] sm:$0xff]
        %v3373 = vld [vmem:[%s2579 + $0x9a] sm:$0xff]
        %v3374 = vld [vmem:[%s2579 + $0xaa] sm:$0xff]
        %v3375 = vld [vmem:[%s2579 + $0xb2] sm:$0xff]
        %v3376 = vld [vmem:[%s2579 + $0xc2] sm:$0xff]
        %v3377 = vld [vmem:[%s2579 + $0xca] sm:$0xff]
        %v3378 = vld [vmem:[%s2579 + $0xda] sm:$0xff]
        %v3379 = vld [vmem:[%s2579 + $0xe2] sm:$0xff]
        %v3380 = vld [vmem:[%s2579 + $0xf2] sm:$0xff]
        %v3381 = vld [vmem:[%s2579 + $0xfa] sm:$0xff]
        %v3382 = vld [vmem:[%s2579 + $0x10a] sm:$0xff]
        %v3383 = vld [vmem:[%s2579 + $0x112] sm:$0xff]
        %v3384 = vld [vmem:[%s2579 + $0x122] sm:$0xff]
        %v3385 = vld [vmem:[%s2579 + $0x12a] sm:$0xff]
        %v3386 = vld [vmem:[%s2579 + $0x13a] sm:$0xff]
        %v3387 = vld [vmem:[%s2579 + $0x142] sm:$0xff]
        %v3388 = vld [vmem:[%s2579 + $0x152] sm:$0xff]
        %v3389 = vld [vmem:[%s2579 + $0x15a] sm:$0xff]
        %v3390 = vld [vmem:[%s2579 + $0x16a] sm:$0xff]
        %v3391 = vld [vmem:[%s2579 + $0x172] sm:$0xff]
        %s3392 = scalar_lea.vmem %s1, 32
        %v3393 = vld [vmem:[%s3392] sm:$0xf]
        %v3395 = vsel %vm214, %v3360, 0
        %v3398 = vsel %vm214, %v3361, 0
        %v3401 = vsel %vm214, %v3362, 0
        %v3404 = vsel %vm214, %v3363, 0
        %v3407 = vsel %vm214, %v3364, 0
        %v3410 = vsel %vm214, %v3365, 0
        %v3413 = vsel %vm214, %v3366, 0
        %v3416 = vsel %vm214, %v3367, 0
        %v3419 = vsel %vm214, %v3368, 0
        %v3422 = vsel %vm214, %v3369, 0
        %v3425 = vsel %vm214, %v3370, 0
        %v3428 = vsel %vm214, %v3371, 0
        %v3431 = vsel %vm214, %v3372, 0
        %v3434 = vsel %vm214, %v3373, 0
        %v3437 = vsel %vm214, %v3374, 0
        %v3440 = vsel %vm214, %v3375, 0
        %v3443 = vsel %vm214, %v3376, 0
        %v3446 = vsel %vm214, %v3377, 0
        %v3449 = vsel %vm214, %v3378, 0
        %v3452 = vsel %vm214, %v3379, 0
        %v3455 = vsel %vm214, %v3380, 0
        %v3458 = vsel %vm214, %v3381, 0
        %v3461 = vsel %vm214, %v3382, 0
        %v3464 = vsel %vm214, %v3383, 0
        %v3467 = vsel %vm214, %v3384, 0
        %v3470 = vsel %vm214, %v3385, 0
        %v3473 = vsel %vm214, %v3386, 0
        %v3476 = vsel %vm214, %v3387, 0
        %v3479 = vsel %vm214, %v3388, 0
        %v3482 = vsel %vm214, %v3389, 0
        %v3485 = vsel %vm214, %v3390, 0
        %v3488 = vsel %vm214, %v3391, 0
        %v3491 = vsel %vm466, %v3393, 0
        %3493 = vmatprep.subr.mxu0 0.0
        %3494 = vmatpush1.msra.mxu0 %v3491
        %3495 = vmatprep.subr.mxu0 0.0
        %3496 = vmatpush1.msra.mxu0 0.0
        %3497 = vmatprep.subr.mxu0 0.0
        %3498 = vmatpush1.msra.mxu0 0.0
        %3499 = vmatprep.subr.mxu0 0.0
        %3500 = vmatpush1.msra.mxu0 0.0
        %3501 = vmatprep.subr.mxu0 0.0
        %3502 = vmatpush1.msra.mxu0 0.0
        %3503 = vmatprep.subr.mxu0 0.0
        %3504 = vmatpush1.msra.mxu0 0.0
        %3505 = vmatprep.subr.mxu0 0.0
        %3506 = vmatpush1.msra.mxu0 0.0
        %3507 = vmatprep.subr.mxu0 0.0
        %3508 = vmatpush1.msra.mxu0 0.0
        %3509 = vmatprep.subr.mxu0 0.0
        %3510 = vmatpush1.msra.mxu0 0.0
        %3511 = vmatprep.subr.mxu0 0.0
        %3512 = vmatpush1.msra.mxu0 0.0
        %3513 = vmatprep.subr.mxu0 0.0
        %3514 = vmatpush1.msra.mxu0 0.0
        %3515 = vmatprep.subr.mxu0 0.0
        %3516 = vmatpush1.msra.mxu0 0.0
        %3517 = vmatprep.subr.mxu0 0.0
        %3518 = vmatpush1.msra.mxu0 0.0
        %3519 = vmatprep.subr.mxu0 0.0
        %3520 = vmatpush1.msra.mxu0 0.0
        %3521 = vmatprep.subr.mxu0 0.0
        %3522 = vmatpush1.msra.mxu0 0.0
        %3523 = vmatprep.subr.mxu0 0.0
        %3524 = vmatpush1.msra.mxu0 0.0
        %3525 = vmatprep.subr.mxu0 0.0
        %3526 = vmatpush1.msra.mxu0 0.0
        %3527 = vmatprep.subr.mxu0 0.0
        %3528 = vmatpush1.msra.mxu0 0.0
        %3529 = vmatprep.subr.mxu0 0.0
        %3530 = vmatpush1.msra.mxu0 0.0
        %3531 = vmatprep.subr.mxu0 0.0
        %3532 = vmatpush1.msra.mxu0 0.0
        %3533 = vmatprep.subr.mxu0 0.0
        %3534 = vmatpush1.msra.mxu0 0.0
        %3535 = vmatprep.subr.mxu0 0.0
        %3536 = vmatpush1.msra.mxu0 0.0
        %3537 = vmatprep.subr.mxu0 0.0
        %3538 = vmatpush1.msra.mxu0 0.0
        %3539 = vmatprep.subr.mxu0 0.0
        %3540 = vmatpush1.msra.mxu0 0.0
        %3541 = vmatprep.subr.mxu0 0.0
        %3542 = vmatpush1.msra.mxu0 0.0
        %3543 = vmatprep.subr.mxu0 0.0
        %3544 = vmatpush1.msra.mxu0 0.0
        %3545 = vmatprep.subr.mxu0 0.0
        %3546 = vmatpush1.msra.mxu0 0.0
        %3547 = vmatprep.subr.mxu0 0.0
        %3548 = vmatpush1.msra.mxu0 0.0
        %3549 = vmatprep.subr.mxu0 0.0
        %3550 = vmatpush1.msra.mxu0 0.0
        %3551 = vmatprep.subr.mxu0 0.0
        %3552 = vmatpush1.msra.mxu0 0.0
        %3553 = vmatprep.subr.mxu0 0.0
        %3554 = vmatpush1.msra.mxu0 0.0
        %3555 = vmatprep.subr.mxu0 0.0
        %3556 = vmatpush1.msra.mxu0 0.0
        %3557 = vmatprep.mubr.f32.mxu0 0.0
        %3558 = vmatmul.mubr.f32.gmra.mrb[0].mxu0 %v3395
        %v3559 = vpop.f32.mrb[0].mxu0
        %v3560 = vadd.f32 0.0, %v3559
        %v3561 = vpop.f32.mrb[0].mxu0
        %3562 = vmatprep.mubr.f32.mxu0 0.0
        %3563 = vmatmul.mubr.f32.gmra.mrb[0].mxu0 %v3398
        %v3564 = vpop.f32.mrb[0].mxu0
        %v3565 = vadd.f32 0.0, %v3564
        %v3566 = vpop.f32.mrb[0].mxu0
        %3567 = vmatprep.mubr.f32.mxu0 0.0
        %3568 = vmatmul.mubr.f32.gmra.mrb[0].mxu0 %v3401
        %v3569 = vpop.f32.mrb[0].mxu0
        %v3570 = vadd.f32 0.0, %v3569
        %v3571 = vpop.f32.mrb[0].mxu0
        %3572 = vmatprep.mubr.f32.mxu0 0.0
        %3573 = vmatmul.mubr.f32.gmra.mrb[0].mxu0 %v3404
        %v3574 = vpop.f32.mrb[0].mxu0
        %v3575 = vadd.f32 0.0, %v3574
        %v3576 = vpop.f32.mrb[0].mxu0
        %3577 = vmatprep.mubr.f32.mxu0 0.0
        %3578 = vmatmul.mubr.f32.gmra.mrb[0].mxu0 %v3407
        %v3579 = vpop.f32.mrb[0].mxu0
        %v3580 = vadd.f32 0.0, %v3579
        %v3581 = vpop.f32.mrb[0].mxu0
        %3582 = vmatprep.mubr.f32.mxu0 0.0
        %3583 = vmatmul.mubr.f32.gmra.mrb[0].mxu0 %v3410
        %v3584 = vpop.f32.mrb[0].mxu0
        %v3585 = vadd.f32 0.0, %v3584
        %v3586 = vpop.f32.mrb[0].mxu0
        %3587 = vmatprep.mubr.f32.mxu0 0.0
        %3588 = vmatmul.mubr.f32.gmra.mrb[0].mxu0 %v3413
        %v3589 = vpop.f32.mrb[0].mxu0
        %v3590 = vadd.f32 0.0, %v3589
        %v3591 = vpop.f32.mrb[0].mxu0
        %3592 = vmatprep.mubr.f32.mxu0 0.0
        %3593 = vmatmul.mubr.f32.gmra.mrb[0].mxu0 %v3416
        %v3594 = vpop.f32.mrb[0].mxu0
        %v3595 = vadd.f32 0.0, %v3594
        %v3596 = vpop.f32.mrb[0].mxu0
        %3597 = vmatprep.mubr.f32.mxu0 0.0
        %3598 = vmatmul.mubr.f32.gmra.mrb[0].mxu0 %v3419
        %v3599 = vpop.f32.mrb[0].mxu0
        %v3600 = vadd.f32 0.0, %v3599
        %v3601 = vpop.f32.mrb[0].mxu0
        %3602 = vmatprep.mubr.f32.mxu0 0.0
        %3603 = vmatmul.mubr.f32.gmra.mrb[0].mxu0 %v3422
        %v3604 = vpop.f32.mrb[0].mxu0
        %v3605 = vadd.f32 0.0, %v3604
        %v3606 = vpop.f32.mrb[0].mxu0
        %3607 = vmatprep.mubr.f32.mxu0 0.0
        %3608 = vmatmul.mubr.f32.gmra.mrb[0].mxu0 %v3425
        %v3609 = vpop.f32.mrb[0].mxu0
        %v3610 = vadd.f32 0.0, %v3609
        %v3611 = vpop.f32.mrb[0].mxu0
        %3612 = vmatprep.mubr.f32.mxu0 0.0
        %3613 = vmatmul.mubr.f32.gmra.mrb[0].mxu0 %v3428
        %v3614 = vpop.f32.mrb[0].mxu0
        %v3615 = vadd.f32 0.0, %v3614
        %v3616 = vpop.f32.mrb[0].mxu0
        %3617 = vmatprep.mubr.f32.mxu0 0.0
        %3618 = vmatmul.mubr.f32.gmra.mrb[0].mxu0 %v3431
        %v3619 = vpop.f32.mrb[0].mxu0
        %v3620 = vadd.f32 0.0, %v3619
        %v3621 = vpop.f32.mrb[0].mxu0
        %3622 = vmatprep.mubr.f32.mxu0 0.0
        %3623 = vmatmul.mubr.f32.gmra.mrb[0].mxu0 %v3434
        %v3624 = vpop.f32.mrb[0].mxu0
        %v3625 = vadd.f32 0.0, %v3624
        %v3626 = vpop.f32.mrb[0].mxu0
        %3627 = vmatprep.mubr.f32.mxu0 0.0
        %3628 = vmatmul.mubr.f32.gmra.mrb[0].mxu0 %v3437
        %v3629 = vpop.f32.mrb[0].mxu0
        %v3630 = vadd.f32 0.0, %v3629
        %v3631 = vpop.f32.mrb[0].mxu0
        %3632 = vmatprep.mubr.f32.mxu0 0.0
        %3633 = vmatmul.mubr.f32.gmra.mrb[0].mxu0 %v3440
        %v3634 = vpop.f32.mrb[0].mxu0
        %v3635 = vadd.f32 0.0, %v3634
        %v3636 = vpop.f32.mrb[0].mxu0
        %3637 = vmatprep.mubr.f32.mxu0 0.0
        %3638 = vmatmul.mubr.f32.gmra.mrb[0].mxu0 %v3443
        %v3639 = vpop.f32.mrb[0].mxu0
        %v3640 = vadd.f32 0.0, %v3639
        %v3641 = vpop.f32.mrb[0].mxu0
        %3642 = vmatprep.mubr.f32.mxu0 0.0
        %3643 = vmatmul.mubr.f32.gmra.mrb[0].mxu0 %v3446
        %v3644 = vpop.f32.mrb[0].mxu0
        %v3645 = vadd.f32 0.0, %v3644
        %v3646 = vpop.f32.mrb[0].mxu0
        %3647 = vmatprep.mubr.f32.mxu0 0.0
        %3648 = vmatmul.mubr.f32.gmra.mrb[0].mxu0 %v3449
        %v3649 = vpop.f32.mrb[0].mxu0
        %v3650 = vadd.f32 0.0, %v3649
        %v3651 = vpop.f32.mrb[0].mxu0
        %3652 = vmatprep.mubr.f32.mxu0 0.0
        %3653 = vmatmul.mubr.f32.gmra.mrb[0].mxu0 %v3452
        %v3654 = vpop.f32.mrb[0].mxu0
        %v3655 = vadd.f32 0.0, %v3654
        %v3656 = vpop.f32.mrb[0].mxu0
        %3657 = vmatprep.mubr.f32.mxu0 0.0
        %3658 = vmatmul.mubr.f32.gmra.mrb[0].mxu0 %v3455
        %v3659 = vpop.f32.mrb[0].mxu0
        %v3660 = vadd.f32 0.0, %v3659
        %v3661 = vpop.f32.mrb[0].mxu0
        %3662 = vmatprep.mubr.f32.mxu0 0.0
        %3663 = vmatmul.mubr.f32.gmra.mrb[0].mxu0 %v3458
        %v3664 = vpop.f32.mrb[0].mxu0
        %v3665 = vadd.f32 0.0, %v3664
        %v3666 = vpop.f32.mrb[0].mxu0
        %3667 = vmatprep.mubr.f32.mxu0 0.0
        %3668 = vmatmul.mubr.f32.gmra.mrb[0].mxu0 %v3461
        %v3669 = vpop.f32.mrb[0].mxu0
        %v3670 = vadd.f32 0.0, %v3669
        %v3671 = vpop.f32.mrb[0].mxu0
        %3672 = vmatprep.mubr.f32.mxu0 0.0
        %3673 = vmatmul.mubr.f32.gmra.mrb[0].mxu0 %v3464
        %v3674 = vpop.f32.mrb[0].mxu0
        %v3675 = vadd.f32 0.0, %v3674
        %v3676 = vpop.f32.mrb[0].mxu0
        %3677 = vmatprep.mubr.f32.mxu0 0.0
        %3678 = vmatmul.mubr.f32.gmra.mrb[0].mxu0 %v3467
        %v3679 = vpop.f32.mrb[0].mxu0
        %v3680 = vadd.f32 0.0, %v3679
        %v3681 = vpop.f32.mrb[0].mxu0
        %3682 = vmatprep.mubr.f32.mxu0 0.0
        %3683 = vmatmul.mubr.f32.gmra.mrb[0].mxu0 %v3470
        %v3684 = vpop.f32.mrb[0].mxu0
        %v3685 = vadd.f32 0.0, %v3684
        %v3686 = vpop.f32.mrb[0].mxu0
        %3687 = vmatprep.mubr.f32.mxu0 0.0
        %3688 = vmatmul.mubr.f32.gmra.mrb[0].mxu0 %v3473
        %v3689 = vpop.f32.mrb[0].mxu0
        %v3690 = vadd.f32 0.0, %v3689
        %v3691 = vpop.f32.mrb[0].mxu0
        %3692 = vmatprep.mubr.f32.mxu0 0.0
        %3693 = vmatmul.mubr.f32.gmra.mrb[0].mxu0 %v3476
        %v3694 = vpop.f32.mrb[0].mxu0
        %v3695 = vadd.f32 0.0, %v3694
        %v3696 = vpop.f32.mrb[0].mxu0
        %3697 = vmatprep.mubr.f32.mxu0 0.0
        %3698 = vmatmul.mubr.f32.gmra.mrb[0].mxu0 %v3479
        %v3699 = vpop.f32.mrb[0].mxu0
        %v3700 = vadd.f32 0.0, %v3699
        %v3701 = vpop.f32.mrb[0].mxu0
        %3702 = vmatprep.mubr.f32.mxu0 0.0
        %3703 = vmatmul.mubr.f32.gmra.mrb[0].mxu0 %v3482
        %v3704 = vpop.f32.mrb[0].mxu0
        %v3705 = vadd.f32 0.0, %v3704
        %v3706 = vpop.f32.mrb[0].mxu0
        %3707 = vmatprep.mubr.f32.mxu0 0.0
        %3708 = vmatmul.mubr.f32.gmra.mrb[0].mxu0 %v3485
        %v3709 = vpop.f32.mrb[0].mxu0
        %v3710 = vadd.f32 0.0, %v3709
        %v3711 = vpop.f32.mrb[0].mxu0
        %3712 = vmatprep.mubr.f32.mxu0 0.0
        %3713 = vmatmul.mubr.f32.gmra.mrb[0].mxu0 %v3488
        %v3714 = vpop.f32.mrb[0].mxu0
        %v3715 = vadd.f32 0.0, %v3714
        %v3716 = vpop.f32.mrb[0].mxu0
        %3717 = vdwg.mxu0
        %v3718 = vadd.f32 %v3328, %v3560
        %v3719 = vadd.f32 %v3329, %v3565
        %v3720 = vadd.f32 %v3330, %v3570
        %v3721 = vadd.f32 %v3331, %v3575
        %v3722 = vadd.f32 %v3332, %v3580
        %v3723 = vadd.f32 %v3333, %v3585
        %v3724 = vadd.f32 %v3334, %v3590
        %v3725 = vadd.f32 %v3335, %v3595
        %v3726 = vadd.f32 %v3336, %v3600
        %v3727 = vadd.f32 %v3337, %v3605
        %v3728 = vadd.f32 %v3338, %v3610
        %v3729 = vadd.f32 %v3339, %v3615
        %v3730 = vadd.f32 %v3340, %v3620
        %v3731 = vadd.f32 %v3341, %v3625
        %v3732 = vadd.f32 %v3342, %v3630
        %v3733 = vadd.f32 %v3343, %v3635
        %v3734 = vadd.f32 %v3344, %v3640
        %v3735 = vadd.f32 %v3345, %v3645
        %v3736 = vadd.f32 %v3346, %v3650
        %v3737 = vadd.f32 %v3347, %v3655
        %v3738 = vadd.f32 %v3348, %v3660
        %v3739 = vadd.f32 %v3349, %v3665
        %v3740 = vadd.f32 %v3350, %v3670
        %v3741 = vadd.f32 %v3351, %v3675
        %v3742 = vadd.f32 %v3352, %v3680
        %v3743 = vadd.f32 %v3353, %v3685
        %v3744 = vadd.f32 %v3354, %v3690
        %v3745 = vadd.f32 %v3355, %v3695
        %v3746 = vadd.f32 %v3356, %v3700
        %v3747 = vadd.f32 %v3357, %v3705
        %v3748 = vadd.f32 %v3358, %v3710
        %v3749 = vadd.f32 %v3359, %v3715
        %vm3750 = vcmask 64512
        %3751 = vst.msk [vmem:[%s181] sm:$0xff] %vm3750, %v3718
        %3752 = vst.msk [vmem:[%s181 + $0x8] sm:$0xff] %vm3750, %v3719
        %3753 = vst.msk [vmem:[%s181 + $0x10] sm:$0xff] %vm3750, %v3720
        %3754 = vst.msk [vmem:[%s181 + $0x18] sm:$0xff] %vm3750, %v3721
        %3755 = vst.msk [vmem:[%s181 + $0x20] sm:$0xff] %vm3750, %v3722
        %3756 = vst.msk [vmem:[%s181 + $0x28] sm:$0xff] %vm3750, %v3723
        %3757 = vst.msk [vmem:[%s181 + $0x30] sm:$0xff] %vm3750, %v3724
        %3758 = vst.msk [vmem:[%s181 + $0x38] sm:$0xff] %vm3750, %v3725
        %3759 = vst.msk [vmem:[%s181 + $0x40] sm:$0xff] %vm3750, %v3726
        %3760 = vst.msk [vmem:[%s181 + $0x48] sm:$0xff] %vm3750, %v3727
        %3761 = vst.msk [vmem:[%s181 + $0x50] sm:$0xff] %vm3750, %v3728
        %3762 = vst.msk [vmem:[%s181 + $0x58] sm:$0xff] %vm3750, %v3729
        %3763 = vst.msk [vmem:[%s181 + $0x60] sm:$0xff] %vm3750, %v3730
        %3764 = vst.msk [vmem:[%s181 + $0x68] sm:$0xff] %vm3750, %v3731
        %3765 = vst.msk [vmem:[%s181 + $0x70] sm:$0xff] %vm3750, %v3732
        %3766 = vst.msk [vmem:[%s181 + $0x78] sm:$0xff] %vm3750, %v3733
        %3767 = vst.msk [vmem:[%s181 + $0x80] sm:$0xff] %vm3750, %v3734
        %3768 = vst.msk [vmem:[%s181 + $0x88] sm:$0xff] %vm3750, %v3735
        %3769 = vst.msk [vmem:[%s181 + $0x90] sm:$0xff] %vm3750, %v3736
        %3770 = vst.msk [vmem:[%s181 + $0x98] sm:$0xff] %vm3750, %v3737
        %3771 = vst.msk [vmem:[%s181 + $0xa0] sm:$0xff] %vm3750, %v3738
        %3772 = vst.msk [vmem:[%s181 + $0xa8] sm:$0xff] %vm3750, %v3739
        %3773 = vst.msk [vmem:[%s181 + $0xb0] sm:$0xff] %vm3750, %v3740
        %3774 = vst.msk [vmem:[%s181 + $0xb8] sm:$0xff] %vm3750, %v3741
        %3775 = vst.msk [vmem:[%s181 + $0xc0] sm:$0xff] %vm3750, %v3742
        %3776 = vst.msk [vmem:[%s181 + $0xc8] sm:$0xff] %vm3750, %v3743
        %3777 = vst.msk [vmem:[%s181 + $0xd0] sm:$0xff] %vm3750, %v3744
        %3778 = vst.msk [vmem:[%s181 + $0xd8] sm:$0xff] %vm3750, %v3745
        %3779 = vst.msk [vmem:[%s181 + $0xe0] sm:$0xff] %vm3750, %v3746
        %3780 = vst.msk [vmem:[%s181 + $0xe8] sm:$0xff] %vm3750, %v3747
        %3781 = vst.msk [vmem:[%s181 + $0xf0] sm:$0xff] %vm3750, %v3748
        %3782 = vst.msk [vmem:[%s181 + $0xf8] sm:$0xff] %vm3750, %v3749
        %v3783 = vsel %vm3750, %v3718, 0.0
        %v3784 = vsel %vm3750, %v3719, 0.0
        %v3785 = vadd.f32 %v3783, %v3784
        %v3786 = vsel %vm3750, %v3720, 0.0
        %v3787 = vadd.f32 %v3785, %v3786
        %v3788 = vsel %vm3750, %v3721, 0.0
        %v3789 = vadd.f32 %v3787, %v3788
        %v3790 = vsel %vm3750, %v3722, 0.0
        %v3791 = vadd.f32 %v3789, %v3790
        %v3792 = vsel %vm3750, %v3723, 0.0
        %v3793 = vadd.f32 %v3791, %v3792
        %v3794 = vsel %vm3750, %v3724, 0.0
        %v3795 = vadd.f32 %v3793, %v3794
        %v3796 = vsel %vm3750, %v3725, 0.0
        %v3797 = vadd.f32 %v3795, %v3796
        %v3798 = vsel %vm3750, %v3726, 0.0
        %v3799 = vadd.f32 %v3797, %v3798
        %v3800 = vsel %vm3750, %v3727, 0.0
        %v3801 = vadd.f32 %v3799, %v3800
        %v3802 = vsel %vm3750, %v3728, 0.0
        %v3803 = vadd.f32 %v3801, %v3802
        %v3804 = vsel %vm3750, %v3729, 0.0
        %v3805 = vadd.f32 %v3803, %v3804
        %v3806 = vsel %vm3750, %v3730, 0.0
        %v3807 = vadd.f32 %v3805, %v3806
        %v3808 = vsel %vm3750, %v3731, 0.0
        %v3809 = vadd.f32 %v3807, %v3808
        %v3810 = vsel %vm3750, %v3732, 0.0
        %v3811 = vadd.f32 %v3809, %v3810
        %v3812 = vsel %vm3750, %v3733, 0.0
        %v3813 = vadd.f32 %v3811, %v3812
        %v3814 = vsel %vm3750, %v3734, 0.0
        %v3815 = vadd.f32 %v3813, %v3814
        %v3816 = vsel %vm3750, %v3735, 0.0
        %v3817 = vadd.f32 %v3815, %v3816
        %v3818 = vsel %vm3750, %v3736, 0.0
        %v3819 = vadd.f32 %v3817, %v3818
        %v3820 = vsel %vm3750, %v3737, 0.0
        %v3821 = vadd.f32 %v3819, %v3820
        %v3822 = vsel %vm3750, %v3738, 0.0
        %v3823 = vadd.f32 %v3821, %v3822
        %v3824 = vsel %vm3750, %v3739, 0.0
        %v3825 = vadd.f32 %v3823, %v3824
        %v3826 = vsel %vm3750, %v3740, 0.0
        %v3827 = vadd.f32 %v3825, %v3826
        %v3828 = vsel %vm3750, %v3741, 0.0
        %v3829 = vadd.f32 %v3827, %v3828
        %v3830 = vsel %vm3750, %v3742, 0.0
        %v3831 = vadd.f32 %v3829, %v3830
        %v3832 = vsel %vm3750, %v3743, 0.0
        %v3833 = vadd.f32 %v3831, %v3832
        %v3834 = vsel %vm3750, %v3744, 0.0
        %v3835 = vadd.f32 %v3833, %v3834
        %v3836 = vsel %vm3750, %v3745, 0.0
        %v3837 = vadd.f32 %v3835, %v3836
        %v3838 = vsel %vm3750, %v3746, 0.0
        %v3839 = vadd.f32 %v3837, %v3838
        %v3840 = vsel %vm3750, %v3747, 0.0
        %v3841 = vadd.f32 %v3839, %v3840
        %v3842 = vsel %vm3750, %v3748, 0.0
        %v3843 = vadd.f32 %v3841, %v3842
        %v3844 = vsel %vm3750, %v3749, 0.0
        %v3845 = vadd.f32 %v3843, %v3844
        %v3846 = vrot.slane %v3845, 4
        %v3847 = vadd.f32 %v3845, %v3846
        %v3848 = vrot.slane %v3847, 2
        %v3849 = vadd.f32 %v3847, %v3848
        %v3850 = vrot.slane %v3849, 1
        %v3851 = vadd.f32 %v3849, %v3850
        %v3852 = vmul.f32 %v3851, 0.00390625
        %v3853 = vsub.f32 %v3718, %v3852
        %v3854 = vsub.f32 %v3719, %v3852
        %v3855 = vsub.f32 %v3720, %v3852
        %v3856 = vsub.f32 %v3721, %v3852
        %v3857 = vsub.f32 %v3722, %v3852
        %v3858 = vsub.f32 %v3723, %v3852
        %v3859 = vsub.f32 %v3724, %v3852
        %v3860 = vsub.f32 %v3725, %v3852
        %v3861 = vsub.f32 %v3726, %v3852
        %v3862 = vsub.f32 %v3727, %v3852
        %v3863 = vsub.f32 %v3728, %v3852
        %v3864 = vsub.f32 %v3729, %v3852
        %v3865 = vsub.f32 %v3730, %v3852
        %v3866 = vsub.f32 %v3731, %v3852
        %v3867 = vsub.f32 %v3732, %v3852
        %v3868 = vsub.f32 %v3733, %v3852
        %v3869 = vsub.f32 %v3734, %v3852
        %v3870 = vsub.f32 %v3735, %v3852
        %v3871 = vsub.f32 %v3736, %v3852
        %v3872 = vsub.f32 %v3737, %v3852
        %v3873 = vsub.f32 %v3738, %v3852
        %v3874 = vsub.f32 %v3739, %v3852
        %v3875 = vsub.f32 %v3740, %v3852
        %v3876 = vsub.f32 %v3741, %v3852
        %v3877 = vsub.f32 %v3742, %v3852
        %v3878 = vsub.f32 %v3743, %v3852
        %v3879 = vsub.f32 %v3744, %v3852
        %v3880 = vsub.f32 %v3745, %v3852
        %v3881 = vsub.f32 %v3746, %v3852
        %v3882 = vsub.f32 %v3747, %v3852
        %v3883 = vsub.f32 %v3748, %v3852
        %v3884 = vsub.f32 %v3749, %v3852
        %v3885 = vmul.f32 %v3853, %v3853
        %v3886 = vmul.f32 %v3854, %v3854
        %v3887 = vmul.f32 %v3855, %v3855
        %v3888 = vmul.f32 %v3856, %v3856
        %v3889 = vmul.f32 %v3857, %v3857
        %v3890 = vmul.f32 %v3858, %v3858
        %v3891 = vmul.f32 %v3859, %v3859
        %v3892 = vmul.f32 %v3860, %v3860
        %v3893 = vmul.f32 %v3861, %v3861
        %v3894 = vmul.f32 %v3862, %v3862
        %v3895 = vmul.f32 %v3863, %v3863
        %v3896 = vmul.f32 %v3864, %v3864
        %v3897 = vmul.f32 %v3865, %v3865
        %v3898 = vmul.f32 %v3866, %v3866
        %v3899 = vmul.f32 %v3867, %v3867
        %v3900 = vmul.f32 %v3868, %v3868
        %v3901 = vmul.f32 %v3869, %v3869
        %v3902 = vmul.f32 %v3870, %v3870
        %v3903 = vmul.f32 %v3871, %v3871
        %v3904 = vmul.f32 %v3872, %v3872
        %v3905 = vmul.f32 %v3873, %v3873
        %v3906 = vmul.f32 %v3874, %v3874
        %v3907 = vmul.f32 %v3875, %v3875
        %v3908 = vmul.f32 %v3876, %v3876
        %v3909 = vmul.f32 %v3877, %v3877
        %v3910 = vmul.f32 %v3878, %v3878
        %v3911 = vmul.f32 %v3879, %v3879
        %v3912 = vmul.f32 %v3880, %v3880
        %v3913 = vmul.f32 %v3881, %v3881
        %v3914 = vmul.f32 %v3882, %v3882
        %v3915 = vmul.f32 %v3883, %v3883
        %v3916 = vmul.f32 %v3884, %v3884
        %v3917 = vsel %vm3750, %v3885, 0.0
        %v3918 = vsel %vm3750, %v3886, 0.0
        %v3919 = vadd.f32 %v3917, %v3918
        %v3920 = vsel %vm3750, %v3887, 0.0
        %v3921 = vadd.f32 %v3919, %v3920
        %v3922 = vsel %vm3750, %v3888, 0.0
        %v3923 = vadd.f32 %v3921, %v3922
        %v3924 = vsel %vm3750, %v3889, 0.0
        %v3925 = vadd.f32 %v3923, %v3924
        %v3926 = vsel %vm3750, %v3890, 0.0
        %v3927 = vadd.f32 %v3925, %v3926
        %v3928 = vsel %vm3750, %v3891, 0.0
        %v3929 = vadd.f32 %v3927, %v3928
        %v3930 = vsel %vm3750, %v3892, 0.0
        %v3931 = vadd.f32 %v3929, %v3930
        %v3932 = vsel %vm3750, %v3893, 0.0
        %v3933 = vadd.f32 %v3931, %v3932
        %v3934 = vsel %vm3750, %v3894, 0.0
        %v3935 = vadd.f32 %v3933, %v3934
        %v3936 = vsel %vm3750, %v3895, 0.0
        %v3937 = vadd.f32 %v3935, %v3936
        %v3938 = vsel %vm3750, %v3896, 0.0
        %v3939 = vadd.f32 %v3937, %v3938
        %v3940 = vsel %vm3750, %v3897, 0.0
        %v3941 = vadd.f32 %v3939, %v3940
        %v3942 = vsel %vm3750, %v3898, 0.0
        %v3943 = vadd.f32 %v3941, %v3942
        %v3944 = vsel %vm3750, %v3899, 0.0
        %v3945 = vadd.f32 %v3943, %v3944
        %v3946 = vsel %vm3750, %v3900, 0.0
        %v3947 = vadd.f32 %v3945, %v3946
        %v3948 = vsel %vm3750, %v3901, 0.0
        %v3949 = vadd.f32 %v3947, %v3948
        %v3950 = vsel %vm3750, %v3902, 0.0
        %v3951 = vadd.f32 %v3949, %v3950
        %v3952 = vsel %vm3750, %v3903, 0.0
        %v3953 = vadd.f32 %v3951, %v3952
        %v3954 = vsel %vm3750, %v3904, 0.0
        %v3955 = vadd.f32 %v3953, %v3954
        %v3956 = vsel %vm3750, %v3905, 0.0
        %v3957 = vadd.f32 %v3955, %v3956
        %v3958 = vsel %vm3750, %v3906, 0.0
        %v3959 = vadd.f32 %v3957, %v3958
        %v3960 = vsel %vm3750, %v3907, 0.0
        %v3961 = vadd.f32 %v3959, %v3960
        %v3962 = vsel %vm3750, %v3908, 0.0
        %v3963 = vadd.f32 %v3961, %v3962
        %v3964 = vsel %vm3750, %v3909, 0.0
        %v3965 = vadd.f32 %v3963, %v3964
        %v3966 = vsel %vm3750, %v3910, 0.0
        %v3967 = vadd.f32 %v3965, %v3966
        %v3968 = vsel %vm3750, %v3911, 0.0
        %v3969 = vadd.f32 %v3967, %v3968
        %v3970 = vsel %vm3750, %v3912, 0.0
        %v3971 = vadd.f32 %v3969, %v3970
        %v3972 = vsel %vm3750, %v3913, 0.0
        %v3973 = vadd.f32 %v3971, %v3972
        %v3974 = vsel %vm3750, %v3914, 0.0
        %v3975 = vadd.f32 %v3973, %v3974
        %v3976 = vsel %vm3750, %v3915, 0.0
        %v3977 = vadd.f32 %v3975, %v3976
        %v3978 = vsel %vm3750, %v3916, 0.0
        %v3979 = vadd.f32 %v3977, %v3978
        %v3980 = vrot.slane %v3979, 4
        %v3981 = vadd.f32 %v3979, %v3980
        %v3982 = vrot.slane %v3981, 2
        %v3983 = vadd.f32 %v3981, %v3982
        %v3984 = vrot.slane %v3983, 1
        %v3985 = vadd.f32 %v3983, %v3984
        %vm3986 = vcmask 57344
        %3987 = vst.msk [vmem:[%s171] sm:$0x1] %vm3986, %v3851
        %3988 = vst.msk [vmem:[%s171 + $0x1] sm:$0x1] %vm3986, %v3985
        %p3989 = scmp.lt.s32.totalorder %s18, 1
        %s3990 = scalar_select %p3989, %s18, 1
        %s3991 = smul.addr %s3990, 32
        %s3992 = smul.addr %s3991, 8
        %s3993 = scalar_lea.vmem %s2, %s3992
        %s3994 = sand.u32 %s99, 1
        %s3995 = scalar_lea.sflag [#allocation4], %s3994
        %s3996 = sand.u32 %s99, 1
        %s3997 = smul.addr %s3996, 2
        %s3998 = scalar_lea.vmem [#allocation3], %s3997
        // Predicated region
        $region29: #{tpu_custom_call.1} parent=27 // pred_check
          %p3999 = pneg %p83
        $region30: #{tpu_custom_call.1} parent=27 // pred_check_branch
          %4001 = sbr.rel (%p3999) target = $region32
        $region31: #{tpu_custom_call.1} parent=27 // pred_region
          _
        $region32: #{tpu_custom_call.1} parent=27 // pred_fallthru
          _
        // Predicated region
        $region33: #{tpu_custom_call.1} parent=27 // pred_check
          %p4002 = pneg %p109
        $region34: #{tpu_custom_call.1} parent=27 // pred_check_branch
          %4004 = sbr.rel (%p4002) target = $region36
        $region35: #{tpu_custom_call.1} parent=27 // pred_region
          %s4006 = ssub.s32 32, 32
          %4007 = vsyncadd %s3995, %s4006
          %s4008 = smul.addr %s18, 32
          %s4009 = scalar_lea.hbm %s3, %s4008
          %s4011 = sshll.u32 %s3998, 4
          %s4012 = int_to_ptr.vmem [resolvable:$true] %s4011
          %4014 = dma.vmem_to_hbm [thread:$0]  %s4012, 32, %s4009, %s3995
        $region36: #{tpu_custom_call.1} parent=27 // pred_fallthru
          _
      $region28: #{tpu_custom_call.1} parent=5 // pred_fallthru
        _
      %p4015 = scmp.le.s32.totalorder 2, %s13
      // Predicated region
      $region37: #{tpu_custom_call.1} parent=5 // pred_check
        %p4016 = pneg %p4015
      $region38: #{tpu_custom_call.1} parent=5 // pred_check_branch
        %4018 = sbr.rel (%p4016) target = $region40
      $region39: #{tpu_custom_call.1} parent=5 // pred_region
        %s4019 = ssub.s32 %s13, 2
        // Predicated region
        $region41: #{tpu_custom_call.1} parent=39 // pred_check
          %p4020 = pneg %p89
        $region42: #{tpu_custom_call.1} parent=39 // pred_check_branch
          %4022 = sbr.rel (%p4020) target = $region44
        $region43: #{tpu_custom_call.1} parent=39 // pred_region
          %p4023 = scmp.lt.s32.totalorder %s19, 1
          %s4024 = scalar_select %p4023, %s19, 1
          %s4025 = smul.addr %s4024, 32
          %s4026 = smul.addr %s4025, 8
          %s4027 = scalar_lea.vmem %s2, %s4026
        $region44: #{tpu_custom_call.1} parent=39 // pred_fallthru
          _
        // Predicated region
        $region45: #{tpu_custom_call.1} parent=39 // pred_check
          %p4028 = pneg %p115
        $region46: #{tpu_custom_call.1} parent=39 // pred_check_branch
          %4030 = sbr.rel (%p4028) target = $region48
        $region47: #{tpu_custom_call.1} parent=39 // pred_region
          %s4031 = sand.u32 %s100, 1
          %s4032 = scalar_lea.sflag [#allocation4], %s4031
          %s4033 = sand.u32 %s100, 1
          %s4034 = smul.addr %s4033, 2
          %s4035 = scalar_lea.vmem [#allocation3], %s4034
          %4036 = dma.done %s4032, 32
        $region48: #{tpu_custom_call.1} parent=39 // pred_fallthru
          _
      $region40: #{tpu_custom_call.1} parent=5 // pred_fallthru
        _
    $region6: #{tpu_custom_call.1} parent=1 // loop_footer
      %s17 = sadd.s32 1, %s13
    $region7: #{tpu_custom_call.1} parent=1 // loop_footer_branch
      %12 = sbr.rel target = $region3
    $region8: #{tpu_custom_call.1} parent=1 // loop_exit
      _
    %4037 = vsyncpa [#allocation4], 1
    %s4038 = scalar_lea.sflag [#allocation4], 1
    %4039 = vsyncpa %s4038, 1

</llo_original>
